<compile_context>
chip_gen: v5e
topology: v5e:2x2
jax: 0.10.0
libtpu: 0.0.40
codegen_flags: <defaults>
</compile_context>

<pallas_src>
import functools

import jax
import jax.numpy as jnp
from jax import lax
from jax.experimental import pallas as pl
from jax.experimental.pallas import tpu as pltpu

EPS = 1e-5  # torch.nn.LayerNorm default
VMEM_LIMIT = 64 * 1024 * 1024


def _cparams(*sem):
    return pltpu.CompilerParams(dimension_semantics=sem, vmem_limit_bytes=VMEM_LIMIT)


def _const_spec(arr):
    # Full-array block whose index never changes (weights / biases).
    nd = arr.ndim
    return pl.BlockSpec(arr.shape, lambda *args, _nd=nd: (0,) * _nd)


def _ln(x, w, b):
    # LayerNorm over last dim, fp32 math (matches the fp16-safe LayerNorm subclass).
    m = jnp.mean(x, axis=-1, keepdims=True)
    v = jnp.mean((x - m) ** 2, axis=-1, keepdims=True)
    return (x - m) * lax.rsqrt(v + EPS) * w + b


# --------------------------- tiled Pallas matmul ----------------------------

def matmul_kernel(a_ref, b_ref, o_ref, acc_ref):
    @pl.when(pl.program_id(2) == 0)
    def _init():
        acc_ref[...] = jnp.zeros_like(acc_ref)

    acc_ref[...] += jnp.dot(a_ref[...], b_ref[...],
                            preferred_element_type=jnp.float32)

    @pl.when(pl.program_id(2) == pl.num_programs(2) - 1)
    def _done():
        o_ref[...] = acc_ref[...].astype(o_ref.dtype)


def pallas_matmul(a, b, out_dtype=jnp.float32, tm=256, tn=256, tk=512):
    """(M,K) @ (K,N) with bf16 operands, fp32 accumulation, K-reduction grid."""
    M, K = a.shape
    K2, N = b.shape
    assert K == K2
    a = a.astype(jnp.bfloat16)
    b = b.astype(jnp.bfloat16)
    tm = tm if M % tm == 0 else M       # fall back to full dim (always legal)
    tn = tn if N % tn == 0 else N
    tk = tk if K % tk == 0 else K
    grid = (M // tm, N // tn, K // tk)
    return pl.pallas_call(
        matmul_kernel,
        out_shape=jax.ShapeDtypeStruct((M, N), out_dtype),
        grid=grid,
        in_specs=[pl.BlockSpec((tm, tk), lambda i, j, k: (i, k)),
                  pl.BlockSpec((tk, tn), lambda i, j, k: (k, j))],
        out_specs=pl.BlockSpec((tm, tn), lambda i, j, k: (i, j)),
        scratch_shapes=[pltpu.VMEM((tm, tn), jnp.float32)],
        compiler_params=_cparams("parallel", "parallel", "arbitrary"),
    )(a, b)


# ----------------- CLS + positional embedding + ln_pre (fused) ---------------

def embed_kernel(tok_ref, cls_ref, pos_ref, w_ref, b_ref, o_ref):
    w = w_ref[...]
    b = b_ref[...]
    # CLS row: class_embedding + pos[0], LayerNorm'ed (LN is per-row).
    cls_row = cls_ref[...].astype(jnp.float32) + pos_ref[0:1, :].astype(jnp.float32)
    o_ref[0, 0:1, :] = _ln(cls_row, w, b).astype(o_ref.dtype)
    # Patch rows: tok + pos[1:], LayerNorm'ed.
    rows = tok_ref[0].astype(jnp.float32) + pos_ref[1:, :].astype(jnp.float32)
    o_ref[0, 1:, :] = _ln(rows, w, b).astype(o_ref.dtype)


def pallas_embed(tok, cls_emb, pos_emb, ln_w, ln_b):
    B, N, D = tok.shape
    L = N + 1
    cls2 = cls_emb.reshape(1, D)
    w2, b2 = ln_w.reshape(1, D), ln_b.reshape(1, D)
    return pl.pallas_call(
        embed_kernel,
        out_shape=jax.ShapeDtypeStruct((B, L, D), jnp.float32),
        grid=(B,),
        in_specs=[pl.BlockSpec((1, N, D), lambda i: (i, 0, 0)),
                  _const_spec(cls2), _const_spec(pos_emb),
                  _const_spec(w2), _const_spec(b2)],
        out_specs=pl.BlockSpec((1, L, D), lambda i: (i, 0, 0)),
        compiler_params=_cparams("parallel"),
    )(tok, cls2, pos_emb, w2, b2)


# ------------------------- residual attention block -------------------------
# kernel 1: ln_1 + fused QKV projection (wide 2-D matmul, pre-transposed weight)

def ln_qkv_kernel(x_ref, w_ref, b_ref, qkvw_ref, qkvb_ref, o_ref):
    x = x_ref[0].astype(jnp.float32)                      # (L, D)
    h = _ln(x, w_ref[...], b_ref[...])
    qkv = jnp.dot(h.astype(qkvw_ref.dtype), qkvw_ref[...],
                  preferred_element_type=jnp.float32) + qkvb_ref[...]
    o_ref[0] = qkv.astype(o_ref.dtype)


def pallas_ln_qkv(x, ln_w, ln_b, qkv_w_t, qkv_b):
    B, L, D = x.shape
    threeD = qkv_w_t.shape[1]
    w2, b2 = ln_w.reshape(1, D), ln_b.reshape(1, D)
    qb2 = qkv_b.reshape(1, threeD)
    return pl.pallas_call(
        ln_qkv_kernel,
        out_shape=jax.ShapeDtypeStruct((B, L, threeD), jnp.bfloat16),
        grid=(B,),
        in_specs=[pl.BlockSpec((1, L, D), lambda i: (i, 0, 0)),
                  _const_spec(w2), _const_spec(b2),
                  _const_spec(qkv_w_t), _const_spec(qb2)],
        out_specs=pl.BlockSpec((1, L, threeD), lambda i: (i, 0, 0)),
        compiler_params=_cparams("parallel"),
    )(x, w2, b2, qkv_w_t, qb2)


# kernel 2: attention core, one (batch, head) pair per grid step

def attn_core_kernel(q_ref, k_ref, v_ref, o_ref, *, scale):
    q = q_ref[0, 0]                                       # (L, dh) bf16
    k = k_ref[0, 0]                                       # (L, dh) bf16
    # q @ k^T without materializing a transpose (NT contraction).
    s = lax.dot_general(q, k, (((1,), (1,)), ((), ())),
                        preferred_element_type=jnp.float32) * scale
    s = s - jnp.max(s, axis=-1, keepdims=True)
    p = jnp.exp(s)
    p = p * pl.reciprocal(jnp.sum(p, axis=-1, keepdims=True), approx=True)
    ctx = jnp.dot(p.astype(v_ref.dtype), v_ref[0, 0],
                  preferred_element_type=jnp.float32)     # (L, dh)
    o_ref[0, 0] = ctx.astype(o_ref.dtype)


def pallas_attn_core(q, k, v):
    B, H, L, dh = q.shape
    scale = float(dh) ** -0.5
    spec = pl.BlockSpec((1, 1, L, dh), lambda b, h: (b, h, 0, 0))
    return pl.pallas_call(
        functools.partial(attn_core_kernel, scale=scale),
        out_shape=jax.ShapeDtypeStruct((B, H, L, dh), jnp.bfloat16),
        grid=(B, H),
        in_specs=[spec, spec, spec],
        out_specs=spec,
        compiler_params=_cparams("parallel", "parallel"),
    )(q, k, v)


# kernel 3: out-proj + residual + ln_2 + QuickGELU MLP + residual

def attn_out_mlp_kernel(x_ref, ctx_ref, ow_ref, ob_ref, ln2w_ref, ln2b_ref,
                        fc1w_ref, fc1b_ref, fc2w_ref, fc2b_ref, o_ref):
    x = x_ref[0].astype(jnp.float32)                      # (L, D) residual stream
    attn = jnp.dot(ctx_ref[0], ow_ref[...],
                   preferred_element_type=jnp.float32) + ob_ref[...]
    x = x + attn

    h = _ln(x, ln2w_ref[...], ln2b_ref[...])
    h = jnp.dot(h.astype(fc1w_ref.dtype), fc1w_ref[...],
                preferred_element_type=jnp.float32) + fc1b_ref[...]
    h = h * pl.reciprocal(1.0 + jnp.exp(-1.702 * h), approx=True)   # QuickGELU
    h = jnp.dot(h.astype(fc2w_ref.dtype), fc2w_ref[...],
                preferred_element_type=jnp.float32) + fc2b_ref[...]
    o_ref[0] = (x + h).astype(o_ref.dtype)


def pallas_attn_out_mlp(x, ctx, out_w_t, out_b, ln2_w, ln2_b,
                        fc1_w_t, fc1_b, fc2_w_t, fc2_b):
    B, L, D = x.shape
    hidden = fc1_w_t.shape[1]
    consts = [out_w_t, out_b.reshape(1, D),
              ln2_w.reshape(1, D), ln2_b.reshape(1, D),
              fc1_w_t, fc1_b.reshape(1, hidden),
              fc2_w_t, fc2_b.reshape(1, D)]
    tok_spec = pl.BlockSpec((1, L, D), lambda i: (i, 0, 0))
    return pl.pallas_call(
        attn_out_mlp_kernel,
        out_shape=jax.ShapeDtypeStruct((B, L, D), x.dtype),
        grid=(B,),
        in_specs=[tok_spec, tok_spec] + [_const_spec(c) for c in consts],
        out_specs=tok_spec,
        compiler_params=_cparams("parallel"),
    )(x, ctx, *consts)


def pallas_resblock(x, blk, num_heads):
    """One CLIP ResidualAttentionBlock (nn.MultiheadAttention variant)."""
    B, L, D = x.shape
    dh = D // num_heads
    bf16 = jnp.bfloat16
    # Host-side weight prep: transpose once, cast to bf16 (halves VMEM + 2x MXU rate).
    qkv_w_t = blk["qkv_w"].T.astype(bf16)        # (D, 3D)
    out_w_t = blk["out_w"].T.astype(bf16)        # (D, D)
    fc1_w_t = blk["fc1_w"].T.astype(bf16)        # (D, 4D)
    fc2_w_t = blk["fc2_w"].T.astype(bf16)        # (4D, D)

    qkv = pallas_ln_qkv(x, blk["ln1_w"], blk["ln1_b"], qkv_w_t, blk["qkv_b"])
    # Head split in XLA glue (layout plumbing only): (B,L,3D) -> 3 x (B,H,L,dh).
    qkv = qkv.reshape(B, L, 3, num_heads, dh).transpose(2, 0, 3, 1, 4)
    ctx = pallas_attn_core(qkv[0], qkv[1], qkv[2])            # (B, H, L, dh)
    ctx = ctx.transpose(0, 2, 1, 3).reshape(B, L, D)          # concat heads
    return pallas_attn_out_mlp(x, ctx, out_w_t, blk["out_b"],
                               blk["ln2_w"], blk["ln2_b"],
                               fc1_w_t, blk["fc1_b"], fc2_w_t, blk["fc2_b"])


# ----------------------- ln_post + projection (fused) -----------------------

def ln_proj_kernel(x_ref, w_ref, b_ref, proj_ref, o_ref):
    h = _ln(x_ref[0].astype(jnp.float32), w_ref[...], b_ref[...])
    o_ref[0] = jnp.dot(h.astype(proj_ref.dtype), proj_ref[...],
                       preferred_element_type=jnp.float32).astype(o_ref.dtype)


def pallas_ln_proj(x, ln_w, ln_b, proj):
    B, L, D = x.shape
    Dout = proj.shape[1]
    w2, b2 = ln_w.reshape(1, D), ln_b.reshape(1, D)
    proj_bf = proj.astype(jnp.bfloat16)
    return pl.pallas_call(
        ln_proj_kernel,
        out_shape=jax.ShapeDtypeStruct((B, L, Dout), jnp.float32),
        grid=(B,),
        in_specs=[pl.BlockSpec((1, L, D), lambda i: (i, 0, 0)),
                  _const_spec(w2), _const_spec(b2), _const_spec(proj_bf)],
        out_specs=pl.BlockSpec((1, L, Dout), lambda i: (i, 0, 0)),
        compiler_params=_cparams("parallel"),
    )(x, w2, b2, proj_bf)


# ------------------------------- glue / model -------------------------------

def compute_attention_mask(x, params, patch_size):
    # Dead side-computation in the DPAM_layer=None path (result unused by the
    # PyTorch forward); gated off by default, kept for fidelity.
    B, C, H, W = x.shape
    seq_len = H * W // patch_size ** 2 + 1
    dn = ("NCHW", "OIHW", "NCHW")
    g3 = lax.conv_general_dilated(x, params["da_conv3_w"], (1, 1), [(1, 1), (1, 1)],
                                  dimension_numbers=dn, feature_group_count=C)
    g5 = lax.conv_general_dilated(x, params["da_conv5_w"], (1, 1), [(2, 2), (2, 2)],
                                  dimension_numbers=dn, feature_group_count=C)
    var3 = jnp.mean(jnp.var(jnp.abs(g3), axis=(2, 3), ddof=1), axis=1)
    var5 = jnp.mean(jnp.var(jnp.abs(g5), axis=(2, 3), ddof=1), axis=1)
    grad_var = (var3 + var5) / 2.0
    th_in = jnp.stack([params["high_th"], params["low_th"]])
    hdn = jnp.maximum(th_in @ params["th_w1"].T + params["th_b1"], 0.0)
    thresholds = hdn @ params["th_w2"].T + params["th_b2"]
    hi, lo = thresholds[0], thresholds[1]
    inner = jnp.where(grad_var > hi, 0.5,
                      jnp.where((grad_var >= lo) & (grad_var <= hi), 0.75, 1.0))
    mask = jnp.ones((B, seq_len, seq_len), x.dtype)
    mask = mask.at[:, 1:, 1:].set(inner[:, None, None])
    mask = mask.at[:, 0, :].set(1.0)
    mask = mask.at[:, :, 0].set(1.0)
    return mask


def vit_forward(x, params, features_list, heads, patch_size,
                compute_unused_mask=False):
    B, C, H, W = x.shape
    width = params["conv1_w"].shape[0]

    if compute_unused_mask:
        _ = compute_attention_mask(x, params, patch_size)   # unused, as in PyTorch

    # conv1 (stride=patch, no bias) as patch extraction + tiled Pallas matmul.
    ps = patch_size
    Hp, Wp = H // ps, W // ps
    patches = (x.reshape(B, C, Hp, ps, Wp, ps)
                 .transpose(0, 2, 4, 1, 3, 5)
                 .reshape(B * Hp * Wp, C * ps * ps))
    conv_w = params["conv1_w"].reshape(width, -1).T           # (C*ps*ps, width)
    tok = pallas_matmul(patches, conv_w).reshape(B, Hp * Wp, width)

    # class token + positional embedding + ln_pre, fused in one kernel.
    # NOTE: positional-embedding bilinear interpolation branch is never taken at the
    # native resolution, so it is not implemented.
    tok = pallas_embed(tok, params["class_embedding"], params["positional_embedding"],
                       params["ln_pre_w"], params["ln_pre_b"])

    # TODO(synk): TextureAwareWindowAttention class is not defined in the provided
    # source; it is treated as identity here.

    # transformer (ori_CLIP_with_patch_forward: out_layers are 1-indexed)
    out_tokens = []
    xcur = tok
    for idx, blk in enumerate(params["blocks"], start=1):
        xcur = pallas_resblock(xcur, blk, heads)
        if idx in features_list:
            out_tokens.append(xcur)
    x_ori = xcur                                              # ([x, x], out_tokens)

    # ln_post + projection of collected patch tokens (fused per feature layer).
    patch_token_list = [pallas_ln_proj(t, params["ln_post_w"], params["ln_post_b"],
                                       params["proj"])
                        for t in out_tokens]

    # x_ori[0, :, :] @ proj  (CLS token, no ln_post -- matches the PyTorch forward)
    cls_out = pallas_matmul(x_ori[:, 0, :], params["proj"])   # (B, output_dim)
    return cls_out, patch_token_list


def init_params(key, input_resolution, patch_size, width, layers, heads, output_dim):
    keys = jax.random.split(key, 8 + 6 * layers)
    ki = iter(keys)
    scale = width ** -0.5
    n_patches = (input_resolution // patch_size) ** 2
    f32 = jnp.float32
    p = {
        "conv1_w": jax.random.normal(next(ki), (width, 3, patch_size, patch_size), f32) * 0.02,
        "class_embedding": scale * jax.random.normal(next(ki), (width,), f32),
        "positional_embedding": scale * jax.random.normal(next(ki), (n_patches + 1, width), f32),
        "ln_pre_w": jnp.ones((width,), f32), "ln_pre_b": jnp.zeros((width,), f32),
        "ln_post_w": jnp.ones((width,), f32), "ln_post_b": jnp.zeros((width,), f32),
        "proj": scale * jax.random.normal(next(ki), (width, output_dim), f32),
        "da_conv3_w": jax.random.normal(next(ki), (3, 1, 3, 3), f32) * 0.1,
        "da_conv5_w": jax.random.normal(next(ki), (3, 1, 5, 5), f32) * 0.1,
        "th_w1": jax.random.normal(next(ki), (32, 2), f32) * 0.1,
        "th_b1": jnp.zeros((32,), f32),
        "th_w2": jax.random.normal(next(ki), (2, 32), f32) * 0.1,
        "th_b2": jnp.zeros((2,), f32),
        "high_th": jnp.float32(0.8),
        "low_th": jnp.float32(0.2),
    }
    blocks = []
    for _ in range(layers):
        blocks.append({
            "ln1_w": jnp.ones((width,), f32), "ln1_b": jnp.zeros((width,), f32),
            "qkv_w": jax.random.normal(next(ki), (3 * width, width), f32) * 0.02,
            "qkv_b": jnp.zeros((3 * width,), f32),
            "out_w": jax.random.normal(next(ki), (width, width), f32) * 0.02,
            "out_b": jnp.zeros((width,), f32),
            "ln2_w": jnp.ones((width,), f32), "ln2_b": jnp.zeros((width,), f32),
            "fc1_w": jax.random.normal(next(ki), (4 * width, width), f32) * 0.02,
            "fc1_b": jnp.zeros((4 * width,), f32),
            "fc2_w": jax.random.normal(next(ki), (width, 4 * width), f32) * 0.02,
            "fc2_b": jnp.zeros((width,), f32),
        })
    p["blocks"] = blocks
    return p


if __name__ == "__main__":
    input_resolution, patch_size = 16, 4
    width, layers, heads, output_dim = 32, 2, 4, 16
    B = 2

    key = jax.random.PRNGKey(0)
    kp, kx = jax.random.split(key)
    params = init_params(kp, input_resolution, patch_size, width, layers, heads, output_dim)
    x = jax.random.normal(kx, (B, 3, input_resolution, input_resolution), jnp.float32)

    fwd = jax.jit(functools.partial(vit_forward, features_list=(1, 2),
                                    heads=heads, patch_size=patch_size))
    cls_out, patch_tokens = fwd(x, params)
    cls_out = jax.block_until_ready(cls_out)
    patch_tokens = [jax.block_until_ready(t) for t in patch_tokens]

    n_tok = (input_resolution // patch_size) ** 2 + 1
    assert cls_out.shape == (B, output_dim)
    assert len(patch_tokens) == 2
    assert all(t.shape == (B, n_tok, output_dim) for t in patch_tokens)
    assert all(bool(jnp.all(jnp.isfinite(t))) for t in [cls_out] + patch_tokens)
    print("KERNEL_OK")
</pallas_src>

<mosaic_0001>
module attributes {stable_mosaic.version = 11 : i64} {
  func.func @matmul_kernel(%arg0: i32, %arg1: i32, %arg2: i32, %arg3: memref<32x48xbf16, #tpu.memory_space<vmem>>, %arg4: memref<48x32xbf16, #tpu.memory_space<vmem>>, %arg5: memref<32x32xf32, #tpu.memory_space<vmem>>, %arg6: memref<32x32xf32, #tpu.memory_space<vmem>>) attributes {dimension_semantics = [#tpu.dimension_semantics<parallel>, #tpu.dimension_semantics<parallel>, #tpu.dimension_semantics<arbitrary>], iteration_bounds = array<i64: 1, 1, 1>, scalar_prefetch = 0 : i64, scratch_operands = 1 : i64, tpu.core_type = #tpu.core_type<tc>, window_params = [{transform_indices = @transform_0, window_bounds = array<i64: 32, 48>}, {transform_indices = @transform_1, window_bounds = array<i64: 48, 32>}, {transform_indices = @transform_2, window_bounds = array<i64: 32, 32>}]} {
    %c0_i32 = arith.constant 0 : i32
    %0 = arith.cmpi eq, %arg2, %c0_i32 : i32
    %1 = arith.extui %0 : i1 to i32
    %c0_i32_0 = arith.constant 0 : i32
    %2 = arith.cmpi ne, %1, %c0_i32_0 : i32
    scf.if %2 {
      %cst_10 = arith.constant 0.000000e+00 : f32
      %12 = vector.broadcast %cst_10 : f32 to vector<32x32xf32>
      %c0_11 = arith.constant 0 : index
      %c0_12 = arith.constant 0 : index
      %13 = vector.load %arg6[%c0_11, %c0_12] : memref<32x32xf32, #tpu.memory_space<vmem>>, vector<32x32xf32>
      tpu.vector_store %arg6[%c0_11, %c0_12], %12 {strides = array<i32>} : memref<32x32xf32, #tpu.memory_space<vmem>>, vector<32x32xf32>,
    } else {
    }
    %c0 = arith.constant 0 : index
    %c0_1 = arith.constant 0 : index
    %3 = vector.load %arg6[%c0, %c0_1] : memref<32x32xf32, #tpu.memory_space<vmem>>, vector<32x32xf32>
    %c0_2 = arith.constant 0 : index
    %c0_3 = arith.constant 0 : index
    %4 = vector.load %arg3[%c0_2, %c0_3] : memref<32x48xbf16, #tpu.memory_space<vmem>>, vector<32x48xbf16>
    %c0_4 = arith.constant 0 : index
    %c0_5 = arith.constant 0 : index
    %5 = vector.load %arg4[%c0_4, %c0_5] : memref<48x32xbf16, #tpu.memory_space<vmem>>, vector<48x32xbf16>
    %cst = arith.constant dense<0.000000e+00> : vector<32x32xf32>
    %6 = tpu.matmul %4, %5, %cst {dimension_numbers = #tpu.dot_dimension_numbers<[1], [0], [0], [1], [0, 0, 1, 1], [], []>} : vector<32x48xbf16>, vector<48x32xbf16>, vector<32x32xf32> -> vector<32x32xf32>
    %7 = arith.addf %3, %6 : vector<32x32xf32>
    %c0_6 = arith.constant 0 : index
    %c0_7 = arith.constant 0 : index
    %8 = vector.load %arg6[%c0_6, %c0_7] : memref<32x32xf32, #tpu.memory_space<vmem>>, vector<32x32xf32>
    tpu.vector_store %arg6[%c0_6, %c0_7], %7 {strides = array<i32>} : memref<32x32xf32, #tpu.memory_space<vmem>>, vector<32x32xf32>,
    %c0_i32_8 = arith.constant 0 : i32
    %9 = arith.cmpi eq, %arg2, %c0_i32_8 : i32
    %10 = arith.extui %9 : i1 to i32
    %c0_i32_9 = arith.constant 0 : i32
    %11 = arith.cmpi ne, %10, %c0_i32_9 : i32
    scf.if %11 {
      %c0_10 = arith.constant 0 : index
      %c0_11 = arith.constant 0 : index
      %12 = vector.load %arg6[%c0_10, %c0_11] : memref<32x32xf32, #tpu.memory_space<vmem>>, vector<32x32xf32>
      %c0_12 = arith.constant 0 : index
      %c0_13 = arith.constant 0 : index
      %13 = vector.load %arg5[%c0_12, %c0_13] : memref<32x32xf32, #tpu.memory_space<vmem>>, vector<32x32xf32>
      tpu.vector_store %arg5[%c0_12, %c0_13], %12 {strides = array<i32>} : memref<32x32xf32, #tpu.memory_space<vmem>>, vector<32x32xf32>,
    } else {
    }
    return
  }
  func.func @transform_0(%arg0: i32, %arg1: i32, %arg2: i32) -> (i32, i32) {
    %c0_i32 = arith.constant 0 : i32
    return %arg0, %arg2 : i32, i32
  }
  func.func @transform_1(%arg0: i32, %arg1: i32, %arg2: i32) -> (i32, i32) {
    %c0_i32 = arith.constant 0 : i32
    return %arg2, %arg1 : i32, i32
  }
  func.func @transform_2(%arg0: i32, %arg1: i32, %arg2: i32) -> (i32, i32) {
    %c0_i32 = arith.constant 0 : i32
    return %arg0, %arg1 : i32, i32
  }
}

module attributes {stable_mosaic.version = 11 : i64} {
  func.func @ln_qkv_kernel(%arg0: i32, %arg1: memref<1x17x32xf32, #tpu.memory_space<vmem>>, %arg2: memref<1x32xf32, #tpu.memory_space<vmem>>, %arg3: memref<1x32xf32, #tpu.memory_space<vmem>>, %arg4: memref<32x96xbf16, #tpu.memory_space<vmem>>, %arg5: memref<1x96xf32, #tpu.memory_space<vmem>>, %arg6: memref<1x17x96xbf16, #tpu.memory_space<vmem>>) attributes {dimension_semantics = [#tpu.dimension_semantics<parallel>], iteration_bounds = array<i64: 2>, scalar_prefetch = 0 : i64, scratch_operands = 0 : i64, tpu.core_type = #tpu.core_type<tc>, window_params = [{transform_indices = @transform_0, window_bounds = array<i64: 1, 17, 32>}, {pipeline_mode = #tpu.pipeline_mode<synchronous>, transform_indices = @transform_1, window_bounds = array<i64: 1, 32>}, {pipeline_mode = #tpu.pipeline_mode<synchronous>, transform_indices = @transform_2, window_bounds = array<i64: 1, 32>}, {pipeline_mode = #tpu.pipeline_mode<synchronous>, transform_indices = @transform_3, window_bounds = array<i64: 32, 96>}, {pipeline_mode = #tpu.pipeline_mode<synchronous>, transform_indices = @transform_4, window_bounds = array<i64: 1, 96>}, {transform_indices = @transform_5, window_bounds = array<i64: 1, 17, 96>}]} {
    %c0 = arith.constant 0 : index
    %c0_0 = arith.constant 0 : index
    %c0_1 = arith.constant 0 : index
    %0 = vector.load %arg1[%c0, %c0_0, %c0_1] : memref<1x17x32xf32, #tpu.memory_space<vmem>>, vector<1x17x32xf32>
    %1 = vector.shape_cast %0 : vector<1x17x32xf32> to vector<17x32xf32>
    %c0_2 = arith.constant 0 : index
    %c0_3 = arith.constant 0 : index
    %2 = vector.load %arg2[%c0_2, %c0_3] : memref<1x32xf32, #tpu.memory_space<vmem>>, vector<1x32xf32>
    %c0_4 = arith.constant 0 : index
    %c0_5 = arith.constant 0 : index
    %3 = vector.load %arg3[%c0_4, %c0_5] : memref<1x32xf32, #tpu.memory_space<vmem>>, vector<1x32xf32>
    %cst = arith.constant dense<0.000000e+00> : vector<17xf32>
    %4 = vector.multi_reduction <add>, %1, %cst [1] : vector<17x32xf32> to vector<17xf32>
    %5 = vector.shape_cast %4 : vector<17xf32> to vector<17x1xf32>
    %cst_6 = arith.constant 3.200000e+01 : f32
    %6 = vector.broadcast %cst_6 : f32 to vector<17x1xf32>
    %7 = arith.divf %5, %6 : vector<17x1xf32>
    %8 = vector.broadcast %7 : vector<17x1xf32> to vector<17x32xf32>
    %9 = arith.subf %1, %8 : vector<17x32xf32>
    %10 = arith.mulf %9, %9 : vector<17x32xf32>
    %cst_7 = arith.constant dense<0.000000e+00> : vector<17xf32>
    %11 = vector.multi_reduction <add>, %10, %cst_7 [1] : vector<17x32xf32> to vector<17xf32>
    %12 = vector.shape_cast %11 : vector<17xf32> to vector<17x1xf32>
    %cst_8 = arith.constant 3.200000e+01 : f32
    %13 = vector.broadcast %cst_8 : f32 to vector<17x1xf32>
    %14 = arith.divf %12, %13 : vector<17x1xf32>
    %15 = vector.broadcast %7 : vector<17x1xf32> to vector<17x32xf32>
    %16 = arith.subf %1, %15 : vector<17x32xf32>
    %cst_9 = arith.constant 9.99999974E-6 : f32
    %17 = vector.broadcast %cst_9 : f32 to vector<17x1xf32>
    %18 = arith.addf %14, %17 : vector<17x1xf32>
    %19 = math.rsqrt %18 : vector<17x1xf32>
    %20 = vector.broadcast %19 : vector<17x1xf32> to vector<17x32xf32>
    %21 = arith.mulf %16, %20 : vector<17x32xf32>
    %22 = vector.broadcast %2 : vector<1x32xf32> to vector<17x32xf32>
    %23 = arith.mulf %21, %22 : vector<17x32xf32>
    %24 = vector.broadcast %3 : vector<1x32xf32> to vector<17x32xf32>
    %25 = arith.addf %23, %24 : vector<17x32xf32>
    %26 = arith.truncf %25 : vector<17x32xf32> to vector<17x32xbf16>
    %c0_10 = arith.constant 0 : index
    %c0_11 = arith.constant 0 : index
    %27 = vector.load %arg4[%c0_10, %c0_11] : memref<32x96xbf16, #tpu.memory_space<vmem>>, vector<32x96xbf16>
    %cst_12 = arith.constant dense<0.000000e+00> : vector<17x96xf32>
    %28 = tpu.matmul %26, %27, %cst_12 {dimension_numbers = #tpu.dot_dimension_numbers<[1], [0], [0], [1], [0, 0, 1, 1], [], []>} : vector<17x32xbf16>, vector<32x96xbf16>, vector<17x96xf32> -> vector<17x96xf32>
    %c0_13 = arith.constant 0 : index
    %c0_14 = arith.constant 0 : index
    %29 = vector.load %arg5[%c0_13, %c0_14] : memref<1x96xf32, #tpu.memory_space<vmem>>, vector<1x96xf32>
    %30 = vector.broadcast %29 : vector<1x96xf32> to vector<17x96xf32>
    %31 = arith.addf %28, %30 : vector<17x96xf32>
    %32 = arith.truncf %31 : vector<17x96xf32> to vector<17x96xbf16>
    %c0_15 = arith.constant 0 : index
    %c0_16 = arith.constant 0 : index
    %c0_17 = arith.constant 0 : index
    %33 = vector.load %arg6[%c0_15, %c0_16, %c0_17] : memref<1x17x96xbf16, #tpu.memory_space<vmem>>, vector<1x17x96xbf16>
    %34 = vector.shape_cast %33 : vector<1x17x96xbf16> to vector<17x96xbf16>
    %35 = vector.shape_cast %32 : vector<17x96xbf16> to vector<1x17x96xbf16>
    tpu.vector_store %arg6[%c0_15, %c0_16, %c0_17], %35 {strides = array<i32>} : memref<1x17x96xbf16, #tpu.memory_space<vmem>>, vector<1x17x96xbf16>,
    return
  }
  func.func @transform_0(%arg0: i32) -> (i32, i32, i32) {
    %c0_i32 = arith.constant 0 : i32
    %c0_i32_0 = arith.constant 0 : i32
    %c0_i32_1 = arith.constant 0 : i32
    return %arg0, %c0_i32, %c0_i32_0 : i32, i32, i32
  }
  func.func @transform_1(%arg0: i32) -> (i32, i32) {
    %c0_i32 = arith.constant 0 : i32
    %c0_i32_0 = arith.constant 0 : i32
    %c0_i32_1 = arith.constant 0 : i32
    return %c0_i32, %c0_i32_0 : i32, i32
  }
  func.func @transform_2(%arg0: i32) -> (i32, i32) {
    %c0_i32 = arith.constant 0 : i32
    %c0_i32_0 = arith.constant 0 : i32
    %c0_i32_1 = arith.constant 0 : i32
    return %c0_i32, %c0_i32_0 : i32, i32
  }
  func.func @transform_3(%arg0: i32) -> (i32, i32) {
    %c0_i32 = arith.constant 0 : i32
    %c0_i32_0 = arith.constant 0 : i32
    %c0_i32_1 = arith.constant 0 : i32
    return %c0_i32, %c0_i32_0 : i32, i32
  }
  func.func @transform_4(%arg0: i32) -> (i32, i32) {
    %c0_i32 = arith.constant 0 : i32
    %c0_i32_0 = arith.constant 0 : i32
    %c0_i32_1 = arith.constant 0 : i32
    return %c0_i32, %c0_i32_0 : i32, i32
  }
  func.func @transform_5(%arg0: i32) -> (i32, i32, i32) {
    %c0_i32 = arith.constant 0 : i32
    %c0_i32_0 = arith.constant 0 : i32
    %c0_i32_1 = arith.constant 0 : i32
    return %arg0, %c0_i32, %c0_i32_0 : i32, i32, i32
  }
}

module attributes {stable_mosaic.version = 11 : i64} {
  func.func @embed_kernel(%arg0: i32, %arg1: memref<1x16x32xf32, #tpu.memory_space<vmem>>, %arg2: memref<1x32xf32, #tpu.memory_space<vmem>>, %arg3: memref<17x32xf32, #tpu.memory_space<vmem>>, %arg4: memref<1x32xf32, #tpu.memory_space<vmem>>, %arg5: memref<1x32xf32, #tpu.memory_space<vmem>>, %arg6: memref<1x17x32xf32, #tpu.memory_space<vmem>>) attributes {dimension_semantics = [#tpu.dimension_semantics<parallel>], iteration_bounds = array<i64: 2>, scalar_prefetch = 0 : i64, scratch_operands = 0 : i64, tpu.core_type = #tpu.core_type<tc>, window_params = [{transform_indices = @transform_0, window_bounds = array<i64: 1, 16, 32>}, {pipeline_mode = #tpu.pipeline_mode<synchronous>, transform_indices = @transform_1, window_bounds = array<i64: 1, 32>}, {pipeline_mode = #tpu.pipeline_mode<synchronous>, transform_indices = @transform_2, window_bounds = array<i64: 17, 32>}, {pipeline_mode = #tpu.pipeline_mode<synchronous>, transform_indices = @transform_3, window_bounds = array<i64: 1, 32>}, {pipeline_mode = #tpu.pipeline_mode<synchronous>, transform_indices = @transform_4, window_bounds = array<i64: 1, 32>}, {transform_indices = @transform_5, window_bounds = array<i64: 1, 17, 32>}]} {
    %c0 = arith.constant 0 : index
    %c0_0 = arith.constant 0 : index
    %0 = vector.load %arg4[%c0, %c0_0] : memref<1x32xf32, #tpu.memory_space<vmem>>, vector<1x32xf32>
    %c0_1 = arith.constant 0 : index
    %c0_2 = arith.constant 0 : index
    %1 = vector.load %arg5[%c0_1, %c0_2] : memref<1x32xf32, #tpu.memory_space<vmem>>, vector<1x32xf32>
    %c0_3 = arith.constant 0 : index
    %c0_4 = arith.constant 0 : index
    %2 = vector.load %arg2[%c0_3, %c0_4] : memref<1x32xf32, #tpu.memory_space<vmem>>, vector<1x32xf32>
    %c0_5 = arith.constant 0 : index
    %c0_6 = arith.constant 0 : index
    %3 = vector.load %arg3[%c0_5, %c0_6] : memref<17x32xf32, #tpu.memory_space<vmem>>, vector<1x32xf32>
    %4 = arith.addf %2, %3 : vector<1x32xf32>
    %cst = arith.constant dense<0.000000e+00> : vector<1xf32>
    %5 = vector.multi_reduction <add>, %4, %cst [1] : vector<1x32xf32> to vector<1xf32>
    %6 = vector.shape_cast %5 : vector<1xf32> to vector<1x1xf32>
    %cst_7 = arith.constant 3.200000e+01 : f32
    %7 = vector.broadcast %cst_7 : f32 to vector<1x1xf32>
    %8 = arith.divf %6, %7 : vector<1x1xf32>
    %9 = vector.broadcast %8 : vector<1x1xf32> to vector<1x32xf32>
    %10 = arith.subf %4, %9 : vector<1x32xf32>
    %11 = arith.mulf %10, %10 : vector<1x32xf32>
    %cst_8 = arith.constant dense<0.000000e+00> : vector<1xf32>
    %12 = vector.multi_reduction <add>, %11, %cst_8 [1] : vector<1x32xf32> to vector<1xf32>
    %13 = vector.shape_cast %12 : vector<1xf32> to vector<1x1xf32>
    %cst_9 = arith.constant 3.200000e+01 : f32
    %14 = vector.broadcast %cst_9 : f32 to vector<1x1xf32>
    %15 = arith.divf %13, %14 : vector<1x1xf32>
    %16 = vector.broadcast %8 : vector<1x1xf32> to vector<1x32xf32>
    %17 = arith.subf %4, %16 : vector<1x32xf32>
    %cst_10 = arith.constant 9.99999974E-6 : f32
    %18 = vector.broadcast %cst_10 : f32 to vector<1x1xf32>
    %19 = arith.addf %15, %18 : vector<1x1xf32>
    %20 = math.rsqrt %19 : vector<1x1xf32>
    %21 = vector.broadcast %20 : vector<1x1xf32> to vector<1x32xf32>
    %22 = arith.mulf %17, %21 : vector<1x32xf32>
    %23 = arith.mulf %22, %0 : vector<1x32xf32>
    %24 = arith.addf %23, %1 : vector<1x32xf32>
    %c0_11 = arith.constant 0 : index
    %c0_12 = arith.constant 0 : index
    %c0_13 = arith.constant 0 : index
    %25 = vector.load %arg6[%c0_11, %c0_12, %c0_13] : memref<1x17x32xf32, #tpu.memory_space<vmem>>, vector<1x1x32xf32>
    %26 = vector.shape_cast %25 : vector<1x1x32xf32> to vector<1x32xf32>
    %27 = vector.shape_cast %24 : vector<1x32xf32> to vector<1x1x32xf32>
    tpu.vector_store %arg6[%c0_11, %c0_12, %c0_13], %27 {strides = array<i32>} : memref<1x17x32xf32, #tpu.memory_space<vmem>>, vector<1x1x32xf32>,
    %c0_14 = arith.constant 0 : index
    %c0_15 = arith.constant 0 : index
    %c0_16 = arith.constant 0 : index
    %28 = vector.load %arg1[%c0_14, %c0_15, %c0_16] : memref<1x16x32xf32, #tpu.memory_space<vmem>>, vector<1x16x32xf32>
    %29 = vector.shape_cast %28 : vector<1x16x32xf32> to vector<16x32xf32>
    %c1 = arith.constant 1 : index
    %c0_17 = arith.constant 0 : index
    %30 = vector.load %arg3[%c1, %c0_17] : memref<17x32xf32, #tpu.memory_space<vmem>>, vector<16x32xf32>
    %31 = arith.addf %29, %30 : vector<16x32xf32>
    %cst_18 = arith.constant dense<0.000000e+00> : vector<16xf32>
    %32 = vector.multi_reduction <add>, %31, %cst_18 [1] : vector<16x32xf32> to vector<16xf32>
    %33 = vector.shape_cast %32 : vector<16xf32> to vector<16x1xf32>
    %cst_19 = arith.constant 3.200000e+01 : f32
    %34 = vector.broadcast %cst_19 : f32 to vector<16x1xf32>
    %35 = arith.divf %33, %34 : vector<16x1xf32>
    %36 = vector.broadcast %35 : vector<16x1xf32> to vector<16x32xf32>
    %37 = arith.subf %31, %36 : vector<16x32xf32>
    %38 = arith.mulf %37, %37 : vector<16x32xf32>
    %cst_20 = arith.constant dense<0.000000e+00> : vector<16xf32>
    %39 = vector.multi_reduction <add>, %38, %cst_20 [1] : vector<16x32xf32> to vector<16xf32>
    %40 = vector.shape_cast %39 : vector<16xf32> to vector<16x1xf32>
    %cst_21 = arith.constant 3.200000e+01 : f32
    %41 = vector.broadcast %cst_21 : f32 to vector<16x1xf32>
    %42 = arith.divf %40, %41 : vector<16x1xf32>
    %43 = vector.broadcast %35 : vector<16x1xf32> to vector<16x32xf32>
    %44 = arith.subf %31, %43 : vector<16x32xf32>
    %cst_22 = arith.constant 9.99999974E-6 : f32
    %45 = vector.broadcast %cst_22 : f32 to vector<16x1xf32>
    %46 = arith.addf %42, %45 : vector<16x1xf32>
    %47 = math.rsqrt %46 : vector<16x1xf32>
    %48 = vector.broadcast %47 : vector<16x1xf32> to vector<16x32xf32>
    %49 = arith.mulf %44, %48 : vector<16x32xf32>
    %50 = vector.broadcast %0 : vector<1x32xf32> to vector<16x32xf32>
    %51 = arith.mulf %49, %50 : vector<16x32xf32>
    %52 = vector.broadcast %1 : vector<1x32xf32> to vector<16x32xf32>
    %53 = arith.addf %51, %52 : vector<16x32xf32>
    %c0_23 = arith.constant 0 : index
    %c1_24 = arith.constant 1 : index
    %c0_25 = arith.constant 0 : index
    %54 = vector.load %arg6[%c0_23, %c1_24, %c0_25] : memref<1x17x32xf32, #tpu.memory_space<vmem>>, vector<1x16x32xf32>
    %55 = vector.shape_cast %54 : vector<1x16x32xf32> to vector<16x32xf32>
    %56 = vector.shape_cast %53 : vector<16x32xf32> to vector<1x16x32xf32>
    tpu.vector_store %arg6[%c0_23, %c1_24, %c0_25], %56 {strides = array<i32>} : memref<1x17x32xf32, #tpu.memory_space<vmem>>, vector<1x16x32xf32>,
    return
  }
  func.func @transform_0(%arg0: i32) -> (i32, i32, i32) {
    %c0_i32 = arith.constant 0 : i32
    %c0_i32_0 = arith.constant 0 : i32
    %c0_i32_1 = arith.constant 0 : i32
    return %arg0, %c0_i32, %c0_i32_0 : i32, i32, i32
  }
  func.func @transform_1(%arg0: i32) -> (i32, i32) {
    %c0_i32 = arith.constant 0 : i32
    %c0_i32_0 = arith.constant 0 : i32
    %c0_i32_1 = arith.constant 0 : i32
    return %c0_i32, %c0_i32_0 : i32, i32
  }
  func.func @transform_2(%arg0: i32) -> (i32, i32) {
    %c0_i32 = arith.constant 0 : i32
    %c0_i32_0 = arith.constant 0 : i32
    %c0_i32_1 = arith.constant 0 : i32
    return %c0_i32, %c0_i32_0 : i32, i32
  }
  func.func @transform_3(%arg0: i32) -> (i32, i32) {
    %c0_i32 = arith.constant 0 : i32
    %c0_i32_0 = arith.constant 0 : i32
    %c0_i32_1 = arith.constant 0 : i32
    return %c0_i32, %c0_i32_0 : i32, i32
  }
  func.func @transform_4(%arg0: i32) -> (i32, i32) {
    %c0_i32 = arith.constant 0 : i32
    %c0_i32_0 = arith.constant 0 : i32
    %c0_i32_1 = arith.constant 0 : i32
    return %c0_i32, %c0_i32_0 : i32, i32
  }
  func.func @transform_5(%arg0: i32) -> (i32, i32, i32) {
    %c0_i32 = arith.constant 0 : i32
    %c0_i32_0 = arith.constant 0 : i32
    %c0_i32_1 = arith.constant 0 : i32
    return %arg0, %c0_i32, %c0_i32_0 : i32, i32, i32
  }
}

module attributes {stable_mosaic.version = 11 : i64} {
  func.func @attn_core_kernel(%arg0: i32, %arg1: i32, %arg2: memref<1x1x17x8xbf16, #tpu.memory_space<vmem>>, %arg3: memref<1x1x17x8xbf16, #tpu.memory_space<vmem>>, %arg4: memref<1x1x17x8xbf16, #tpu.memory_space<vmem>>, %arg5: memref<1x1x17x8xbf16, #tpu.memory_space<vmem>>) attributes {dimension_semantics = [#tpu.dimension_semantics<parallel>, #tpu.dimension_semantics<parallel>], iteration_bounds = array<i64: 2, 4>, scalar_prefetch = 0 : i64, scratch_operands = 0 : i64, tpu.core_type = #tpu.core_type<tc>, window_params = [{transform_indices = @transform_0, window_bounds = array<i64: 1, 1, 17, 8>}, {transform_indices = @transform_1, window_bounds = array<i64: 1, 1, 17, 8>}, {transform_indices = @transform_2, window_bounds = array<i64: 1, 1, 17, 8>}, {transform_indices = @transform_3, window_bounds = array<i64: 1, 1, 17, 8>}]} {
    %c0 = arith.constant 0 : index
    %c0_0 = arith.constant 0 : index
    %c0_1 = arith.constant 0 : index
    %c0_2 = arith.constant 0 : index
    %0 = vector.load %arg2[%c0, %c0_0, %c0_1, %c0_2] : memref<1x1x17x8xbf16, #tpu.memory_space<vmem>>, vector<1x1x17x8xbf16>
    %1 = vector.shape_cast %0 : vector<1x1x17x8xbf16> to vector<17x8xbf16>
    %c0_3 = arith.constant 0 : index
    %c0_4 = arith.constant 0 : index
    %c0_5 = arith.constant 0 : index
    %c0_6 = arith.constant 0 : index
    %2 = vector.load %arg3[%c0_3, %c0_4, %c0_5, %c0_6] : memref<1x1x17x8xbf16, #tpu.memory_space<vmem>>, vector<1x1x17x8xbf16>
    %3 = vector.shape_cast %2 : vector<1x1x17x8xbf16> to vector<17x8xbf16>
    %cst = arith.constant dense<0.000000e+00> : vector<17x17xf32>
    %4 = tpu.matmul %1, %3, %cst {dimension_numbers = #tpu.dot_dimension_numbers<[1], [1], [0], [0], [0, 0, 1, 0], [], []>} : vector<17x8xbf16>, vector<17x8xbf16>, vector<17x17xf32> -> vector<17x17xf32>
    %cst_7 = arith.constant 0.353553385 : f32
    %5 = vector.broadcast %cst_7 : f32 to vector<17x17xf32>
    %6 = arith.mulf %4, %5 : vector<17x17xf32>
    %cst_8 = arith.constant dense<0xFF800000> : vector<17xf32>
    %7 = vector.multi_reduction <maximumf>, %6, %cst_8 [1] : vector<17x17xf32> to vector<17xf32>
    %8 = vector.shape_cast %7 : vector<17xf32> to vector<17x1xf32>
    %9 = vector.broadcast %8 : vector<17x1xf32> to vector<17x17xf32>
    %10 = arith.subf %6, %9 : vector<17x17xf32>
    %11 = math.exp %10 : vector<17x17xf32>
    %cst_9 = arith.constant dense<0.000000e+00> : vector<17xf32>
    %12 = vector.multi_reduction <add>, %11, %cst_9 [1] : vector<17x17xf32> to vector<17xf32>
    %13 = vector.shape_cast %12 : vector<17xf32> to vector<17x1xf32>
    %14 = tpu.reciprocal %13 {approx = true} : vector<17x1xf32> -> vector<17x1xf32>
    %15 = vector.broadcast %14 : vector<17x1xf32> to vector<17x17xf32>
    %16 = arith.mulf %11, %15 : vector<17x17xf32>
    %17 = arith.truncf %16 : vector<17x17xf32> to vector<17x17xbf16>
    %c0_10 = arith.constant 0 : index
    %c0_11 = arith.constant 0 : index
    %c0_12 = arith.constant 0 : index
    %c0_13 = arith.constant 0 : index
    %18 = vector.load %arg4[%c0_10, %c0_11, %c0_12, %c0_13] : memref<1x1x17x8xbf16, #tpu.memory_space<vmem>>, vector<1x1x17x8xbf16>
    %19 = vector.shape_cast %18 : vector<1x1x17x8xbf16> to vector<17x8xbf16>
    %cst_14 = arith.constant dense<0.000000e+00> : vector<17x8xf32>
    %20 = tpu.matmul %17, %19, %cst_14 {dimension_numbers = #tpu.dot_dimension_numbers<[1], [0], [0], [1], [0, 0, 1, 1], [], []>} : vector<17x17xbf16>, vector<17x8xbf16>, vector<17x8xf32> -> vector<17x8xf32>
    %21 = arith.truncf %20 : vector<17x8xf32> to vector<17x8xbf16>
    %c0_15 = arith.constant 0 : index
    %c0_16 = arith.constant 0 : index
    %c0_17 = arith.constant 0 : index
    %c0_18 = arith.constant 0 : index
    %22 = vector.load %arg5[%c0_15, %c0_16, %c0_17, %c0_18] : memref<1x1x17x8xbf16, #tpu.memory_space<vmem>>, vector<1x1x17x8xbf16>
    %23 = vector.shape_cast %22 : vector<1x1x17x8xbf16> to vector<17x8xbf16>
    %24 = vector.shape_cast %21 : vector<17x8xbf16> to vector<1x1x17x8xbf16>
    tpu.vector_store %arg5[%c0_15, %c0_16, %c0_17, %c0_18], %24 {strides = array<i32>} : memref<1x1x17x8xbf16, #tpu.memory_space<vmem>>, vector<1x1x17x8xbf16>,
    return
  }
  func.func @transform_0(%arg0: i32, %arg1: i32) -> (i32, i32, i32, i32) {
    %c0_i32 = arith.constant 0 : i32
    %c0_i32_0 = arith.constant 0 : i32
    %c0_i32_1 = arith.constant 0 : i32
    return %arg0, %arg1, %c0_i32, %c0_i32_0 : i32, i32, i32, i32
  }
  func.func @transform_1(%arg0: i32, %arg1: i32) -> (i32, i32, i32, i32) {
    %c0_i32 = arith.constant 0 : i32
    %c0_i32_0 = arith.constant 0 : i32
    %c0_i32_1 = arith.constant 0 : i32
    return %arg0, %arg1, %c0_i32, %c0_i32_0 : i32, i32, i32, i32
  }
  func.func @transform_2(%arg0: i32, %arg1: i32) -> (i32, i32, i32, i32) {
    %c0_i32 = arith.constant 0 : i32
    %c0_i32_0 = arith.constant 0 : i32
    %c0_i32_1 = arith.constant 0 : i32
    return %arg0, %arg1, %c0_i32, %c0_i32_0 : i32, i32, i32, i32
  }
  func.func @transform_3(%arg0: i32, %arg1: i32) -> (i32, i32, i32, i32) {
    %c0_i32 = arith.constant 0 : i32
    %c0_i32_0 = arith.constant 0 : i32
    %c0_i32_1 = arith.constant 0 : i32
    return %arg0, %arg1, %c0_i32, %c0_i32_0 : i32, i32, i32, i32
  }
}

module attributes {stable_mosaic.version = 11 : i64} {
  func.func @attn_out_mlp_kernel(%arg0: i32, %arg1: memref<1x17x32xf32, #tpu.memory_space<vmem>>, %arg2: memref<1x17x32xbf16, #tpu.memory_space<vmem>>, %arg3: memref<32x32xbf16, #tpu.memory_space<vmem>>, %arg4: memref<1x32xf32, #tpu.memory_space<vmem>>, %arg5: memref<1x32xf32, #tpu.memory_space<vmem>>, %arg6: memref<1x32xf32, #tpu.memory_space<vmem>>, %arg7: memref<32x128xbf16, #tpu.memory_space<vmem>>, %arg8: memref<1x128xf32, #tpu.memory_space<vmem>>, %arg9: memref<128x32xbf16, #tpu.memory_space<vmem>>, %arg10: memref<1x32xf32, #tpu.memory_space<vmem>>, %arg11: memref<1x17x32xf32, #tpu.memory_space<vmem>>) attributes {dimension_semantics = [#tpu.dimension_semantics<parallel>], iteration_bounds = array<i64: 2>, scalar_prefetch = 0 : i64, scratch_operands = 0 : i64, tpu.core_type = #tpu.core_type<tc>, window_params = [{transform_indices = @transform_0, window_bounds = array<i64: 1, 17, 32>}, {transform_indices = @transform_1, window_bounds = array<i64: 1, 17, 32>}, {pipeline_mode = #tpu.pipeline_mode<synchronous>, transform_indices = @transform_2, window_bounds = array<i64: 32, 32>}, {pipeline_mode = #tpu.pipeline_mode<synchronous>, transform_indices = @transform_3, window_bounds = array<i64: 1, 32>}, {pipeline_mode = #tpu.pipeline_mode<synchronous>, transform_indices = @transform_4, window_bounds = array<i64: 1, 32>}, {pipeline_mode = #tpu.pipeline_mode<synchronous>, transform_indices = @transform_5, window_bounds = array<i64: 1, 32>}, {pipeline_mode = #tpu.pipeline_mode<synchronous>, transform_indices = @transform_6, window_bounds = array<i64: 32, 128>}, {pipeline_mode = #tpu.pipeline_mode<synchronous>, transform_indices = @transform_7, window_bounds = array<i64: 1, 128>}, {pipeline_mode = #tpu.pipeline_mode<synchronous>, transform_indices = @transform_8, window_bounds = array<i64: 128, 32>}, {pipeline_mode = #tpu.pipeline_mode<synchronous>, transform_indices = @transform_9, window_bounds = array<i64: 1, 32>}, {transform_indices = @transform_10, window_bounds = array<i64: 1, 17, 32>}]} {
    %c0 = arith.constant 0 : index
    %c0_0 = arith.constant 0 : index
    %c0_1 = arith.constant 0 : index
    %0 = vector.load %arg1[%c0, %c0_0, %c0_1] : memref<1x17x32xf32, #tpu.memory_space<vmem>>, vector<1x17x32xf32>
    %1 = vector.shape_cast %0 : vector<1x17x32xf32> to vector<17x32xf32>
    %c0_2 = arith.constant 0 : index
    %c0_3 = arith.constant 0 : index
    %c0_4 = arith.constant 0 : index
    %2 = vector.load %arg2[%c0_2, %c0_3, %c0_4] : memref<1x17x32xbf16, #tpu.memory_space<vmem>>, vector<1x17x32xbf16>
    %3 = vector.shape_cast %2 : vector<1x17x32xbf16> to vector<17x32xbf16>
    %c0_5 = arith.constant 0 : index
    %c0_6 = arith.constant 0 : index
    %4 = vector.load %arg3[%c0_5, %c0_6] : memref<32x32xbf16, #tpu.memory_space<vmem>>, vector<32x32xbf16>
    %cst = arith.constant dense<0.000000e+00> : vector<17x32xf32>
    %5 = tpu.matmul %3, %4, %cst {dimension_numbers = #tpu.dot_dimension_numbers<[1], [0], [0], [1], [0, 0, 1, 1], [], []>} : vector<17x32xbf16>, vector<32x32xbf16>, vector<17x32xf32> -> vector<17x32xf32>
    %c0_7 = arith.constant 0 : index
    %c0_8 = arith.constant 0 : index
    %6 = vector.load %arg4[%c0_7, %c0_8] : memref<1x32xf32, #tpu.memory_space<vmem>>, vector<1x32xf32>
    %7 = vector.broadcast %6 : vector<1x32xf32> to vector<17x32xf32>
    %8 = arith.addf %5, %7 : vector<17x32xf32>
    %9 = arith.addf %1, %8 : vector<17x32xf32>
    %c0_9 = arith.constant 0 : index
    %c0_10 = arith.constant 0 : index
    %10 = vector.load %arg5[%c0_9, %c0_10] : memref<1x32xf32, #tpu.memory_space<vmem>>, vector<1x32xf32>
    %c0_11 = arith.constant 0 : index
    %c0_12 = arith.constant 0 : index
    %11 = vector.load %arg6[%c0_11, %c0_12] : memref<1x32xf32, #tpu.memory_space<vmem>>, vector<1x32xf32>
    %cst_13 = arith.constant dense<0.000000e+00> : vector<17xf32>
    %12 = vector.multi_reduction <add>, %9, %cst_13 [1] : vector<17x32xf32> to vector<17xf32>
    %13 = vector.shape_cast %12 : vector<17xf32> to vector<17x1xf32>
    %cst_14 = arith.constant 3.200000e+01 : f32
    %14 = vector.broadcast %cst_14 : f32 to vector<17x1xf32>
    %15 = arith.divf %13, %14 : vector<17x1xf32>
    %16 = vector.broadcast %15 : vector<17x1xf32> to vector<17x32xf32>
    %17 = arith.subf %9, %16 : vector<17x32xf32>
    %18 = arith.mulf %17, %17 : vector<17x32xf32>
    %cst_15 = arith.constant dense<0.000000e+00> : vector<17xf32>
    %19 = vector.multi_reduction <add>, %18, %cst_15 [1] : vector<17x32xf32> to vector<17xf32>
    %20 = vector.shape_cast %19 : vector<17xf32> to vector<17x1xf32>
    %cst_16 = arith.constant 3.200000e+01 : f32
    %21 = vector.broadcast %cst_16 : f32 to vector<17x1xf32>
    %22 = arith.divf %20, %21 : vector<17x1xf32>
    %23 = vector.broadcast %15 : vector<17x1xf32> to vector<17x32xf32>
    %24 = arith.subf %9, %23 : vector<17x32xf32>
    %cst_17 = arith.constant 9.99999974E-6 : f32
    %25 = vector.broadcast %cst_17 : f32 to vector<17x1xf32>
    %26 = arith.addf %22, %25 : vector<17x1xf32>
    %27 = math.rsqrt %26 : vector<17x1xf32>
    %28 = vector.broadcast %27 : vector<17x1xf32> to vector<17x32xf32>
    %29 = arith.mulf %24, %28 : vector<17x32xf32>
    %30 = vector.broadcast %10 : vector<1x32xf32> to vector<17x32xf32>
    %31 = arith.mulf %29, %30 : vector<17x32xf32>
    %32 = vector.broadcast %11 : vector<1x32xf32> to vector<17x32xf32>
    %33 = arith.addf %31, %32 : vector<17x32xf32>
    %34 = arith.truncf %33 : vector<17x32xf32> to vector<17x32xbf16>
    %c0_18 = arith.constant 0 : index
    %c0_19 = arith.constant 0 : index
    %35 = vector.load %arg7[%c0_18, %c0_19] : memref<32x128xbf16, #tpu.memory_space<vmem>>, vector<32x128xbf16>
    %cst_20 = arith.constant dense<0.000000e+00> : vector<17x128xf32>
    %36 = tpu.matmul %34, %35, %cst_20 {dimension_numbers = #tpu.dot_dimension_numbers<[1], [0], [0], [1], [0, 0, 1, 1], [], []>} : vector<17x32xbf16>, vector<32x128xbf16>, vector<17x128xf32> -> vector<17x128xf32>
    %c0_21 = arith.constant 0 : index
    %c0_22 = arith.constant 0 : index
    %37 = vector.load %arg8[%c0_21, %c0_22] : memref<1x128xf32, #tpu.memory_space<vmem>>, vector<1x128xf32>
    %38 = vector.broadcast %37 : vector<1x128xf32> to vector<17x128xf32>
    %39 = arith.addf %36, %38 : vector<17x128xf32>
    %cst_23 = arith.constant -1.702000e+00 : f32
    %40 = vector.broadcast %cst_23 : f32 to vector<17x128xf32>
    %41 = arith.mulf %40, %39 : vector<17x128xf32>
    %42 = math.exp %41 : vector<17x128xf32>
    %cst_24 = arith.constant 1.000000e+00 : f32
    %43 = vector.broadcast %cst_24 : f32 to vector<17x128xf32>
    %44 = arith.addf %43, %42 : vector<17x128xf32>
    %45 = tpu.reciprocal %44 {approx = true} : vector<17x128xf32> -> vector<17x128xf32>
    %46 = arith.mulf %39, %45 : vector<17x128xf32>
    %47 = arith.truncf %46 : vector<17x128xf32> to vector<17x128xbf16>
    %c0_25 = arith.constant 0 : index
    %c0_26 = arith.constant 0 : index
    %48 = vector.load %arg9[%c0_25, %c0_26] : memref<128x32xbf16, #tpu.memory_space<vmem>>, vector<128x32xbf16>
    %cst_27 = arith.constant dense<0.000000e+00> : vector<17x32xf32>
    %49 = tpu.matmul %47, %48, %cst_27 {dimension_numbers = #tpu.dot_dimension_numbers<[1], [0], [0], [1], [0, 0, 1, 1], [], []>} : vector<17x128xbf16>, vector<128x32xbf16>, vector<17x32xf32> -> vector<17x32xf32>
    %c0_28 = arith.constant 0 : index
    %c0_29 = arith.constant 0 : index
    %50 = vector.load %arg10[%c0_28, %c0_29] : memref<1x32xf32, #tpu.memory_space<vmem>>, vector<1x32xf32>
    %51 = vector.broadcast %50 : vector<1x32xf32> to vector<17x32xf32>
    %52 = arith.addf %49, %51 : vector<17x32xf32>
    %53 = arith.addf %9, %52 : vector<17x32xf32>
    %c0_30 = arith.constant 0 : index
    %c0_31 = arith.constant 0 : index
    %c0_32 = arith.constant 0 : index
    %54 = vector.load %arg11[%c0_30, %c0_31, %c0_32] : memref<1x17x32xf32, #tpu.memory_space<vmem>>, vector<1x17x32xf32>
    %55 = vector.shape_cast %54 : vector<1x17x32xf32> to vector<17x32xf32>
    %56 = vector.shape_cast %53 : vector<17x32xf32> to vector<1x17x32xf32>
    tpu.vector_store %arg11[%c0_30, %c0_31, %c0_32], %56 {strides = array<i32>} : memref<1x17x32xf32, #tpu.memory_space<vmem>>, vector<1x17x32xf32>,
    return
  }
  func.func @transform_0(%arg0: i32) -> (i32, i32, i32) {
    %c0_i32 = arith.constant 0 : i32
    %c0_i32_0 = arith.constant 0 : i32
    %c0_i32_1 = arith.constant 0 : i32
    return %arg0, %c0_i32, %c0_i32_0 : i32, i32, i32
  }
  func.func @transform_1(%arg0: i32) -> (i32, i32, i32) {
    %c0_i32 = arith.constant 0 : i32
    %c0_i32_0 = arith.constant 0 : i32
    %c0_i32_1 = arith.constant 0 : i32
    return %arg0, %c0_i32, %c0_i32_0 : i32, i32, i32
  }
  func.func @transform_2(%arg0: i32) -> (i32, i32) {
    %c0_i32 = arith.constant 0 : i32
    %c0_i32_0 = arith.constant 0 : i32
    %c0_i32_1 = arith.constant 0 : i32
    return %c0_i32, %c0_i32_0 : i32, i32
  }
  func.func @transform_3(%arg0: i32) -> (i32, i32) {
    %c0_i32 = arith.constant 0 : i32
    %c0_i32_0 = arith.constant 0 : i32
    %c0_i32_1 = arith.constant 0 : i32
    return %c0_i32, %c0_i32_0 : i32, i32
  }
  func.func @transform_4(%arg0: i32) -> (i32, i32) {
    %c0_i32 = arith.constant 0 : i32
    %c0_i32_0 = arith.constant 0 : i32
    %c0_i32_1 = arith.constant 0 : i32
    return %c0_i32, %c0_i32_0 : i32, i32
  }
  func.func @transform_5(%arg0: i32) -> (i32, i32) {
    %c0_i32 = arith.constant 0 : i32
    %c0_i32_0 = arith.constant 0 : i32
    %c0_i32_1 = arith.constant 0 : i32
    return %c0_i32, %c0_i32_0 : i32, i32
  }
  func.func @transform_6(%arg0: i32) -> (i32, i32) {
    %c0_i32 = arith.constant 0 : i32
    %c0_i32_0 = arith.constant 0 : i32
    %c0_i32_1 = arith.constant 0 : i32
    return %c0_i32, %c0_i32_0 : i32, i32
  }
  func.func @transform_7(%arg0: i32) -> (i32, i32) {
    %c0_i32 = arith.constant 0 : i32
    %c0_i32_0 = arith.constant 0 : i32
    %c0_i32_1 = arith.constant 0 : i32
    return %c0_i32, %c0_i32_0 : i32, i32
  }
  func.func @transform_8(%arg0: i32) -> (i32, i32) {
    %c0_i32 = arith.constant 0 : i32
    %c0_i32_0 = arith.constant 0 : i32
    %c0_i32_1 = arith.constant 0 : i32
    return %c0_i32, %c0_i32_0 : i32, i32
  }
  func.func @transform_9(%arg0: i32) -> (i32, i32) {
    %c0_i32 = arith.constant 0 : i32
    %c0_i32_0 = arith.constant 0 : i32
    %c0_i32_1 = arith.constant 0 : i32
    return %c0_i32, %c0_i32_0 : i32, i32
  }
  func.func @transform_10(%arg0: i32) -> (i32, i32, i32) {
    %c0_i32 = arith.constant 0 : i32
    %c0_i32_0 = arith.constant 0 : i32
    %c0_i32_1 = arith.constant 0 : i32
    return %arg0, %c0_i32, %c0_i32_0 : i32, i32, i32
  }
}

module attributes {stable_mosaic.version = 11 : i64} {
  func.func @ln_proj_kernel(%arg0: i32, %arg1: memref<1x17x32xf32, #tpu.memory_space<vmem>>, %arg2: memref<1x32xf32, #tpu.memory_space<vmem>>, %arg3: memref<1x32xf32, #tpu.memory_space<vmem>>, %arg4: memref<32x16xbf16, #tpu.memory_space<vmem>>, %arg5: memref<1x17x16xf32, #tpu.memory_space<vmem>>) attributes {dimension_semantics = [#tpu.dimension_semantics<parallel>], iteration_bounds = array<i64: 2>, scalar_prefetch = 0 : i64, scratch_operands = 0 : i64, tpu.core_type = #tpu.core_type<tc>, window_params = [{transform_indices = @transform_0, window_bounds = array<i64: 1, 17, 32>}, {pipeline_mode = #tpu.pipeline_mode<synchronous>, transform_indices = @transform_1, window_bounds = array<i64: 1, 32>}, {pipeline_mode = #tpu.pipeline_mode<synchronous>, transform_indices = @transform_2, window_bounds = array<i64: 1, 32>}, {pipeline_mode = #tpu.pipeline_mode<synchronous>, transform_indices = @transform_3, window_bounds = array<i64: 32, 16>}, {transform_indices = @transform_4, window_bounds = array<i64: 1, 17, 16>}]} {
    %c0 = arith.constant 0 : index
    %c0_0 = arith.constant 0 : index
    %c0_1 = arith.constant 0 : index
    %0 = vector.load %arg1[%c0, %c0_0, %c0_1] : memref<1x17x32xf32, #tpu.memory_space<vmem>>, vector<1x17x32xf32>
    %1 = vector.shape_cast %0 : vector<1x17x32xf32> to vector<17x32xf32>
    %c0_2 = arith.constant 0 : index
    %c0_3 = arith.constant 0 : index
    %2 = vector.load %arg2[%c0_2, %c0_3] : memref<1x32xf32, #tpu.memory_space<vmem>>, vector<1x32xf32>
    %c0_4 = arith.constant 0 : index
    %c0_5 = arith.constant 0 : index
    %3 = vector.load %arg3[%c0_4, %c0_5] : memref<1x32xf32, #tpu.memory_space<vmem>>, vector<1x32xf32>
    %cst = arith.constant dense<0.000000e+00> : vector<17xf32>
    %4 = vector.multi_reduction <add>, %1, %cst [1] : vector<17x32xf32> to vector<17xf32>
    %5 = vector.shape_cast %4 : vector<17xf32> to vector<17x1xf32>
    %cst_6 = arith.constant 3.200000e+01 : f32
    %6 = vector.broadcast %cst_6 : f32 to vector<17x1xf32>
    %7 = arith.divf %5, %6 : vector<17x1xf32>
    %8 = vector.broadcast %7 : vector<17x1xf32> to vector<17x32xf32>
    %9 = arith.subf %1, %8 : vector<17x32xf32>
    %10 = arith.mulf %9, %9 : vector<17x32xf32>
    %cst_7 = arith.constant dense<0.000000e+00> : vector<17xf32>
    %11 = vector.multi_reduction <add>, %10, %cst_7 [1] : vector<17x32xf32> to vector<17xf32>
    %12 = vector.shape_cast %11 : vector<17xf32> to vector<17x1xf32>
    %cst_8 = arith.constant 3.200000e+01 : f32
    %13 = vector.broadcast %cst_8 : f32 to vector<17x1xf32>
    %14 = arith.divf %12, %13 : vector<17x1xf32>
    %15 = vector.broadcast %7 : vector<17x1xf32> to vector<17x32xf32>
    %16 = arith.subf %1, %15 : vector<17x32xf32>
    %cst_9 = arith.constant 9.99999974E-6 : f32
    %17 = vector.broadcast %cst_9 : f32 to vector<17x1xf32>
    %18 = arith.addf %14, %17 : vector<17x1xf32>
    %19 = math.rsqrt %18 : vector<17x1xf32>
    %20 = vector.broadcast %19 : vector<17x1xf32> to vector<17x32xf32>
    %21 = arith.mulf %16, %20 : vector<17x32xf32>
    %22 = vector.broadcast %2 : vector<1x32xf32> to vector<17x32xf32>
    %23 = arith.mulf %21, %22 : vector<17x32xf32>
    %24 = vector.broadcast %3 : vector<1x32xf32> to vector<17x32xf32>
    %25 = arith.addf %23, %24 : vector<17x32xf32>
    %26 = arith.truncf %25 : vector<17x32xf32> to vector<17x32xbf16>
    %c0_10 = arith.constant 0 : index
    %c0_11 = arith.constant 0 : index
    %27 = vector.load %arg4[%c0_10, %c0_11] : memref<32x16xbf16, #tpu.memory_space<vmem>>, vector<32x16xbf16>
    %cst_12 = arith.constant dense<0.000000e+00> : vector<17x16xf32>
    %28 = tpu.matmul %26, %27, %cst_12 {dimension_numbers = #tpu.dot_dimension_numbers<[1], [0], [0], [1], [0, 0, 1, 1], [], []>} : vector<17x32xbf16>, vector<32x16xbf16>, vector<17x16xf32> -> vector<17x16xf32>
    %c0_13 = arith.constant 0 : index
    %c0_14 = arith.constant 0 : index
    %c0_15 = arith.constant 0 : index
    %29 = vector.load %arg5[%c0_13, %c0_14, %c0_15] : memref<1x17x16xf32, #tpu.memory_space<vmem>>, vector<1x17x16xf32>
    %30 = vector.shape_cast %29 : vector<1x17x16xf32> to vector<17x16xf32>
    %31 = vector.shape_cast %28 : vector<17x16xf32> to vector<1x17x16xf32>
    tpu.vector_store %arg5[%c0_13, %c0_14, %c0_15], %31 {strides = array<i32>} : memref<1x17x16xf32, #tpu.memory_space<vmem>>, vector<1x17x16xf32>,
    return
  }
  func.func @transform_0(%arg0: i32) -> (i32, i32, i32) {
    %c0_i32 = arith.constant 0 : i32
    %c0_i32_0 = arith.constant 0 : i32
    %c0_i32_1 = arith.constant 0 : i32
    return %arg0, %c0_i32, %c0_i32_0 : i32, i32, i32
  }
  func.func @transform_1(%arg0: i32) -> (i32, i32) {
    %c0_i32 = arith.constant 0 : i32
    %c0_i32_0 = arith.constant 0 : i32
    %c0_i32_1 = arith.constant 0 : i32
    return %c0_i32, %c0_i32_0 : i32, i32
  }
  func.func @transform_2(%arg0: i32) -> (i32, i32) {
    %c0_i32 = arith.constant 0 : i32
    %c0_i32_0 = arith.constant 0 : i32
    %c0_i32_1 = arith.constant 0 : i32
    return %c0_i32, %c0_i32_0 : i32, i32
  }
  func.func @transform_3(%arg0: i32) -> (i32, i32) {
    %c0_i32 = arith.constant 0 : i32
    %c0_i32_0 = arith.constant 0 : i32
    %c0_i32_1 = arith.constant 0 : i32
    return %c0_i32, %c0_i32_0 : i32, i32
  }
  func.func @transform_4(%arg0: i32) -> (i32, i32, i32) {
    %c0_i32 = arith.constant 0 : i32
    %c0_i32_0 = arith.constant 0 : i32
    %c0_i32_1 = arith.constant 0 : i32
    return %arg0, %c0_i32, %c0_i32_0 : i32, i32, i32
  }
}

module attributes {stable_mosaic.version = 11 : i64} {
  func.func @matmul_kernel(%arg0: i32, %arg1: i32, %arg2: i32, %arg3: memref<2x32xbf16, #tpu.memory_space<vmem>>, %arg4: memref<32x16xbf16, #tpu.memory_space<vmem>>, %arg5: memref<2x16xf32, #tpu.memory_space<vmem>>, %arg6: memref<2x16xf32, #tpu.memory_space<vmem>>) attributes {dimension_semantics = [#tpu.dimension_semantics<parallel>, #tpu.dimension_semantics<parallel>, #tpu.dimension_semantics<arbitrary>], iteration_bounds = array<i64: 1, 1, 1>, scalar_prefetch = 0 : i64, scratch_operands = 1 : i64, tpu.core_type = #tpu.core_type<tc>, window_params = [{transform_indices = @transform_0, window_bounds = array<i64: 2, 32>}, {transform_indices = @transform_1, window_bounds = array<i64: 32, 16>}, {transform_indices = @transform_2, window_bounds = array<i64: 2, 16>}]} {
    %c0_i32 = arith.constant 0 : i32
    %0 = arith.cmpi eq, %arg2, %c0_i32 : i32
    %1 = arith.extui %0 : i1 to i32
    %c0_i32_0 = arith.constant 0 : i32
    %2 = arith.cmpi ne, %1, %c0_i32_0 : i32
    scf.if %2 {
      %cst_10 = arith.constant 0.000000e+00 : f32
      %12 = vector.broadcast %cst_10 : f32 to vector<2x16xf32>
      %c0_11 = arith.constant 0 : index
      %c0_12 = arith.constant 0 : index
      %13 = vector.load %arg6[%c0_11, %c0_12] : memref<2x16xf32, #tpu.memory_space<vmem>>, vector<2x16xf32>
      tpu.vector_store %arg6[%c0_11, %c0_12], %12 {strides = array<i32>} : memref<2x16xf32, #tpu.memory_space<vmem>>, vector<2x16xf32>,
    } else {
    }
    %c0 = arith.constant 0 : index
    %c0_1 = arith.constant 0 : index
    %3 = vector.load %arg6[%c0, %c0_1] : memref<2x16xf32, #tpu.memory_space<vmem>>, vector<2x16xf32>
    %c0_2 = arith.constant 0 : index
    %c0_3 = arith.constant 0 : index
    %4 = vector.load %arg3[%c0_2, %c0_3] : memref<2x32xbf16, #tpu.memory_space<vmem>>, vector<2x32xbf16>
    %c0_4 = arith.constant 0 : index
    %c0_5 = arith.constant 0 : index
    %5 = vector.load %arg4[%c0_4, %c0_5] : memref<32x16xbf16, #tpu.memory_space<vmem>>, vector<32x16xbf16>
    %cst = arith.constant dense<0.000000e+00> : vector<2x16xf32>
    %6 = tpu.matmul %4, %5, %cst {dimension_numbers = #tpu.dot_dimension_numbers<[1], [0], [0], [1], [0, 0, 1, 1], [], []>} : vector<2x32xbf16>, vector<32x16xbf16>, vector<2x16xf32> -> vector<2x16xf32>
    %7 = arith.addf %3, %6 : vector<2x16xf32>
    %c0_6 = arith.constant 0 : index
    %c0_7 = arith.constant 0 : index
    %8 = vector.load %arg6[%c0_6, %c0_7] : memref<2x16xf32, #tpu.memory_space<vmem>>, vector<2x16xf32>
    tpu.vector_store %arg6[%c0_6, %c0_7], %7 {strides = array<i32>} : memref<2x16xf32, #tpu.memory_space<vmem>>, vector<2x16xf32>,
    %c0_i32_8 = arith.constant 0 : i32
    %9 = arith.cmpi eq, %arg2, %c0_i32_8 : i32
    %10 = arith.extui %9 : i1 to i32
    %c0_i32_9 = arith.constant 0 : i32
    %11 = arith.cmpi ne, %10, %c0_i32_9 : i32
    scf.if %11 {
      %c0_10 = arith.constant 0 : index
      %c0_11 = arith.constant 0 : index
      %12 = vector.load %arg6[%c0_10, %c0_11] : memref<2x16xf32, #tpu.memory_space<vmem>>, vector<2x16xf32>
      %c0_12 = arith.constant 0 : index
      %c0_13 = arith.constant 0 : index
      %13 = vector.load %arg5[%c0_12, %c0_13] : memref<2x16xf32, #tpu.memory_space<vmem>>, vector<2x16xf32>
      tpu.vector_store %arg5[%c0_12, %c0_13], %12 {strides = array<i32>} : memref<2x16xf32, #tpu.memory_space<vmem>>, vector<2x16xf32>,
    } else {
    }
    return
  }
  func.func @transform_0(%arg0: i32, %arg1: i32, %arg2: i32) -> (i32, i32) {
    %c0_i32 = arith.constant 0 : i32
    return %arg0, %arg2 : i32, i32
  }
  func.func @transform_1(%arg0: i32, %arg1: i32, %arg2: i32) -> (i32, i32) {
    %c0_i32 = arith.constant 0 : i32
    return %arg2, %arg1 : i32, i32
  }
  func.func @transform_2(%arg0: i32, %arg1: i32, %arg2: i32) -> (i32, i32) {
    %c0_i32 = arith.constant 0 : i32
    return %arg0, %arg1 : i32, i32
  }
}

</mosaic_0001>

<llo_original>
// kernel: vit_forward.11
$region0: #{vit_forward.11}
  #allocation0 [shape = 'u32[]', space=smem, size = 0x4, offset = 0x4, fixed_abs, tag = 'smem constant byte address 0x4 - core index']
  #allocation1 [shape = 'u32[72,128]{1,0:T(1,128)}', space=vmem, size = 0x9000, scoped, tag = 'internal scratch']
  #allocation2 [shape = 'f32[32,32]{1,0:T(8,128)}', space=vmem, size = 0x4000, scoped, tag = 'scratch operand']
  %s0 = inlined_call_operand.vmem [shape: bf16[32,48], index: 0, kind: input, shape index: {}]
  %s1 = inlined_call_operand.vmem [shape: bf16[48,32], index: 1, kind: input, shape index: {}]
  %s2 = inlined_call_operand.vmem [shape: f32[32,32], index: 2, kind: output, shape index: {}]
  %s3 = sld [smem:[#allocation0]]
  $region26: #{vit_forward.11} parent=0
    _
  %s5 = ssub.s32 1, %s3
  %s6 = scalar_select 0, %s5, %s3
  // Predicated region
  $region2: #{vit_forward.11} parent=0 // pred_check
    _
  $region3: #{vit_forward.11} parent=0 // pred_check_branch
    %8 = sbr.rel (0) target = $region5
  $region4: #{vit_forward.11} parent=0 // pred_region
    _
  $region5: #{vit_forward.11} parent=0 // pred_fallthru
    _
  // Predicated region
  $region6: #{vit_forward.11} parent=0 // pred_check
    _
  $region7: #{vit_forward.11} parent=0 // pred_check_branch
    %10 = sbr.rel (0) target = $region9
  $region8: #{vit_forward.11} parent=0 // pred_region
    _
  $region9: #{vit_forward.11} parent=0 // pred_fallthru
    _
  %p12 = scmp.eq.s32.totalorder 0, 0
  // Predicated region
  $region10: #{vit_forward.11} parent=0 // pred_check
    %p13 = pneg %p12
  $region11: #{vit_forward.11} parent=0 // pred_check_branch
    %15 = sbr.rel (%p13) target = $region13
  $region12: #{vit_forward.11} parent=0 // pred_region
    %vm16 = vcmask 261120
    %17 = vst.msk [vmem:[#allocation2] sm:$0xff] %vm16, 0.0
    %18 = vst.msk [vmem:[#allocation2 + $0x8] sm:$0xff] %vm16, 0.0
    %19 = vst.msk [vmem:[#allocation2 + $0x10] sm:$0xff] %vm16, 0.0
    %20 = vst.msk [vmem:[#allocation2 + $0x18] sm:$0xff] %vm16, 0.0
  $region13: #{vit_forward.11} parent=0 // pred_fallthru
    _
  %v21 = vld [vmem:[#allocation2] sm:$0xff]
  %v22 = vld [vmem:[#allocation2 + $0x8] sm:$0xff]
  %v23 = vld [vmem:[#allocation2 + $0x10] sm:$0xff]
  %v24 = vld [vmem:[#allocation2 + $0x18] sm:$0xff]
  %v25 = vld [vmem:[%s0] sm:$0xf]
  %v26 = vld [vmem:[%s0 + $0x4] sm:$0xf]
  %v27 = vld [vmem:[%s0 + $0x8] sm:$0xf]
  %v28 = vld [vmem:[%s0 + $0xc] sm:$0xf]
  %v29 = vld [vmem:[%s1] sm:$0xf]
  %v30 = vld [vmem:[%s1 + $0x4] sm:$0xf]
  %v31 = vld [vmem:[%s1 + $0x8] sm:$0xf]
  %v32 = vld [vmem:[%s1 + $0xc] sm:$0xf]
  %v33 = vld [vmem:[%s1 + $0x10] sm:$0xf]
  %v34 = vld [vmem:[%s1 + $0x14] sm:$0xf]
  %v39 = vunpack.c.l.b16 %v25
  %v40 = vunpack.c.l.b16 %v26
  %v41 = vunpack.c.l.b16 %v27
  %v42 = vunpack.c.l.b16 %v28
  %v43 = vpack.c.b16 %v40, %v39
  %v44 = vpack.c.b16 %v42, %v41
  %v51 = vunpack.c.l.b16 %v29
  %v52 = vunpack.c.l.b16 %v30
  %v53 = vunpack.c.l.b16 %v31
  %v54 = vunpack.c.l.b16 %v32
  %v55 = vunpack.c.l.b16 %v33
  %v56 = vunpack.c.l.b16 %v34
  %v57 = vpack.c.b16 %v52, %v51
  %v58 = vpack.c.b16 %v54, %v53
  %v59 = vpack.c.b16 %v56, %v55
  %vm63 = vcmask 392192
  %v65 = vsel %vm63, %v43, 0
  %v68 = vsel %vm63, %v44, 0
  %70 = vmatpush.bf16.msra.mxu0 0
  %71 = vmatpush.bf16.msra.mxu0 0
  %72 = vmatpush.bf16.msra.mxu0 0
  %73 = vmatpush.bf16.msra.mxu0 0
  %74 = vmatpush.bf16.msra.mxu0 0
  %75 = vmatpush.bf16.msra.mxu0 %v59
  %76 = vmatpush.bf16.msra.mxu0 %v58
  %77 = vmatpush.bf16.msra.mxu0 %v57
  %78 = vmatmul.bf16.gmra.mxu0 %v65
  %v79 = vpop.f32.mrf.mxu0
  %v80 = vadd.f32 0.0, %v79
  %v81 = vpop.f32.mrf.mxu0
  %v82 = vadd.f32 0.0, %v81
  %83 = vmatmul.bf16.gmra.mxu0 %v68
  %v84 = vpop.f32.mrf.mxu0
  %v85 = vadd.f32 0.0, %v84
  %v86 = vpop.f32.mrf.mxu0
  %v87 = vadd.f32 0.0, %v86
  %88 = vdwg.mxu0
  %v89 = vadd.f32 %v21, %v80
  %v90 = vadd.f32 %v22, %v82
  %v91 = vadd.f32 %v23, %v85
  %v92 = vadd.f32 %v24, %v87
  %vm93 = vcmask 261120
  %94 = vst.msk [vmem:[#allocation2] sm:$0xff] %vm93, %v89
  %95 = vst.msk [vmem:[#allocation2 + $0x8] sm:$0xff] %vm93, %v90
  %96 = vst.msk [vmem:[#allocation2 + $0x10] sm:$0xff] %vm93, %v91
  %97 = vst.msk [vmem:[#allocation2 + $0x18] sm:$0xff] %vm93, %v92
  // Predicated region
  $region14: #{vit_forward.11} parent=0 // pred_check
    %p98 = pneg %p12
  $region15: #{vit_forward.11} parent=0 // pred_check_branch
    %100 = sbr.rel (%p98) target = $region17
  $region16: #{vit_forward.11} parent=0 // pred_region
    %v101 = vld [vmem:[#allocation2] sm:$0xff]
    %v102 = vld [vmem:[#allocation2 + $0x8] sm:$0xff]
    %v103 = vld [vmem:[#allocation2 + $0x10] sm:$0xff]
    %v104 = vld [vmem:[#allocation2 + $0x18] sm:$0xff]
    %105 = vst.msk [vmem:[%s2] sm:$0xff] %vm93, %v101
    %106 = vst.msk [vmem:[%s2 + $0x8] sm:$0xff] %vm93, %v102
    %107 = vst.msk [vmem:[%s2 + $0x10] sm:$0xff] %vm93, %v103
    %108 = vst.msk [vmem:[%s2 + $0x18] sm:$0xff] %vm93, %v104
  $region17: #{vit_forward.11} parent=0 // pred_fallthru
    _
  // Predicated region
  $region18: #{vit_forward.11} parent=0 // pred_check
    _
  $region19: #{vit_forward.11} parent=0 // pred_check_branch
    %110 = sbr.rel (0) target = $region21
  $region20: #{vit_forward.11} parent=0 // pred_region
    _
  $region21: #{vit_forward.11} parent=0 // pred_fallthru
    _
  // Predicated region
  $region22: #{vit_forward.11} parent=0 // pred_check
    _
  $region23: #{vit_forward.11} parent=0 // pred_check_branch
    %112 = sbr.rel (0) target = $region25
  $region24: #{vit_forward.11} parent=0 // pred_region
    _
  $region25: #{vit_forward.11} parent=0 // pred_fallthru
    _

// kernel: vit_forward.13
$region0: #{vit_forward.13}
  #allocation0 [shape = 'u32[]', space=smem, size = 0x4, offset = 0x4, fixed_abs, tag = 'smem constant byte address 0x4 - core index']
  #allocation1 [shape = 'u32[72,128]{1,0:T(1,128)}', space=vmem, size = 0x9000, scoped, tag = 'internal scratch']
  %s0 = inlined_call_operand.vmem [shape: f32[2,17,32], index: 0, kind: input, shape index: {}]
  %s1 = inlined_call_operand.vmem [shape: f32[1,32], index: 1, kind: input, shape index: {}]
  %s2 = inlined_call_operand.vmem [shape: f32[1,32], index: 2, kind: input, shape index: {}]
  %s3 = inlined_call_operand.vmem [shape: bf16[32,96], index: 3, kind: input, shape index: {}]
  %s4 = inlined_call_operand.vmem [shape: f32[1,96], index: 4, kind: input, shape index: {}]
  %s5 = inlined_call_operand.vmem [shape: bf16[2,17,96], index: 5, kind: output, shape index: {}]
  %s6 = sld [smem:[#allocation0]]
  $region53: #{vit_forward.13} parent=0
    _
  %s8 = ssub.s32 1, %s6
  %s9 = scalar_select 0, %s8, %s6
  loop: start=0, step=1, limit=4
  $region2: #{vit_forward.13} parent=0 // loop_pre_header
    _
  $region3: #{vit_forward.13} parent=0 // loop_header
    %s11 = sphi 0, %s15
    %p12 = scmp.ge.s32.totalorder %s11, 4
    %s21 = sphi 0, %s23
    %s24 = sphi 0, %s21
    %s25 = sphi 0, %s24
    %s41 = sphi 0, %s25
    %s45 = sphi 0, %s45
    %s47 = sphi 0, %s45
    %s48 = sphi 0, %s47
    %s62 = sphi 0, %s48
    %s66 = sphi 0, %s66
    %s68 = sphi 0, %s66
    %s69 = sphi 0, %s68
    %s83 = sphi 0, %s69
    %s87 = sphi 0, %s87
    %s89 = sphi 0, %s87
    %s90 = sphi 0, %s89
    %s104 = sphi 0, %s90
    %s108 = sphi 0, %s108
    %s110 = sphi 0, %s108
    %s111 = sphi 0, %s110
    %s125 = sphi 0, %s111
    %s131 = sphi 0, %s133
    %s134 = sphi 0, %s131
    %s135 = sphi 0, %s134
    %s151 = sphi 0, %s135
  $region4: #{vit_forward.13} parent=0 // loop_header_branch
    %14 = sbr.rel (%p12) target = $region8
  $region5: #{vit_forward.13} parent=0 // loop_body
    %s16 = ssub.s32 %s11, 1
    %s17 = ssub.s32 %s11, 2
    %s18 = sadd.s32 %s11, 1
    %s19 = ssub.s32 %s11, %s18
    %p20 = scmp.eq.s32.totalorder %s19, 0
    %s22 = sadd.s32 %s21, 1
    %s23 = scalar_select %p20, %s21, %s22
    %p26 = pneg %p20
    %p27 = scmp.eq.s32.totalorder %s11, 1
    %p28 = por %p26, %p27
    %p29 = scmp.ne.s32.totalorder %s21, %s24
    %p30 = scmp.eq.s32.totalorder %s11, 0
    %p31 = por %p29, %p30
    %p32 = scmp.ne.s32.totalorder %s21, %s24
    %p33 = scmp.eq.s32.totalorder %s16, 1
    %p34 = por %p32, %p33
    %p35 = scmp.ne.s32.totalorder %s24, %s25
    %p36 = scmp.eq.s32.totalorder %s16, 0
    %p37 = por %p35, %p36
    %p38 = scmp.ne.s32.totalorder %s24, %s25
    %p39 = scmp.eq.s32.totalorder %s17, 1
    %p40 = por %p38, %p39
    %p42 = scmp.ne.s32.totalorder %s25, %s41
    %p43 = scmp.eq.s32.totalorder %s17, 0
    %p44 = por %p42, %p43
    %s46 = sadd.s32 %s45, 1
    %p49 = scmp.eq.s32.totalorder %s11, 1
    %p50 = scmp.ne.s32.totalorder %s45, %s47
    %p51 = scmp.eq.s32.totalorder %s11, 0
    %p52 = por %p50, %p51
    %p53 = scmp.ne.s32.totalorder %s45, %s47
    %p54 = scmp.eq.s32.totalorder %s16, 1
    %p55 = por %p53, %p54
    %p56 = scmp.ne.s32.totalorder %s47, %s48
    %p57 = scmp.eq.s32.totalorder %s16, 0
    %p58 = por %p56, %p57
    %p59 = scmp.ne.s32.totalorder %s47, %s48
    %p60 = scmp.eq.s32.totalorder %s17, 1
    %p61 = por %p59, %p60
    %p63 = scmp.ne.s32.totalorder %s48, %s62
    %p64 = scmp.eq.s32.totalorder %s17, 0
    %p65 = por %p63, %p64
    %s67 = sadd.s32 %s66, 1
    %p70 = scmp.eq.s32.totalorder %s11, 1
    %p71 = scmp.ne.s32.totalorder %s66, %s68
    %p72 = scmp.eq.s32.totalorder %s11, 0
    %p73 = por %p71, %p72
    %p74 = scmp.ne.s32.totalorder %s66, %s68
    %p75 = scmp.eq.s32.totalorder %s16, 1
    %p76 = por %p74, %p75
    %p77 = scmp.ne.s32.totalorder %s68, %s69
    %p78 = scmp.eq.s32.totalorder %s16, 0
    %p79 = por %p77, %p78
    %p80 = scmp.ne.s32.totalorder %s68, %s69
    %p81 = scmp.eq.s32.totalorder %s17, 1
    %p82 = por %p80, %p81
    %p84 = scmp.ne.s32.totalorder %s69, %s83
    %p85 = scmp.eq.s32.totalorder %s17, 0
    %p86 = por %p84, %p85
    %s88 = sadd.s32 %s87, 1
    %p91 = scmp.eq.s32.totalorder %s11, 1
    %p92 = scmp.ne.s32.totalorder %s87, %s89
    %p93 = scmp.eq.s32.totalorder %s11, 0
    %p94 = por %p92, %p93
    %p95 = scmp.ne.s32.totalorder %s87, %s89
    %p96 = scmp.eq.s32.totalorder %s16, 1
    %p97 = por %p95, %p96
    %p98 = scmp.ne.s32.totalorder %s89, %s90
    %p99 = scmp.eq.s32.totalorder %s16, 0
    %p100 = por %p98, %p99
    %p101 = scmp.ne.s32.totalorder %s89, %s90
    %p102 = scmp.eq.s32.totalorder %s17, 1
    %p103 = por %p101, %p102
    %p105 = scmp.ne.s32.totalorder %s90, %s104
    %p106 = scmp.eq.s32.totalorder %s17, 0
    %p107 = por %p105, %p106
    %s109 = sadd.s32 %s108, 1
    %p112 = scmp.eq.s32.totalorder %s11, 1
    %p113 = scmp.ne.s32.totalorder %s108, %s110
    %p114 = scmp.eq.s32.totalorder %s11, 0
    %p115 = por %p113, %p114
    %p116 = scmp.ne.s32.totalorder %s108, %s110
    %p117 = scmp.eq.s32.totalorder %s16, 1
    %p118 = por %p116, %p117
    %p119 = scmp.ne.s32.totalorder %s110, %s111
    %p120 = scmp.eq.s32.totalorder %s16, 0
    %p121 = por %p119, %p120
    %p122 = scmp.ne.s32.totalorder %s110, %s111
    %p123 = scmp.eq.s32.totalorder %s17, 1
    %p124 = por %p122, %p123
    %p126 = scmp.ne.s32.totalorder %s111, %s125
    %p127 = scmp.eq.s32.totalorder %s17, 0
    %p128 = por %p126, %p127
    %s129 = ssub.s32 %s11, %s18
    %p130 = scmp.eq.s32.totalorder %s129, 0
    %s132 = sadd.s32 %s131, 1
    %s133 = scalar_select %p130, %s131, %s132
    %p136 = pneg %p130
    %p137 = scmp.eq.s32.totalorder %s11, 1
    %p138 = por %p136, %p137
    %p139 = scmp.ne.s32.totalorder %s131, %s134
    %p140 = scmp.eq.s32.totalorder %s11, 0
    %p141 = por %p139, %p140
    %p142 = scmp.ne.s32.totalorder %s131, %s134
    %p143 = scmp.eq.s32.totalorder %s16, 1
    %p144 = por %p142, %p143
    %p145 = scmp.ne.s32.totalorder %s134, %s135
    %p146 = scmp.eq.s32.totalorder %s16, 0
    %p147 = por %p145, %p146
    %p148 = scmp.ne.s32.totalorder %s134, %s135
    %p149 = scmp.eq.s32.totalorder %s17, 1
    %p150 = por %p148, %p149
    %p152 = scmp.ne.s32.totalorder %s135, %s151
    %p153 = scmp.eq.s32.totalorder %s17, 0
    %p154 = por %p152, %p153
    %p155 = scmp.le.s32.totalorder 1, %s11
    %p156 = scmp.lt.s32.totalorder %s11, 3
    %p157 = pnand %p155, %p156
    %p158 = pneg %p157
    // Predicated region
    $region9: #{vit_forward.13} parent=5 // pred_check
      _
    $region10: #{vit_forward.13} parent=5 // pred_check_branch
      %160 = sbr.rel (%p157) target = $region12
    $region11: #{vit_forward.13} parent=5 // pred_region
      %s161 = ssub.s32 %s11, 1
      // Predicated region
      $region13: #{vit_forward.13} parent=11 // pred_check
        %p162 = pneg %p58
      $region14: #{vit_forward.13} parent=11 // pred_check_branch
        %164 = sbr.rel (%p162) target = $region16
      $region15: #{vit_forward.13} parent=11 // pred_region
        _
      $region16: #{vit_forward.13} parent=11 // pred_fallthru
        _
      // Predicated region
      $region17: #{vit_forward.13} parent=11 // pred_check
        %p165 = pneg %p79
      $region18: #{vit_forward.13} parent=11 // pred_check_branch
        %167 = sbr.rel (%p165) target = $region20
      $region19: #{vit_forward.13} parent=11 // pred_region
        _
      $region20: #{vit_forward.13} parent=11 // pred_fallthru
        _
      // Predicated region
      $region21: #{vit_forward.13} parent=11 // pred_check
        %p168 = pneg %p100
      $region22: #{vit_forward.13} parent=11 // pred_check_branch
        %170 = sbr.rel (%p168) target = $region24
      $region23: #{vit_forward.13} parent=11 // pred_region
        _
      $region24: #{vit_forward.13} parent=11 // pred_fallthru
        _
      // Predicated region
      $region25: #{vit_forward.13} parent=11 // pred_check
        %p171 = pneg %p121
      $region26: #{vit_forward.13} parent=11 // pred_check_branch
        %173 = sbr.rel (%p171) target = $region28
      $region27: #{vit_forward.13} parent=11 // pred_region
        _
      $region28: #{vit_forward.13} parent=11 // pred_fallthru
        _
    $region12: #{vit_forward.13} parent=5 // pred_fallthru
      _
    %p174 = scmp.lt.s32.totalorder %s11, 2
    // Predicated region
    $region29: #{vit_forward.13} parent=5 // pred_check
      %p175 = pneg %p174
    $region30: #{vit_forward.13} parent=5 // pred_check_branch
      %177 = sbr.rel (%p175) target = $region32
    $region31: #{vit_forward.13} parent=5 // pred_region
      // Predicated region
      $region33: #{vit_forward.13} parent=31 // pred_check
        %p178 = pneg %p31
      $region34: #{vit_forward.13} parent=31 // pred_check_branch
        %180 = sbr.rel (%p178) target = $region36
      $region35: #{vit_forward.13} parent=31 // pred_region
        %p181 = scmp.lt.s32.totalorder %s11, 1
        %s182 = scalar_select %p181, %s11, 1
        %s183 = smul.addr %s182, 3
        %s184 = smul.addr %s183, 8
        %s185 = scalar_lea.vmem %s0, %s184
      $region36: #{vit_forward.13} parent=31 // pred_fallthru
        _
    $region32: #{vit_forward.13} parent=5 // pred_fallthru
      _
    %p186 = scmp.le.s32.totalorder 1, %s11
    %p187 = scmp.lt.s32.totalorder %s11, 3
    %p188 = pnand %p186, %p187
    %p189 = pneg %p188
    // Predicated region
    $region37: #{vit_forward.13} parent=5 // pred_check
      _
    $region38: #{vit_forward.13} parent=5 // pred_check_branch
      %191 = sbr.rel (%p188) target = $region40
    $region39: #{vit_forward.13} parent=5 // pred_region
      %s192 = ssub.s32 %s11, 1
      %p193 = scmp.lt.s32.totalorder %s16, 1
      %s194 = scalar_select %p193, %s16, 1
      %s195 = smul.addr %s194, 3
      %s196 = smul.addr %s195, 8
      %s197 = scalar_lea.vmem %s0, %s196
      %p198 = pneg %p37
      %p199 = pneg %p34
      %p200 = pneg %p58
      %p201 = pneg %p55
      %p202 = pneg %p79
      %p203 = pneg %p76
      %p204 = pneg %p100
      %p205 = pneg %p97
      %p206 = pneg %p121
      %p207 = pneg %p118
      %p208 = pneg %p147
      %p209 = pneg %p144
      %p210 = scmp.lt.s32.totalorder %s16, 1
      %s211 = scalar_select %p210, %s16, 1
      %s212 = smul.addr %s211, 3
      %s213 = smul.addr %s212, 4
      %s214 = scalar_lea.vmem %s5, %s213
      %p215 = scmp.lt.s32.totalorder %s16, 1
      %s216 = scalar_select %p215, %s16, 1
      %s217 = smul.addr %s216, 3
      %s218 = smul.addr %s217, 8
      %s219 = scalar_lea.vmem %s0, %s218
      %p220 = scmp.lt.s32.totalorder %s16, 1
      %s221 = scalar_select %p220, %s16, 1
      %s222 = smul.addr %s221, 3
      %s223 = smul.addr %s222, 4
      %s224 = scalar_lea.vmem %s5, %s223
      %v226 = vld [vmem:[%s219] sm:$0xff]
      %v227 = vld [vmem:[%s219 + $0x8] sm:$0xff]
      %v228 = vld [vmem:[%s219 + $0x10] sm:$0x1]
      %v229 = vld [vmem:[%s1] sm:$0x1]
      %v230 = vld [vmem:[%s2] sm:$0x1]
      %vm231 = vcmask 261120
      %v232 = vsel %vm231, %v226, 0.0
      %233 = vadd.xlane.f32.xlu0 %v232
      %v234 = vpop.xlane.xlu0 %233
      %v235 = vsel %vm231, %v227, 0.0
      %236 = vadd.xlane.f32.xlu0 %v235
      %v237 = vpop.xlane.xlu0 %236
      %vm238 = vcmask 253952
      %v239 = vsel %vm238, %v228, 0.0
      %240 = vadd.xlane.f32.xlu0 %v239
      %v241 = vpop.xlane.xlu0 %240
      %v242 = vrcp.pop 32.0
      %v243 = vmul.f32 32.0, %v242
      %v244 = vsub.f32 1.0, %v243
      %v245 = vmul.f32 %v242, %v244
      %v246 = vadd.f32 %v242, %v245
      %vm247 = vweird.f32 %v242
      %v248 = vsel %vm247, %v242, %v246
      %v249 = vmul.f32 %v234, %v248
      %v250 = vmul.f32 %v237, %v248
      %v251 = vmul.f32 %v241, %v248
      %v252 = vsub.f32 %v226, %v249
      %v253 = vsub.f32 %v227, %v250
      %v254 = vsub.f32 %v228, %v251
      %v255 = vmul.f32 %v252, %v252
      %v256 = vmul.f32 %v253, %v253
      %v257 = vmul.f32 %v254, %v254
      %v258 = vsel %vm231, %v255, 0.0
      %259 = vadd.xlane.f32.xlu0 %v258
      %v260 = vpop.xlane.xlu0 %259
      %v261 = vsel %vm231, %v256, 0.0
      %262 = vadd.xlane.f32.xlu0 %v261
      %v263 = vpop.xlane.xlu0 %262
      %v264 = vsel %vm238, %v257, 0.0
      %265 = vadd.xlane.f32.xlu0 %v264
      %v266 = vpop.xlane.xlu0 %265
      %v267 = vmul.f32 %v260, %v248
      %v268 = vmul.f32 %v263, %v248
      %v269 = vmul.f32 %v266, %v248
      %v270 = vadd.f32 %v267, 1e-05
      %v271 = vadd.f32 %v268, 1e-05
      %v272 = vadd.f32 %v269, 1e-05
      %v273 = vrsqrt.pop %v270
      %v274 = vmul.f32 %v273, %v270
      %v275 = vmul.f32 %v274, %v273
      %v276 = vmul.f32 0.5, %v275
      %v277 = vsub.f32 1.5, %v276
      %v278 = vmul.f32 %v273, %v277
      %vm279 = vweird.f32 %v270
      %vm280 = vweird.f32 %v273
      %vm281 = vmor %vm279, %vm280
      %v282 = vsel %vm281, %v273, %v278
      %v283 = vrsqrt.pop %v271
      %v284 = vmul.f32 %v283, %v271
      %v285 = vmul.f32 %v284, %v283
      %v286 = vmul.f32 0.5, %v285
      %v287 = vsub.f32 1.5, %v286
      %v288 = vmul.f32 %v283, %v287
      %vm289 = vweird.f32 %v271
      %vm290 = vweird.f32 %v283
      %vm291 = vmor %vm289, %vm290
      %v292 = vsel %vm291, %v283, %v288
      %v293 = vrsqrt.pop %v272
      %v294 = vmul.f32 %v293, %v272
      %v295 = vmul.f32 %v294, %v293
      %v296 = vmul.f32 0.5, %v295
      %v297 = vsub.f32 1.5, %v296
      %v298 = vmul.f32 %v293, %v297
      %vm299 = vweird.f32 %v272
      %vm300 = vweird.f32 %v293
      %vm301 = vmor %vm299, %vm300
      %v302 = vsel %vm301, %v293, %v298
      %v303 = vmul.f32 %v252, %v282
      %v304 = vmul.f32 %v253, %v292
      %v305 = vmul.f32 %v254, %v302
      %v307 = vperm.slane %v229, 0
      %v309 = vmul.f32 %v303, %v307
      %v310 = vmul.f32 %v304, %v307
      %v311 = vmul.f32 %v305, %v307
      %v313 = vperm.slane %v230, 0
      %v315 = vadd.f32 %v309, %v313
      %v316 = vadd.f32 %v310, %v313
      %v317 = vadd.f32 %v311, %v313
      %v318 = vpack.c.bf16 %v316, %v315
      %v319 = vpack.c.bf16 %v317, %v317
      %v320 = vld [vmem:[%s3] sm:$0xf]
      %v321 = vld [vmem:[%s3 + $0x4] sm:$0xf]
      %v322 = vld [vmem:[%s3 + $0x8] sm:$0xf]
      %v323 = vld [vmem:[%s3 + $0xc] sm:$0xf]
      %v324 = vld [vmem:[%s4] sm:$0x1]
      %v326 = vperm.slane %v324, 0
      %v332 = vunpack.c.l.b16 %v320
      %v333 = vunpack.c.l.b16 %v321
      %v334 = vunpack.c.l.b16 %v322
      %v335 = vunpack.c.l.b16 %v323
      %v336 = vpack.c.b16 %v333, %v332
      %v337 = vpack.c.b16 %v335, %v334
      %v341 = vsel %vm231, %v318, 0
      %v344 = vsel %vm231, %v319, 0
      %346 = vmatpush.bf16.msra.mxu0 0
      %347 = vmatpush.bf16.msra.mxu0 0
      %348 = vmatpush.bf16.msra.mxu0 0
      %349 = vmatpush.bf16.msra.mxu0 0
      %350 = vmatpush.bf16.msra.mxu0 0
      %351 = vmatpush.bf16.msra.mxu0 0
      %352 = vmatpush.bf16.msra.mxu0 %v337
      %353 = vmatpush.bf16.msra.mxu0 %v336
      %354 = vmatmul.bf16.gmra.mxu0 %v341
      %v355 = vpop.f32.mrf.mxu0
      %v356 = vadd.f32 %v326, %v355
      %v357 = vpop.f32.mrf.mxu0
      %v358 = vadd.f32 %v326, %v357
      %359 = vmatmul.bf16.gmra.mxu0 %v344
      %v360 = vpop.f32.mrf.mxu0
      %v361 = vadd.f32 %v326, %v360
      %v362 = vpop.f32.mrf.mxu0
      %363 = vdwg.mxu0
      %v364 = vpack.c.bf16 %v356, %v356
      %v365 = vpack.c.bf16 %v358, %v358
      %v366 = vpack.c.bf16 %v361, %v361
      %vm367 = vcmask 781312
      %368 = vst.msk [vmem:[%s224] sm:$0xf] %vm367, %v364
      %369 = vst.msk [vmem:[%s224 + $0x4] sm:$0xf] %vm367, %v365
      %vm370 = vcmask 778240
      %vm371 = vsmask.f32 256
      %vm372 = vmand %vm370, %vm371
      %v373 = vld [vmem:[%s224 + $0x8] sm:$0x1]
      %v374 = vsel %vm372, %v366, %v373
      %375 = vst [vmem:[%s224 + $0x8] sm:$0x1] %v374
      %p376 = scmp.lt.s32.totalorder %s16, 1
      %s377 = scalar_select %p376, %s16, 1
      %s378 = smul.addr %s377, 3
      %s379 = smul.addr %s378, 4
      %s380 = scalar_lea.vmem %s5, %s379
      // Predicated region
      $region41: #{vit_forward.13} parent=39 // pred_check
        %p381 = pneg %p144
      $region42: #{vit_forward.13} parent=39 // pred_check_branch
        %383 = sbr.rel (%p381) target = $region44
      $region43: #{vit_forward.13} parent=39 // pred_region
        _
      $region44: #{vit_forward.13} parent=39 // pred_fallthru
        _
    $region40: #{vit_forward.13} parent=5 // pred_fallthru
      _
    %p384 = scmp.le.s32.totalorder 2, %s11
    // Predicated region
    $region45: #{vit_forward.13} parent=5 // pred_check
      %p385 = pneg %p384
    $region46: #{vit_forward.13} parent=5 // pred_check_branch
      %387 = sbr.rel (%p385) target = $region48
    $region47: #{vit_forward.13} parent=5 // pred_region
      %s388 = ssub.s32 %s11, 2
      // Predicated region
      $region49: #{vit_forward.13} parent=47 // pred_check
        %p389 = pneg %p150
      $region50: #{vit_forward.13} parent=47 // pred_check_branch
        %391 = sbr.rel (%p389) target = $region52
      $region51: #{vit_forward.13} parent=47 // pred_region
        %p392 = scmp.lt.s32.totalorder %s17, 1
        %s393 = scalar_select %p392, %s17, 1
        %s394 = smul.addr %s393, 3
        %s395 = smul.addr %s394, 4
        %s396 = scalar_lea.vmem %s5, %s395
      $region52: #{vit_forward.13} parent=47 // pred_fallthru
        _
    $region48: #{vit_forward.13} parent=5 // pred_fallthru
      _
  $region6: #{vit_forward.13} parent=0 // loop_footer
    %s15 = sadd.s32 1, %s11
  $region7: #{vit_forward.13} parent=0 // loop_footer_branch
    %10 = sbr.rel target = $region3
  $region8: #{vit_forward.13} parent=0 // loop_exit
    _

// kernel: vit_forward.12
$region0: #{vit_forward.12}
  #allocation0 [shape = 'u32[]', space=smem, size = 0x4, offset = 0x4, fixed_abs, tag = 'smem constant byte address 0x4 - core index']
  #allocation1 [shape = 'u32[72,128]{1,0:T(1,128)}', space=vmem, size = 0x9000, scoped, tag = 'internal scratch']
  %s0 = inlined_call_operand.vmem [shape: f32[2,16,32], index: 0, kind: input, shape index: {}]
  %s1 = inlined_call_operand.vmem [shape: f32[1,32], index: 1, kind: input, shape index: {}]
  %s2 = inlined_call_operand.vmem [shape: f32[17,32], index: 2, kind: input, shape index: {}]
  %s3 = inlined_call_operand.vmem [shape: f32[1,32], index: 3, kind: input, shape index: {}]
  %s4 = inlined_call_operand.vmem [shape: f32[1,32], index: 4, kind: input, shape index: {}]
  %s5 = inlined_call_operand.vmem [shape: f32[2,17,32], index: 5, kind: output, shape index: {}]
  %s6 = sld [smem:[#allocation0]]
  $region53: #{vit_forward.12} parent=0
    _
  %s8 = ssub.s32 1, %s6
  %s9 = scalar_select 0, %s8, %s6
  loop: start=0, step=1, limit=4
  $region2: #{vit_forward.12} parent=0 // loop_pre_header
    _
  $region3: #{vit_forward.12} parent=0 // loop_header
    %s11 = sphi 0, %s15
    %p12 = scmp.ge.s32.totalorder %s11, 4
    %s21 = sphi 0, %s23
    %s24 = sphi 0, %s21
    %s25 = sphi 0, %s24
    %s41 = sphi 0, %s25
    %s45 = sphi 0, %s45
    %s47 = sphi 0, %s45
    %s48 = sphi 0, %s47
    %s62 = sphi 0, %s48
    %s66 = sphi 0, %s66
    %s68 = sphi 0, %s66
    %s69 = sphi 0, %s68
    %s83 = sphi 0, %s69
    %s87 = sphi 0, %s87
    %s89 = sphi 0, %s87
    %s90 = sphi 0, %s89
    %s104 = sphi 0, %s90
    %s108 = sphi 0, %s108
    %s110 = sphi 0, %s108
    %s111 = sphi 0, %s110
    %s125 = sphi 0, %s111
    %s131 = sphi 0, %s133
    %s134 = sphi 0, %s131
    %s135 = sphi 0, %s134
    %s151 = sphi 0, %s135
  $region4: #{vit_forward.12} parent=0 // loop_header_branch
    %14 = sbr.rel (%p12) target = $region8
  $region5: #{vit_forward.12} parent=0 // loop_body
    %s16 = ssub.s32 %s11, 1
    %s17 = ssub.s32 %s11, 2
    %s18 = sadd.s32 %s11, 1
    %s19 = ssub.s32 %s11, %s18
    %p20 = scmp.eq.s32.totalorder %s19, 0
    %s22 = sadd.s32 %s21, 1
    %s23 = scalar_select %p20, %s21, %s22
    %p26 = pneg %p20
    %p27 = scmp.eq.s32.totalorder %s11, 1
    %p28 = por %p26, %p27
    %p29 = scmp.ne.s32.totalorder %s21, %s24
    %p30 = scmp.eq.s32.totalorder %s11, 0
    %p31 = por %p29, %p30
    %p32 = scmp.ne.s32.totalorder %s21, %s24
    %p33 = scmp.eq.s32.totalorder %s16, 1
    %p34 = por %p32, %p33
    %p35 = scmp.ne.s32.totalorder %s24, %s25
    %p36 = scmp.eq.s32.totalorder %s16, 0
    %p37 = por %p35, %p36
    %p38 = scmp.ne.s32.totalorder %s24, %s25
    %p39 = scmp.eq.s32.totalorder %s17, 1
    %p40 = por %p38, %p39
    %p42 = scmp.ne.s32.totalorder %s25, %s41
    %p43 = scmp.eq.s32.totalorder %s17, 0
    %p44 = por %p42, %p43
    %s46 = sadd.s32 %s45, 1
    %p49 = scmp.eq.s32.totalorder %s11, 1
    %p50 = scmp.ne.s32.totalorder %s45, %s47
    %p51 = scmp.eq.s32.totalorder %s11, 0
    %p52 = por %p50, %p51
    %p53 = scmp.ne.s32.totalorder %s45, %s47
    %p54 = scmp.eq.s32.totalorder %s16, 1
    %p55 = por %p53, %p54
    %p56 = scmp.ne.s32.totalorder %s47, %s48
    %p57 = scmp.eq.s32.totalorder %s16, 0
    %p58 = por %p56, %p57
    %p59 = scmp.ne.s32.totalorder %s47, %s48
    %p60 = scmp.eq.s32.totalorder %s17, 1
    %p61 = por %p59, %p60
    %p63 = scmp.ne.s32.totalorder %s48, %s62
    %p64 = scmp.eq.s32.totalorder %s17, 0
    %p65 = por %p63, %p64
    %s67 = sadd.s32 %s66, 1
    %p70 = scmp.eq.s32.totalorder %s11, 1
    %p71 = scmp.ne.s32.totalorder %s66, %s68
    %p72 = scmp.eq.s32.totalorder %s11, 0
    %p73 = por %p71, %p72
    %p74 = scmp.ne.s32.totalorder %s66, %s68
    %p75 = scmp.eq.s32.totalorder %s16, 1
    %p76 = por %p74, %p75
    %p77 = scmp.ne.s32.totalorder %s68, %s69
    %p78 = scmp.eq.s32.totalorder %s16, 0
    %p79 = por %p77, %p78
    %p80 = scmp.ne.s32.totalorder %s68, %s69
    %p81 = scmp.eq.s32.totalorder %s17, 1
    %p82 = por %p80, %p81
    %p84 = scmp.ne.s32.totalorder %s69, %s83
    %p85 = scmp.eq.s32.totalorder %s17, 0
    %p86 = por %p84, %p85
    %s88 = sadd.s32 %s87, 1
    %p91 = scmp.eq.s32.totalorder %s11, 1
    %p92 = scmp.ne.s32.totalorder %s87, %s89
    %p93 = scmp.eq.s32.totalorder %s11, 0
    %p94 = por %p92, %p93
    %p95 = scmp.ne.s32.totalorder %s87, %s89
    %p96 = scmp.eq.s32.totalorder %s16, 1
    %p97 = por %p95, %p96
    %p98 = scmp.ne.s32.totalorder %s89, %s90
    %p99 = scmp.eq.s32.totalorder %s16, 0
    %p100 = por %p98, %p99
    %p101 = scmp.ne.s32.totalorder %s89, %s90
    %p102 = scmp.eq.s32.totalorder %s17, 1
    %p103 = por %p101, %p102
    %p105 = scmp.ne.s32.totalorder %s90, %s104
    %p106 = scmp.eq.s32.totalorder %s17, 0
    %p107 = por %p105, %p106
    %s109 = sadd.s32 %s108, 1
    %p112 = scmp.eq.s32.totalorder %s11, 1
    %p113 = scmp.ne.s32.totalorder %s108, %s110
    %p114 = scmp.eq.s32.totalorder %s11, 0
    %p115 = por %p113, %p114
    %p116 = scmp.ne.s32.totalorder %s108, %s110
    %p117 = scmp.eq.s32.totalorder %s16, 1
    %p118 = por %p116, %p117
    %p119 = scmp.ne.s32.totalorder %s110, %s111
    %p120 = scmp.eq.s32.totalorder %s16, 0
    %p121 = por %p119, %p120
    %p122 = scmp.ne.s32.totalorder %s110, %s111
    %p123 = scmp.eq.s32.totalorder %s17, 1
    %p124 = por %p122, %p123
    %p126 = scmp.ne.s32.totalorder %s111, %s125
    %p127 = scmp.eq.s32.totalorder %s17, 0
    %p128 = por %p126, %p127
    %s129 = ssub.s32 %s11, %s18
    %p130 = scmp.eq.s32.totalorder %s129, 0
    %s132 = sadd.s32 %s131, 1
    %s133 = scalar_select %p130, %s131, %s132
    %p136 = pneg %p130
    %p137 = scmp.eq.s32.totalorder %s11, 1
    %p138 = por %p136, %p137
    %p139 = scmp.ne.s32.totalorder %s131, %s134
    %p140 = scmp.eq.s32.totalorder %s11, 0
    %p141 = por %p139, %p140
    %p142 = scmp.ne.s32.totalorder %s131, %s134
    %p143 = scmp.eq.s32.totalorder %s16, 1
    %p144 = por %p142, %p143
    %p145 = scmp.ne.s32.totalorder %s134, %s135
    %p146 = scmp.eq.s32.totalorder %s16, 0
    %p147 = por %p145, %p146
    %p148 = scmp.ne.s32.totalorder %s134, %s135
    %p149 = scmp.eq.s32.totalorder %s17, 1
    %p150 = por %p148, %p149
    %p152 = scmp.ne.s32.totalorder %s135, %s151
    %p153 = scmp.eq.s32.totalorder %s17, 0
    %p154 = por %p152, %p153
    %p155 = scmp.le.s32.totalorder 1, %s11
    %p156 = scmp.lt.s32.totalorder %s11, 3
    %p157 = pnand %p155, %p156
    %p158 = pneg %p157
    // Predicated region
    $region9: #{vit_forward.12} parent=5 // pred_check
      _
    $region10: #{vit_forward.12} parent=5 // pred_check_branch
      %160 = sbr.rel (%p157) target = $region12
    $region11: #{vit_forward.12} parent=5 // pred_region
      %s161 = ssub.s32 %s11, 1
      // Predicated region
      $region13: #{vit_forward.12} parent=11 // pred_check
        %p162 = pneg %p58
      $region14: #{vit_forward.12} parent=11 // pred_check_branch
        %164 = sbr.rel (%p162) target = $region16
      $region15: #{vit_forward.12} parent=11 // pred_region
        _
      $region16: #{vit_forward.12} parent=11 // pred_fallthru
        _
      // Predicated region
      $region17: #{vit_forward.12} parent=11 // pred_check
        %p165 = pneg %p79
      $region18: #{vit_forward.12} parent=11 // pred_check_branch
        %167 = sbr.rel (%p165) target = $region20
      $region19: #{vit_forward.12} parent=11 // pred_region
        _
      $region20: #{vit_forward.12} parent=11 // pred_fallthru
        _
      // Predicated region
      $region21: #{vit_forward.12} parent=11 // pred_check
        %p168 = pneg %p100
      $region22: #{vit_forward.12} parent=11 // pred_check_branch
        %170 = sbr.rel (%p168) target = $region24
      $region23: #{vit_forward.12} parent=11 // pred_region
        _
      $region24: #{vit_forward.12} parent=11 // pred_fallthru
        _
      // Predicated region
      $region25: #{vit_forward.12} parent=11 // pred_check
        %p171 = pneg %p121
      $region26: #{vit_forward.12} parent=11 // pred_check_branch
        %173 = sbr.rel (%p171) target = $region28
      $region27: #{vit_forward.12} parent=11 // pred_region
        _
      $region28: #{vit_forward.12} parent=11 // pred_fallthru
        _
    $region12: #{vit_forward.12} parent=5 // pred_fallthru
      _
    %p174 = scmp.lt.s32.totalorder %s11, 2
    // Predicated region
    $region29: #{vit_forward.12} parent=5 // pred_check
      %p175 = pneg %p174
    $region30: #{vit_forward.12} parent=5 // pred_check_branch
      %177 = sbr.rel (%p175) target = $region32
    $region31: #{vit_forward.12} parent=5 // pred_region
      // Predicated region
      $region33: #{vit_forward.12} parent=31 // pred_check
        %p178 = pneg %p31
      $region34: #{vit_forward.12} parent=31 // pred_check_branch
        %180 = sbr.rel (%p178) target = $region36
      $region35: #{vit_forward.12} parent=31 // pred_region
        %p181 = scmp.lt.s32.totalorder %s11, 1
        %s182 = scalar_select %p181, %s11, 1
        %s183 = smul.addr %s182, 2
        %s184 = smul.addr %s183, 8
        %s185 = scalar_lea.vmem %s0, %s184
      $region36: #{vit_forward.12} parent=31 // pred_fallthru
        _
    $region32: #{vit_forward.12} parent=5 // pred_fallthru
      _
    %p186 = scmp.le.s32.totalorder 1, %s11
    %p187 = scmp.lt.s32.totalorder %s11, 3
    %p188 = pnand %p186, %p187
    %p189 = pneg %p188
    // Predicated region
    $region37: #{vit_forward.12} parent=5 // pred_check
      _
    $region38: #{vit_forward.12} parent=5 // pred_check_branch
      %191 = sbr.rel (%p188) target = $region40
    $region39: #{vit_forward.12} parent=5 // pred_region
      %s192 = ssub.s32 %s11, 1
      %p193 = scmp.lt.s32.totalorder %s16, 1
      %s194 = scalar_select %p193, %s16, 1
      %s195 = smul.addr %s194, 2
      %s196 = smul.addr %s195, 8
      %s197 = scalar_lea.vmem %s0, %s196
      %p198 = pneg %p37
      %p199 = pneg %p34
      %p200 = pneg %p58
      %p201 = pneg %p55
      %p202 = pneg %p79
      %p203 = pneg %p76
      %p204 = pneg %p100
      %p205 = pneg %p97
      %p206 = pneg %p121
      %p207 = pneg %p118
      %p208 = pneg %p147
      %p209 = pneg %p144
      %p210 = scmp.lt.s32.totalorder %s16, 1
      %s211 = scalar_select %p210, %s16, 1
      %s212 = smul.addr %s211, 3
      %s213 = smul.addr %s212, 8
      %s214 = scalar_lea.vmem %s5, %s213
      %p215 = scmp.lt.s32.totalorder %s16, 1
      %s216 = scalar_select %p215, %s16, 1
      %s217 = smul.addr %s216, 2
      %s218 = smul.addr %s217, 8
      %s219 = scalar_lea.vmem %s0, %s218
      %p220 = scmp.lt.s32.totalorder %s16, 1
      %s221 = scalar_select %p220, %s16, 1
      %s222 = smul.addr %s221, 3
      %s223 = smul.addr %s222, 8
      %s224 = scalar_lea.vmem %s5, %s223
      %v225 = vld [vmem:[%s3] sm:$0x1]
      %v226 = vld [vmem:[%s4] sm:$0x1]
      %v227 = vld [vmem:[%s1] sm:$0x1]
      %v228 = vld [vmem:[%s2] sm:$0x1]
      %v229 = vadd.f32 %v227, %v228
      %vm230 = vcmask 253952
      %v231 = vsel %vm230, %v229, 0.0
      %232 = vadd.xlane.f32.xlu0 %v231
      %v233 = vpop.xlane.xlu0 %232
      %v234 = vrcp.pop 32.0
      %v235 = vmul.f32 32.0, %v234
      %v236 = vsub.f32 1.0, %v235
      %v237 = vmul.f32 %v234, %v236
      %v238 = vadd.f32 %v234, %v237
      %vm239 = vweird.f32 %v234
      %v240 = vsel %vm239, %v234, %v238
      %v241 = vmul.f32 %v233, %v240
      %v242 = vsub.f32 %v229, %v241
      %v243 = vmul.f32 %v242, %v242
      %v244 = vsel %vm230, %v243, 0.0
      %245 = vadd.xlane.f32.xlu0 %v244
      %v246 = vpop.xlane.xlu0 %245
      %v247 = vmul.f32 %v246, %v240
      %v248 = vadd.f32 %v247, 1e-05
      %v249 = vrsqrt.pop %v248
      %v250 = vmul.f32 %v249, %v248
      %v251 = vmul.f32 %v250, %v249
      %v252 = vmul.f32 0.5, %v251
      %v253 = vsub.f32 1.5, %v252
      %v254 = vmul.f32 %v249, %v253
      %vm255 = vweird.f32 %v248
      %vm256 = vweird.f32 %v249
      %vm257 = vmor %vm255, %vm256
      %v258 = vsel %vm257, %v249, %v254
      %v259 = vmul.f32 %v242, %v258
      %v260 = vmul.f32 %v259, %v225
      %v261 = vadd.f32 %v260, %v226
      %262 = vst.msk [vmem:[%s224] sm:$0x1] %vm230, %v261
      %v263 = vld [vmem:[%s219] sm:$0xff]
      %v264 = vld [vmem:[%s219 + $0x8] sm:$0xff]
      %v265 = vld [vmem:[%s2 + $0x1] sm:$0xff]
      %v266 = vld [vmem:[%s2 + $0x9] sm:$0xff]
      %v267 = vadd.f32 %v263, %v265
      %v268 = vadd.f32 %v264, %v266
      %vm269 = vcmask 261120
      %v270 = vsel %vm269, %v267, 0.0
      %271 = vadd.xlane.f32.xlu0 %v270
      %v272 = vpop.xlane.xlu0 %271
      %v273 = vsel %vm269, %v268, 0.0
      %274 = vadd.xlane.f32.xlu0 %v273
      %v275 = vpop.xlane.xlu0 %274
      %v276 = vmul.f32 %v272, %v240
      %v277 = vmul.f32 %v275, %v240
      %v278 = vsub.f32 %v267, %v276
      %v279 = vsub.f32 %v268, %v277
      %v280 = vmul.f32 %v278, %v278
      %v281 = vmul.f32 %v279, %v279
      %v282 = vsel %vm269, %v280, 0.0
      %283 = vadd.xlane.f32.xlu0 %v282
      %v284 = vpop.xlane.xlu0 %283
      %v285 = vsel %vm269, %v281, 0.0
      %286 = vadd.xlane.f32.xlu0 %v285
      %v287 = vpop.xlane.xlu0 %286
      %v288 = vmul.f32 %v284, %v240
      %v289 = vmul.f32 %v287, %v240
      %v290 = vadd.f32 %v288, 1e-05
      %v291 = vadd.f32 %v289, 1e-05
      %v292 = vrsqrt.pop %v290
      %v293 = vmul.f32 %v292, %v290
      %v294 = vmul.f32 %v293, %v292
      %v295 = vmul.f32 0.5, %v294
      %v296 = vsub.f32 1.5, %v295
      %v297 = vmul.f32 %v292, %v296
      %vm298 = vweird.f32 %v290
      %vm299 = vweird.f32 %v292
      %vm300 = vmor %vm298, %vm299
      %v301 = vsel %vm300, %v292, %v297
      %v302 = vrsqrt.pop %v291
      %v303 = vmul.f32 %v302, %v291
      %v304 = vmul.f32 %v303, %v302
      %v305 = vmul.f32 0.5, %v304
      %v306 = vsub.f32 1.5, %v305
      %v307 = vmul.f32 %v302, %v306
      %vm308 = vweird.f32 %v291
      %vm309 = vweird.f32 %v302
      %vm310 = vmor %vm308, %vm309
      %v311 = vsel %vm310, %v302, %v307
      %v312 = vmul.f32 %v278, %v301
      %v313 = vmul.f32 %v279, %v311
      %v315 = vperm.slane %v225, 0
      %v317 = vmul.f32 %v312, %v315
      %v318 = vmul.f32 %v313, %v315
      %v320 = vperm.slane %v226, 0
      %v322 = vadd.f32 %v317, %v320
      %v323 = vadd.f32 %v318, %v320
      %324 = vst.msk [vmem:[%s224 + $0x1] sm:$0xff] %vm269, %v322
      %325 = vst.msk [vmem:[%s224 + $0x9] sm:$0xff] %vm269, %v323
      %p326 = scmp.lt.s32.totalorder %s16, 1
      %s327 = scalar_select %p326, %s16, 1
      %s328 = smul.addr %s327, 3
      %s329 = smul.addr %s328, 8
      %s330 = scalar_lea.vmem %s5, %s329
      // Predicated region
      $region41: #{vit_forward.12} parent=39 // pred_check
        %p331 = pneg %p144
      $region42: #{vit_forward.12} parent=39 // pred_check_branch
        %333 = sbr.rel (%p331) target = $region44
      $region43: #{vit_forward.12} parent=39 // pred_region
        _
      $region44: #{vit_forward.12} parent=39 // pred_fallthru
        _
    $region40: #{vit_forward.12} parent=5 // pred_fallthru
      _
    %p334 = scmp.le.s32.totalorder 2, %s11
    // Predicated region
    $region45: #{vit_forward.12} parent=5 // pred_check
      %p335 = pneg %p334
    $region46: #{vit_forward.12} parent=5 // pred_check_branch
      %337 = sbr.rel (%p335) target = $region48
    $region47: #{vit_forward.12} parent=5 // pred_region
      %s338 = ssub.s32 %s11, 2
      // Predicated region
      $region49: #{vit_forward.12} parent=47 // pred_check
        %p339 = pneg %p150
      $region50: #{vit_forward.12} parent=47 // pred_check_branch
        %341 = sbr.rel (%p339) target = $region52
      $region51: #{vit_forward.12} parent=47 // pred_region
        %p342 = scmp.lt.s32.totalorder %s17, 1
        %s343 = scalar_select %p342, %s17, 1
        %s344 = smul.addr %s343, 3
        %s345 = smul.addr %s344, 8
        %s346 = scalar_lea.vmem %s5, %s345
      $region52: #{vit_forward.12} parent=47 // pred_fallthru
        _
    $region48: #{vit_forward.12} parent=5 // pred_fallthru
      _
  $region6: #{vit_forward.12} parent=0 // loop_footer
    %s15 = sadd.s32 1, %s11
  $region7: #{vit_forward.12} parent=0 // loop_footer_branch
    %10 = sbr.rel target = $region3
  $region8: #{vit_forward.12} parent=0 // loop_exit
    _

// kernel: vit_forward.14
$region0: #{vit_forward.14}
  #allocation0 [shape = 'u32[]', space=smem, size = 0x4, offset = 0x4, fixed_abs, tag = 'smem constant byte address 0x4 - core index']
  #allocation1 [shape = 'u32[72,128]{1,0:T(1,128)}', space=vmem, size = 0x9000, scoped, tag = 'internal scratch']
  %s0 = inlined_call_operand.vmem [shape: bf16[2,4,17,8], index: 0, kind: input, shape index: {}]
  %s1 = inlined_call_operand.vmem [shape: bf16[2,4,17,8], index: 1, kind: input, shape index: {}]
  %s2 = inlined_call_operand.vmem [shape: bf16[2,4,17,8], index: 2, kind: input, shape index: {}]
  %s3 = inlined_call_operand.vmem [shape: bf16[2,4,17,8], index: 3, kind: output, shape index: {}]
  %s4 = sld [smem:[#allocation0]]
  $region45: #{vit_forward.14} parent=0
    _
  %s6 = ssub.s32 1, %s4
  %s7 = scalar_select 0, %s6, %s4
  loop: start=0, step=1, limit=10
  $region2: #{vit_forward.14} parent=0 // loop_pre_header
    _
  $region3: #{vit_forward.14} parent=0 // loop_header
    %s9 = sphi 0, %s13
    %p10 = scmp.ge.s32.totalorder %s9, 10
    %s16 = sphi 0, %s28
    %s17 = sphi 0, %s24
    %s18 = sphi 0, %s16
    %s19 = sphi 0, %s17
    %s20 = sphi 0, %s18
    %s21 = sphi 0, %s19
    %s33 = sphi 0, %s35
    %s36 = sphi 0, %s33
    %s37 = sphi 0, %s36
    %s53 = sphi 0, %s37
    %s61 = sphi 0, %s63
    %s64 = sphi 0, %s61
    %s65 = sphi 0, %s64
    %s81 = sphi 0, %s65
    %s89 = sphi 0, %s91
    %s92 = sphi 0, %s89
    %s93 = sphi 0, %s92
    %s109 = sphi 0, %s93
    %s117 = sphi 0, %s119
    %s120 = sphi 0, %s117
    %s121 = sphi 0, %s120
    %s137 = sphi 0, %s121
  $region4: #{vit_forward.14} parent=0 // loop_header_branch
    %12 = sbr.rel (%p10) target = $region8
  $region5: #{vit_forward.14} parent=0 // loop_body
    %s14 = ssub.s32 %s9, 1
    %s15 = ssub.s32 %s9, 2
    %s22 = sadd.s32 1, %s17
    %p23 = scmp.ge.s32.totalorder %s22, 4
    %s24 = scalar_select %p23, 0, %s22
    %s25 = sadd.s32 1, %s16
    %s26 = scalar_select %p23, %s25, %s16
    %p27 = scmp.ge.s32.totalorder %s26, 2
    %s28 = scalar_select %p27, 0, %s26
    %s29 = ssub.s32 %s16, %s28
    %s30 = ssub.s32 %s17, %s24
    %s31 = sor.u32 %s29, %s30
    %p32 = scmp.eq.s32.totalorder %s31, 0
    %s34 = sadd.s32 %s33, 1
    %s35 = scalar_select %p32, %s33, %s34
    %p38 = pneg %p32
    %p39 = scmp.eq.s32.totalorder %s9, 7
    %p40 = por %p38, %p39
    %p41 = scmp.ne.s32.totalorder %s33, %s36
    %p42 = scmp.eq.s32.totalorder %s9, 0
    %p43 = por %p41, %p42
    %p44 = scmp.ne.s32.totalorder %s33, %s36
    %p45 = scmp.eq.s32.totalorder %s14, 7
    %p46 = por %p44, %p45
    %p47 = scmp.ne.s32.totalorder %s36, %s37
    %p48 = scmp.eq.s32.totalorder %s14, 0
    %p49 = por %p47, %p48
    %p50 = scmp.ne.s32.totalorder %s36, %s37
    %p51 = scmp.eq.s32.totalorder %s15, 7
    %p52 = por %p50, %p51
    %p54 = scmp.ne.s32.totalorder %s37, %s53
    %p55 = scmp.eq.s32.totalorder %s15, 0
    %p56 = por %p54, %p55
    %s57 = ssub.s32 %s16, %s28
    %s58 = ssub.s32 %s17, %s24
    %s59 = sor.u32 %s57, %s58
    %p60 = scmp.eq.s32.totalorder %s59, 0
    %s62 = sadd.s32 %s61, 1
    %s63 = scalar_select %p60, %s61, %s62
    %p66 = pneg %p60
    %p67 = scmp.eq.s32.totalorder %s9, 7
    %p68 = por %p66, %p67
    %p69 = scmp.ne.s32.totalorder %s61, %s64
    %p70 = scmp.eq.s32.totalorder %s9, 0
    %p71 = por %p69, %p70
    %p72 = scmp.ne.s32.totalorder %s61, %s64
    %p73 = scmp.eq.s32.totalorder %s14, 7
    %p74 = por %p72, %p73
    %p75 = scmp.ne.s32.totalorder %s64, %s65
    %p76 = scmp.eq.s32.totalorder %s14, 0
    %p77 = por %p75, %p76
    %p78 = scmp.ne.s32.totalorder %s64, %s65
    %p79 = scmp.eq.s32.totalorder %s15, 7
    %p80 = por %p78, %p79
    %p82 = scmp.ne.s32.totalorder %s65, %s81
    %p83 = scmp.eq.s32.totalorder %s15, 0
    %p84 = por %p82, %p83
    %s85 = ssub.s32 %s16, %s28
    %s86 = ssub.s32 %s17, %s24
    %s87 = sor.u32 %s85, %s86
    %p88 = scmp.eq.s32.totalorder %s87, 0
    %s90 = sadd.s32 %s89, 1
    %s91 = scalar_select %p88, %s89, %s90
    %p94 = pneg %p88
    %p95 = scmp.eq.s32.totalorder %s9, 7
    %p96 = por %p94, %p95
    %p97 = scmp.ne.s32.totalorder %s89, %s92
    %p98 = scmp.eq.s32.totalorder %s9, 0
    %p99 = por %p97, %p98
    %p100 = scmp.ne.s32.totalorder %s89, %s92
    %p101 = scmp.eq.s32.totalorder %s14, 7
    %p102 = por %p100, %p101
    %p103 = scmp.ne.s32.totalorder %s92, %s93
    %p104 = scmp.eq.s32.totalorder %s14, 0
    %p105 = por %p103, %p104
    %p106 = scmp.ne.s32.totalorder %s92, %s93
    %p107 = scmp.eq.s32.totalorder %s15, 7
    %p108 = por %p106, %p107
    %p110 = scmp.ne.s32.totalorder %s93, %s109
    %p111 = scmp.eq.s32.totalorder %s15, 0
    %p112 = por %p110, %p111
    %s113 = ssub.s32 %s16, %s28
    %s114 = ssub.s32 %s17, %s24
    %s115 = sor.u32 %s113, %s114
    %p116 = scmp.eq.s32.totalorder %s115, 0
    %s118 = sadd.s32 %s117, 1
    %s119 = scalar_select %p116, %s117, %s118
    %p122 = pneg %p116
    %p123 = scmp.eq.s32.totalorder %s9, 7
    %p124 = por %p122, %p123
    %p125 = scmp.ne.s32.totalorder %s117, %s120
    %p126 = scmp.eq.s32.totalorder %s9, 0
    %p127 = por %p125, %p126
    %p128 = scmp.ne.s32.totalorder %s117, %s120
    %p129 = scmp.eq.s32.totalorder %s14, 7
    %p130 = por %p128, %p129
    %p131 = scmp.ne.s32.totalorder %s120, %s121
    %p132 = scmp.eq.s32.totalorder %s14, 0
    %p133 = por %p131, %p132
    %p134 = scmp.ne.s32.totalorder %s120, %s121
    %p135 = scmp.eq.s32.totalorder %s15, 7
    %p136 = por %p134, %p135
    %p138 = scmp.ne.s32.totalorder %s121, %s137
    %p139 = scmp.eq.s32.totalorder %s15, 0
    %p140 = por %p138, %p139
    %p141 = scmp.le.s32.totalorder 1, %s9
    %p142 = scmp.lt.s32.totalorder %s9, 9
    %p143 = pnand %p141, %p142
    %p144 = pneg %p143
    // Predicated region
    $region9: #{vit_forward.14} parent=5 // pred_check
      _
    $region10: #{vit_forward.14} parent=5 // pred_check_branch
      %146 = sbr.rel (%p143) target = $region12
    $region11: #{vit_forward.14} parent=5 // pred_region
      %s147 = ssub.s32 %s9, 1
    $region12: #{vit_forward.14} parent=5 // pred_fallthru
      _
    %p148 = scmp.lt.s32.totalorder %s9, 8
    // Predicated region
    $region13: #{vit_forward.14} parent=5 // pred_check
      %p149 = pneg %p148
    $region14: #{vit_forward.14} parent=5 // pred_check_branch
      %151 = sbr.rel (%p149) target = $region16
    $region15: #{vit_forward.14} parent=5 // pred_region
      // Predicated region
      $region17: #{vit_forward.14} parent=15 // pred_check
        %p152 = pneg %p43
      $region18: #{vit_forward.14} parent=15 // pred_check_branch
        %154 = sbr.rel (%p152) target = $region20
      $region19: #{vit_forward.14} parent=15 // pred_region
        %p155 = scmp.lt.s32.totalorder %s16, 1
        %s156 = scalar_select %p155, %s16, 1
        %p157 = scmp.lt.s32.totalorder %s17, 3
        %s158 = scalar_select %p157, %s17, 3
        %s159 = smul.addr %s158, 3
        %s160 = smul.addr %s156, 12
        %s161 = sadd.s32 %s159, %s160
        %s162 = smul.addr %s161, 4
        %s163 = scalar_lea.vmem %s0, %s162
      $region20: #{vit_forward.14} parent=15 // pred_fallthru
        _
      // Predicated region
      $region21: #{vit_forward.14} parent=15 // pred_check
        %p164 = pneg %p71
      $region22: #{vit_forward.14} parent=15 // pred_check_branch
        %166 = sbr.rel (%p164) target = $region24
      $region23: #{vit_forward.14} parent=15 // pred_region
        %p167 = scmp.lt.s32.totalorder %s16, 1
        %s168 = scalar_select %p167, %s16, 1
        %p169 = scmp.lt.s32.totalorder %s17, 3
        %s170 = scalar_select %p169, %s17, 3
        %s171 = smul.addr %s170, 3
        %s172 = smul.addr %s168, 12
        %s173 = sadd.s32 %s171, %s172
        %s174 = smul.addr %s173, 4
        %s175 = scalar_lea.vmem %s1, %s174
      $region24: #{vit_forward.14} parent=15 // pred_fallthru
        _
      // Predicated region
      $region25: #{vit_forward.14} parent=15 // pred_check
        %p176 = pneg %p99
      $region26: #{vit_forward.14} parent=15 // pred_check_branch
        %178 = sbr.rel (%p176) target = $region28
      $region27: #{vit_forward.14} parent=15 // pred_region
        %p179 = scmp.lt.s32.totalorder %s16, 1
        %s180 = scalar_select %p179, %s16, 1
        %p181 = scmp.lt.s32.totalorder %s17, 3
        %s182 = scalar_select %p181, %s17, 3
        %s183 = smul.addr %s182, 3
        %s184 = smul.addr %s180, 12
        %s185 = sadd.s32 %s183, %s184
        %s186 = smul.addr %s185, 4
        %s187 = scalar_lea.vmem %s2, %s186
      $region28: #{vit_forward.14} parent=15 // pred_fallthru
        _
    $region16: #{vit_forward.14} parent=5 // pred_fallthru
      _
    %p188 = scmp.le.s32.totalorder 1, %s9
    %p189 = scmp.lt.s32.totalorder %s9, 9
    %p190 = pnand %p188, %p189
    %p191 = pneg %p190
    // Predicated region
    $region29: #{vit_forward.14} parent=5 // pred_check
      _
    $region30: #{vit_forward.14} parent=5 // pred_check_branch
      %193 = sbr.rel (%p190) target = $region32
    $region31: #{vit_forward.14} parent=5 // pred_region
      %s194 = ssub.s32 %s9, 1
      %p195 = scmp.lt.s32.totalorder %s18, 1
      %s196 = scalar_select %p195, %s18, 1
      %p197 = scmp.lt.s32.totalorder %s19, 3
      %s198 = scalar_select %p197, %s19, 3
      %s199 = smul.addr %s198, 3
      %s200 = smul.addr %s196, 12
      %s201 = sadd.s32 %s199, %s200
      %s202 = smul.addr %s201, 4
      %s203 = scalar_lea.vmem %s0, %s202
      %p204 = pneg %p49
      %p205 = pneg %p46
      %p206 = scmp.lt.s32.totalorder %s18, 1
      %s207 = scalar_select %p206, %s18, 1
      %p208 = scmp.lt.s32.totalorder %s19, 3
      %s209 = scalar_select %p208, %s19, 3
      %s210 = smul.addr %s209, 3
      %s211 = smul.addr %s207, 12
      %s212 = sadd.s32 %s210, %s211
      %s213 = smul.addr %s212, 4
      %s214 = scalar_lea.vmem %s1, %s213
      %p215 = pneg %p77
      %p216 = pneg %p74
      %p217 = scmp.lt.s32.totalorder %s18, 1
      %s218 = scalar_select %p217, %s18, 1
      %p219 = scmp.lt.s32.totalorder %s19, 3
      %s220 = scalar_select %p219, %s19, 3
      %s221 = smul.addr %s220, 3
      %s222 = smul.addr %s218, 12
      %s223 = sadd.s32 %s221, %s222
      %s224 = smul.addr %s223, 4
      %s225 = scalar_lea.vmem %s2, %s224
      %p226 = pneg %p105
      %p227 = pneg %p102
      %p228 = pneg %p133
      %p229 = pneg %p130
      %p230 = scmp.lt.s32.totalorder %s18, 1
      %s231 = scalar_select %p230, %s18, 1
      %p232 = scmp.lt.s32.totalorder %s19, 3
      %s233 = scalar_select %p232, %s19, 3
      %s234 = smul.addr %s233, 3
      %s235 = smul.addr %s231, 12
      %s236 = sadd.s32 %s234, %s235
      %s237 = smul.addr %s236, 4
      %s238 = scalar_lea.vmem %s3, %s237
      %p239 = scmp.lt.s32.totalorder %s18, 1
      %s240 = scalar_select %p239, %s18, 1
      %p241 = scmp.lt.s32.totalorder %s19, 3
      %s242 = scalar_select %p241, %s19, 3
      %s243 = smul.addr %s242, 3
      %s244 = smul.addr %s240, 12
      %s245 = sadd.s32 %s243, %s244
      %s246 = smul.addr %s245, 4
      %s247 = scalar_lea.vmem %s0, %s246
      %p248 = scmp.lt.s32.totalorder %s18, 1
      %s249 = scalar_select %p248, %s18, 1
      %p250 = scmp.lt.s32.totalorder %s19, 3
      %s251 = scalar_select %p250, %s19, 3
      %s252 = smul.addr %s251, 3
      %s253 = smul.addr %s249, 12
      %s254 = sadd.s32 %s252, %s253
      %s255 = smul.addr %s254, 4
      %s256 = scalar_lea.vmem %s1, %s255
      %p257 = scmp.lt.s32.totalorder %s18, 1
      %s258 = scalar_select %p257, %s18, 1
      %p259 = scmp.lt.s32.totalorder %s19, 3
      %s260 = scalar_select %p259, %s19, 3
      %s261 = smul.addr %s260, 3
      %s262 = smul.addr %s258, 12
      %s263 = sadd.s32 %s261, %s262
      %s264 = smul.addr %s263, 4
      %s265 = scalar_lea.vmem %s2, %s264
      %p266 = scmp.lt.s32.totalorder %s18, 1
      %s267 = scalar_select %p266, %s18, 1
      %p268 = scmp.lt.s32.totalorder %s19, 3
      %s269 = scalar_select %p268, %s19, 3
      %s270 = smul.addr %s269, 3
      %s271 = smul.addr %s267, 12
      %s272 = sadd.s32 %s270, %s271
      %s273 = smul.addr %s272, 4
      %s274 = scalar_lea.vmem %s3, %s273
      %v276 = vld [vmem:[%s247] sm:$0xf]
      %v277 = vld [vmem:[%s247 + $0x4] sm:$0xf]
      %v278 = vld [vmem:[%s247 + $0x8] sm:$0x1]
      %v279 = vld [vmem:[%s256] sm:$0xf]
      %v280 = vld [vmem:[%s256 + $0x4] sm:$0xf]
      %v281 = vld [vmem:[%s256 + $0x8] sm:$0x1]
      %v285 = vunpack.c.l.b16 %v276
      %v286 = vunpack.c.l.b16 %v277
      %v287 = vunpack.c.l.b16 %v278
      %v288 = vpack.c.b16 %v286, %v285
      %v289 = vpack.c.b16 %v287, %v287
      %v293 = vunpack.c.l.b16 %v279
      %v294 = vunpack.c.l.b16 %v280
      %v295 = vunpack.c.l.b16 %v281
      %v296 = vpack.c.b16 %v294, %v293
      %v297 = vpack.c.b16 %v295, %v295
      %vm298 = vcmask 64512
      %v300 = vsel %vm298, %v288, 0
      %v303 = vsel %vm298, %v289, 0
      %v306 = vsel %vm298, %v296, 0
      %v309 = vsel %vm298, %v297, 0
      %311 = vmatpush.bf16.xpose.msra.mxu0 0
      %312 = vmatpush.bf16.xpose.msra.mxu0 0
      %313 = vmatpush.bf16.xpose.msra.mxu0 0
      %314 = vmatpush.bf16.xpose.msra.mxu0 0
      %315 = vmatpush.bf16.xpose.msra.mxu0 0
      %316 = vmatpush.bf16.xpose.msra.mxu0 0
      %317 = vmatpush.bf16.xpose.msra.mxu0 %v309
      %318 = vmatpush.bf16.xpose.msra.mxu0 %v306
      %319 = vmatmul.bf16.gmra.mxu0 %v300
      %v320 = vpop.f32.mrf.mxu0
      %v321 = vadd.f32 0.0, %v320
      %v322 = vpop.f32.mrf.mxu0
      %v323 = vadd.f32 0.0, %v322
      %324 = vmatmul.bf16.gmra.mxu0 %v303
      %v325 = vpop.f32.mrf.mxu0
      %v326 = vadd.f32 0.0, %v325
      %v327 = vpop.f32.mrf.mxu0
      %328 = vdwg.mxu0
      %v329 = vmul.f32 %v321, 0.35355338
      %v330 = vmul.f32 %v323, 0.35355338
      %v331 = vmul.f32 %v326, 0.35355338
      %vm332 = vcmask 138240
      %v333 = vsel %vm332, %v329, -inf
      %334 = vmax.xlane.f32.xlu0 %v333
      %v335 = vpop.xlane.xlu0 %334
      %v336 = vsel %vm332, %v330, -inf
      %337 = vmax.xlane.f32.xlu0 %v336
      %v338 = vpop.xlane.xlu0 %337
      %vm339 = vcmask 131072
      %v340 = vsel %vm339, %v331, -inf
      %341 = vmax.xlane.f32.xlu0 %v340
      %v342 = vpop.xlane.xlu0 %341
      %v343 = vsub.f32 %v329, %v335
      %v344 = vsub.f32 %v330, %v338
      %v345 = vsub.f32 %v331, %v342
      %v346 = vmul.f32 %v343, 1.442695
      %v347 = vpow.pop %v346
      %v348 = vmul.f32 %v344, 1.442695
      %v349 = vpow.pop %v348
      %v350 = vmul.f32 %v345, 1.442695
      %v351 = vpow.pop %v350
      %v352 = vsel %vm332, %v347, 0.0
      %353 = vadd.xlane.f32.xlu0 %v352
      %v354 = vpop.xlane.xlu0 %353
      %v355 = vsel %vm332, %v349, 0.0
      %356 = vadd.xlane.f32.xlu0 %v355
      %v357 = vpop.xlane.xlu0 %356
      %v358 = vsel %vm339, %v351, 0.0
      %359 = vadd.xlane.f32.xlu0 %v358
      %v360 = vpop.xlane.xlu0 %359
      %v361 = vrcp.pop %v354
      %v362 = vrcp.pop %v357
      %v363 = vrcp.pop %v360
      %v364 = vmul.f32 %v347, %v361
      %v365 = vmul.f32 %v349, %v362
      %v366 = vmul.f32 %v351, %v363
      %v367 = vpack.c.bf16 %v365, %v364
      %v368 = vpack.c.bf16 %v366, %v366
      %v369 = vld [vmem:[%s265] sm:$0xf]
      %v370 = vld [vmem:[%s265 + $0x4] sm:$0xf]
      %v371 = vld [vmem:[%s265 + $0x8] sm:$0x1]
      %v375 = vunpack.c.l.b16 %v369
      %v376 = vunpack.c.l.b16 %v370
      %v377 = vunpack.c.l.b16 %v371
      %v378 = vpack.c.b16 %v376, %v375
      %v379 = vpack.c.b16 %v377, %v377
      %v382 = vsel %vm332, %v367, 0
      %v385 = vsel %vm332, %v368, 0
      %vm387 = vcmask 1040384
      %v388 = vsel 0, 4294967295, 65535
      %v389 = vsel %vm387, %v388, 0
      %v391 = vand.u32 %v379, %v389
      %393 = vmatpush.bf16.msra.mxu0 0
      %394 = vmatpush.bf16.msra.mxu0 0
      %395 = vmatpush.bf16.msra.mxu0 0
      %396 = vmatpush.bf16.msra.mxu0 0
      %397 = vmatpush.bf16.msra.mxu0 0
      %398 = vmatpush.bf16.msra.mxu0 0
      %399 = vmatpush.bf16.msra.mxu0 %v391
      %400 = vmatpush.bf16.msra.mxu0 %v378
      %401 = vmatmul.bf16.gmra.mxu0 %v382
      %v402 = vpop.f32.mrf.mxu0
      %v403 = vadd.f32 0.0, %v402
      %v404 = vpop.f32.mrf.mxu0
      %v405 = vadd.f32 0.0, %v404
      %406 = vmatmul.bf16.gmra.mxu0 %v385
      %v407 = vpop.f32.mrf.mxu0
      %v408 = vadd.f32 0.0, %v407
      %v409 = vpop.f32.mrf.mxu0
      %410 = vdwg.mxu0
      %v411 = vpack.c.bf16 %v403, %v403
      %v412 = vpack.c.bf16 %v405, %v405
      %v413 = vpack.c.bf16 %v408, %v408
      %vm414 = vcmask 60416
      %415 = vst.msk [vmem:[%s274] sm:$0xf] %vm414, %v411
      %416 = vst.msk [vmem:[%s274 + $0x4] sm:$0xf] %vm414, %v412
      %vm417 = vcmask 57344
      %vm418 = vsmask.f32 256
      %vm419 = vmand %vm417, %vm418
      %v420 = vld [vmem:[%s274 + $0x8] sm:$0x1]
      %v421 = vsel %vm419, %v413, %v420
      %422 = vst [vmem:[%s274 + $0x8] sm:$0x1] %v421
      %p423 = scmp.lt.s32.totalorder %s18, 1
      %s424 = scalar_select %p423, %s18, 1
      %p425 = scmp.lt.s32.totalorder %s19, 3
      %s426 = scalar_select %p425, %s19, 3
      %s427 = smul.addr %s426, 3
      %s428 = smul.addr %s424, 12
      %s429 = sadd.s32 %s427, %s428
      %s430 = smul.addr %s429, 4
      %s431 = scalar_lea.vmem %s3, %s430
      // Predicated region
      $region33: #{vit_forward.14} parent=31 // pred_check
        %p432 = pneg %p130
      $region34: #{vit_forward.14} parent=31 // pred_check_branch
        %434 = sbr.rel (%p432) target = $region36
      $region35: #{vit_forward.14} parent=31 // pred_region
        _
      $region36: #{vit_forward.14} parent=31 // pred_fallthru
        _
    $region32: #{vit_forward.14} parent=5 // pred_fallthru
      _
    %p435 = scmp.le.s32.totalorder 2, %s9
    // Predicated region
    $region37: #{vit_forward.14} parent=5 // pred_check
      %p436 = pneg %p435
    $region38: #{vit_forward.14} parent=5 // pred_check_branch
      %438 = sbr.rel (%p436) target = $region40
    $region39: #{vit_forward.14} parent=5 // pred_region
      %s439 = ssub.s32 %s9, 2
      // Predicated region
      $region41: #{vit_forward.14} parent=39 // pred_check
        %p440 = pneg %p136
      $region42: #{vit_forward.14} parent=39 // pred_check_branch
        %442 = sbr.rel (%p440) target = $region44
      $region43: #{vit_forward.14} parent=39 // pred_region
        %p443 = scmp.lt.s32.totalorder %s20, 1
        %s444 = scalar_select %p443, %s20, 1
        %p445 = scmp.lt.s32.totalorder %s21, 3
        %s446 = scalar_select %p445, %s21, 3
        %s447 = smul.addr %s446, 3
        %s448 = smul.addr %s444, 12
        %s449 = sadd.s32 %s447, %s448
        %s450 = smul.addr %s449, 4
        %s451 = scalar_lea.vmem %s3, %s450
      $region44: #{vit_forward.14} parent=39 // pred_fallthru
        _
    $region40: #{vit_forward.14} parent=5 // pred_fallthru
      _
  $region6: #{vit_forward.14} parent=0 // loop_footer
    %s13 = sadd.s32 1, %s9
  $region7: #{vit_forward.14} parent=0 // loop_footer_branch
    %8 = sbr.rel target = $region3
  $region8: #{vit_forward.14} parent=0 // loop_exit
    _

// kernel: vit_forward.20
$region0: #{vit_forward.20}
  #allocation0 [shape = 'u32[]', space=smem, size = 0x4, offset = 0x4, fixed_abs, tag = 'smem constant byte address 0x4 - core index']
  #allocation1 [shape = 'u32[72,128]{1,0:T(1,128)}', space=vmem, size = 0x9000, scoped, tag = 'internal scratch']
  %s0 = inlined_call_operand.vmem [shape: f32[2,17,32], index: 0, kind: input, shape index: {}]
  %s1 = inlined_call_operand.vmem [shape: f32[1,32], index: 1, kind: input, shape index: {}]
  %s2 = inlined_call_operand.vmem [shape: f32[1,32], index: 2, kind: input, shape index: {}]
  %s3 = inlined_call_operand.vmem [shape: bf16[32,16], index: 3, kind: input, shape index: {}]
  %s4 = inlined_call_operand.vmem [shape: f32[2,17,16], index: 4, kind: output, shape index: {}]
  %s5 = sld [smem:[#allocation0]]
  $region49: #{vit_forward.20} parent=0
    _
  %s7 = ssub.s32 1, %s5
  %s8 = scalar_select 0, %s7, %s5
  loop: start=0, step=1, limit=4
  $region2: #{vit_forward.20} parent=0 // loop_pre_header
    _
  $region3: #{vit_forward.20} parent=0 // loop_header
    %s10 = sphi 0, %s14
    %p11 = scmp.ge.s32.totalorder %s10, 4
    %s20 = sphi 0, %s22
    %s23 = sphi 0, %s20
    %s24 = sphi 0, %s23
    %s40 = sphi 0, %s24
    %s44 = sphi 0, %s44
    %s46 = sphi 0, %s44
    %s47 = sphi 0, %s46
    %s61 = sphi 0, %s47
    %s65 = sphi 0, %s65
    %s67 = sphi 0, %s65
    %s68 = sphi 0, %s67
    %s82 = sphi 0, %s68
    %s86 = sphi 0, %s86
    %s88 = sphi 0, %s86
    %s89 = sphi 0, %s88
    %s103 = sphi 0, %s89
    %s109 = sphi 0, %s111
    %s112 = sphi 0, %s109
    %s113 = sphi 0, %s112
    %s129 = sphi 0, %s113
  $region4: #{vit_forward.20} parent=0 // loop_header_branch
    %13 = sbr.rel (%p11) target = $region8
  $region5: #{vit_forward.20} parent=0 // loop_body
    %s15 = ssub.s32 %s10, 1
    %s16 = ssub.s32 %s10, 2
    %s17 = sadd.s32 %s10, 1
    %s18 = ssub.s32 %s10, %s17
    %p19 = scmp.eq.s32.totalorder %s18, 0
    %s21 = sadd.s32 %s20, 1
    %s22 = scalar_select %p19, %s20, %s21
    %p25 = pneg %p19
    %p26 = scmp.eq.s32.totalorder %s10, 1
    %p27 = por %p25, %p26
    %p28 = scmp.ne.s32.totalorder %s20, %s23
    %p29 = scmp.eq.s32.totalorder %s10, 0
    %p30 = por %p28, %p29
    %p31 = scmp.ne.s32.totalorder %s20, %s23
    %p32 = scmp.eq.s32.totalorder %s15, 1
    %p33 = por %p31, %p32
    %p34 = scmp.ne.s32.totalorder %s23, %s24
    %p35 = scmp.eq.s32.totalorder %s15, 0
    %p36 = por %p34, %p35
    %p37 = scmp.ne.s32.totalorder %s23, %s24
    %p38 = scmp.eq.s32.totalorder %s16, 1
    %p39 = por %p37, %p38
    %p41 = scmp.ne.s32.totalorder %s24, %s40
    %p42 = scmp.eq.s32.totalorder %s16, 0
    %p43 = por %p41, %p42
    %s45 = sadd.s32 %s44, 1
    %p48 = scmp.eq.s32.totalorder %s10, 1
    %p49 = scmp.ne.s32.totalorder %s44, %s46
    %p50 = scmp.eq.s32.totalorder %s10, 0
    %p51 = por %p49, %p50
    %p52 = scmp.ne.s32.totalorder %s44, %s46
    %p53 = scmp.eq.s32.totalorder %s15, 1
    %p54 = por %p52, %p53
    %p55 = scmp.ne.s32.totalorder %s46, %s47
    %p56 = scmp.eq.s32.totalorder %s15, 0
    %p57 = por %p55, %p56
    %p58 = scmp.ne.s32.totalorder %s46, %s47
    %p59 = scmp.eq.s32.totalorder %s16, 1
    %p60 = por %p58, %p59
    %p62 = scmp.ne.s32.totalorder %s47, %s61
    %p63 = scmp.eq.s32.totalorder %s16, 0
    %p64 = por %p62, %p63
    %s66 = sadd.s32 %s65, 1
    %p69 = scmp.eq.s32.totalorder %s10, 1
    %p70 = scmp.ne.s32.totalorder %s65, %s67
    %p71 = scmp.eq.s32.totalorder %s10, 0
    %p72 = por %p70, %p71
    %p73 = scmp.ne.s32.totalorder %s65, %s67
    %p74 = scmp.eq.s32.totalorder %s15, 1
    %p75 = por %p73, %p74
    %p76 = scmp.ne.s32.totalorder %s67, %s68
    %p77 = scmp.eq.s32.totalorder %s15, 0
    %p78 = por %p76, %p77
    %p79 = scmp.ne.s32.totalorder %s67, %s68
    %p80 = scmp.eq.s32.totalorder %s16, 1
    %p81 = por %p79, %p80
    %p83 = scmp.ne.s32.totalorder %s68, %s82
    %p84 = scmp.eq.s32.totalorder %s16, 0
    %p85 = por %p83, %p84
    %s87 = sadd.s32 %s86, 1
    %p90 = scmp.eq.s32.totalorder %s10, 1
    %p91 = scmp.ne.s32.totalorder %s86, %s88
    %p92 = scmp.eq.s32.totalorder %s10, 0
    %p93 = por %p91, %p92
    %p94 = scmp.ne.s32.totalorder %s86, %s88
    %p95 = scmp.eq.s32.totalorder %s15, 1
    %p96 = por %p94, %p95
    %p97 = scmp.ne.s32.totalorder %s88, %s89
    %p98 = scmp.eq.s32.totalorder %s15, 0
    %p99 = por %p97, %p98
    %p100 = scmp.ne.s32.totalorder %s88, %s89
    %p101 = scmp.eq.s32.totalorder %s16, 1
    %p102 = por %p100, %p101
    %p104 = scmp.ne.s32.totalorder %s89, %s103
    %p105 = scmp.eq.s32.totalorder %s16, 0
    %p106 = por %p104, %p105
    %s107 = ssub.s32 %s10, %s17
    %p108 = scmp.eq.s32.totalorder %s107, 0
    %s110 = sadd.s32 %s109, 1
    %s111 = scalar_select %p108, %s109, %s110
    %p114 = pneg %p108
    %p115 = scmp.eq.s32.totalorder %s10, 1
    %p116 = por %p114, %p115
    %p117 = scmp.ne.s32.totalorder %s109, %s112
    %p118 = scmp.eq.s32.totalorder %s10, 0
    %p119 = por %p117, %p118
    %p120 = scmp.ne.s32.totalorder %s109, %s112
    %p121 = scmp.eq.s32.totalorder %s15, 1
    %p122 = por %p120, %p121
    %p123 = scmp.ne.s32.totalorder %s112, %s113
    %p124 = scmp.eq.s32.totalorder %s15, 0
    %p125 = por %p123, %p124
    %p126 = scmp.ne.s32.totalorder %s112, %s113
    %p127 = scmp.eq.s32.totalorder %s16, 1
    %p128 = por %p126, %p127
    %p130 = scmp.ne.s32.totalorder %s113, %s129
    %p131 = scmp.eq.s32.totalorder %s16, 0
    %p132 = por %p130, %p131
    %p133 = scmp.le.s32.totalorder 1, %s10
    %p134 = scmp.lt.s32.totalorder %s10, 3
    %p135 = pnand %p133, %p134
    %p136 = pneg %p135
    // Predicated region
    $region9: #{vit_forward.20} parent=5 // pred_check
      _
    $region10: #{vit_forward.20} parent=5 // pred_check_branch
      %138 = sbr.rel (%p135) target = $region12
    $region11: #{vit_forward.20} parent=5 // pred_region
      %s139 = ssub.s32 %s10, 1
      // Predicated region
      $region13: #{vit_forward.20} parent=11 // pred_check
        %p140 = pneg %p57
      $region14: #{vit_forward.20} parent=11 // pred_check_branch
        %142 = sbr.rel (%p140) target = $region16
      $region15: #{vit_forward.20} parent=11 // pred_region
        _
      $region16: #{vit_forward.20} parent=11 // pred_fallthru
        _
      // Predicated region
      $region17: #{vit_forward.20} parent=11 // pred_check
        %p143 = pneg %p78
      $region18: #{vit_forward.20} parent=11 // pred_check_branch
        %145 = sbr.rel (%p143) target = $region20
      $region19: #{vit_forward.20} parent=11 // pred_region
        _
      $region20: #{vit_forward.20} parent=11 // pred_fallthru
        _
      // Predicated region
      $region21: #{vit_forward.20} parent=11 // pred_check
        %p146 = pneg %p99
      $region22: #{vit_forward.20} parent=11 // pred_check_branch
        %148 = sbr.rel (%p146) target = $region24
      $region23: #{vit_forward.20} parent=11 // pred_region
        _
      $region24: #{vit_forward.20} parent=11 // pred_fallthru
        _
    $region12: #{vit_forward.20} parent=5 // pred_fallthru
      _
    %p149 = scmp.lt.s32.totalorder %s10, 2
    // Predicated region
    $region25: #{vit_forward.20} parent=5 // pred_check
      %p150 = pneg %p149
    $region26: #{vit_forward.20} parent=5 // pred_check_branch
      %152 = sbr.rel (%p150) target = $region28
    $region27: #{vit_forward.20} parent=5 // pred_region
      // Predicated region
      $region29: #{vit_forward.20} parent=27 // pred_check
        %p153 = pneg %p30
      $region30: #{vit_forward.20} parent=27 // pred_check_branch
        %155 = sbr.rel (%p153) target = $region32
      $region31: #{vit_forward.20} parent=27 // pred_region
        %p156 = scmp.lt.s32.totalorder %s10, 1
        %s157 = scalar_select %p156, %s10, 1
        %s158 = smul.addr %s157, 3
        %s159 = smul.addr %s158, 8
        %s160 = scalar_lea.vmem %s0, %s159
      $region32: #{vit_forward.20} parent=27 // pred_fallthru
        _
    $region28: #{vit_forward.20} parent=5 // pred_fallthru
      _
    %p161 = scmp.le.s32.totalorder 1, %s10
    %p162 = scmp.lt.s32.totalorder %s10, 3
    %p163 = pnand %p161, %p162
    %p164 = pneg %p163
    // Predicated region
    $region33: #{vit_forward.20} parent=5 // pred_check
      _
    $region34: #{vit_forward.20} parent=5 // pred_check_branch
      %166 = sbr.rel (%p163) target = $region36
    $region35: #{vit_forward.20} parent=5 // pred_region
      %s167 = ssub.s32 %s10, 1
      %p168 = scmp.lt.s32.totalorder %s15, 1
      %s169 = scalar_select %p168, %s15, 1
      %s170 = smul.addr %s169, 3
      %s171 = smul.addr %s170, 8
      %s172 = scalar_lea.vmem %s0, %s171
      %p173 = pneg %p36
      %p174 = pneg %p33
      %p175 = pneg %p57
      %p176 = pneg %p54
      %p177 = pneg %p78
      %p178 = pneg %p75
      %p179 = pneg %p99
      %p180 = pneg %p96
      %p181 = pneg %p125
      %p182 = pneg %p122
      %p183 = scmp.lt.s32.totalorder %s15, 1
      %s184 = scalar_select %p183, %s15, 1
      %s185 = smul.addr %s184, 3
      %s186 = smul.addr %s185, 8
      %s187 = scalar_lea.vmem %s4, %s186
      %p188 = scmp.lt.s32.totalorder %s15, 1
      %s189 = scalar_select %p188, %s15, 1
      %s190 = smul.addr %s189, 3
      %s191 = smul.addr %s190, 8
      %s192 = scalar_lea.vmem %s0, %s191
      %p193 = scmp.lt.s32.totalorder %s15, 1
      %s194 = scalar_select %p193, %s15, 1
      %s195 = smul.addr %s194, 3
      %s196 = smul.addr %s195, 8
      %s197 = scalar_lea.vmem %s4, %s196
      %v199 = vld [vmem:[%s192] sm:$0xff]
      %v200 = vld [vmem:[%s192 + $0x8] sm:$0xff]
      %v201 = vld [vmem:[%s192 + $0x10] sm:$0x1]
      %v202 = vld [vmem:[%s1] sm:$0x1]
      %v203 = vld [vmem:[%s2] sm:$0x1]
      %vm204 = vcmask 261120
      %v205 = vsel %vm204, %v199, 0.0
      %206 = vadd.xlane.f32.xlu0 %v205
      %v207 = vpop.xlane.xlu0 %206
      %v208 = vsel %vm204, %v200, 0.0
      %209 = vadd.xlane.f32.xlu0 %v208
      %v210 = vpop.xlane.xlu0 %209
      %vm211 = vcmask 253952
      %v212 = vsel %vm211, %v201, 0.0
      %213 = vadd.xlane.f32.xlu0 %v212
      %v214 = vpop.xlane.xlu0 %213
      %v215 = vrcp.pop 32.0
      %v216 = vmul.f32 32.0, %v215
      %v217 = vsub.f32 1.0, %v216
      %v218 = vmul.f32 %v215, %v217
      %v219 = vadd.f32 %v215, %v218
      %vm220 = vweird.f32 %v215
      %v221 = vsel %vm220, %v215, %v219
      %v222 = vmul.f32 %v207, %v221
      %v223 = vmul.f32 %v210, %v221
      %v224 = vmul.f32 %v214, %v221
      %v225 = vsub.f32 %v199, %v222
      %v226 = vsub.f32 %v200, %v223
      %v227 = vsub.f32 %v201, %v224
      %v228 = vmul.f32 %v225, %v225
      %v229 = vmul.f32 %v226, %v226
      %v230 = vmul.f32 %v227, %v227
      %v231 = vsel %vm204, %v228, 0.0
      %232 = vadd.xlane.f32.xlu0 %v231
      %v233 = vpop.xlane.xlu0 %232
      %v234 = vsel %vm204, %v229, 0.0
      %235 = vadd.xlane.f32.xlu0 %v234
      %v236 = vpop.xlane.xlu0 %235
      %v237 = vsel %vm211, %v230, 0.0
      %238 = vadd.xlane.f32.xlu0 %v237
      %v239 = vpop.xlane.xlu0 %238
      %v240 = vmul.f32 %v233, %v221
      %v241 = vmul.f32 %v236, %v221
      %v242 = vmul.f32 %v239, %v221
      %v243 = vadd.f32 %v240, 1e-05
      %v244 = vadd.f32 %v241, 1e-05
      %v245 = vadd.f32 %v242, 1e-05
      %v246 = vrsqrt.pop %v243
      %v247 = vmul.f32 %v246, %v243
      %v248 = vmul.f32 %v247, %v246
      %v249 = vmul.f32 0.5, %v248
      %v250 = vsub.f32 1.5, %v249
      %v251 = vmul.f32 %v246, %v250
      %vm252 = vweird.f32 %v243
      %vm253 = vweird.f32 %v246
      %vm254 = vmor %vm252, %vm253
      %v255 = vsel %vm254, %v246, %v251
      %v256 = vrsqrt.pop %v244
      %v257 = vmul.f32 %v256, %v244
      %v258 = vmul.f32 %v257, %v256
      %v259 = vmul.f32 0.5, %v258
      %v260 = vsub.f32 1.5, %v259
      %v261 = vmul.f32 %v256, %v260
      %vm262 = vweird.f32 %v244
      %vm263 = vweird.f32 %v256
      %vm264 = vmor %vm262, %vm263
      %v265 = vsel %vm264, %v256, %v261
      %v266 = vrsqrt.pop %v245
      %v267 = vmul.f32 %v266, %v245
      %v268 = vmul.f32 %v267, %v266
      %v269 = vmul.f32 0.5, %v268
      %v270 = vsub.f32 1.5, %v269
      %v271 = vmul.f32 %v266, %v270
      %vm272 = vweird.f32 %v245
      %vm273 = vweird.f32 %v266
      %vm274 = vmor %vm272, %vm273
      %v275 = vsel %vm274, %v266, %v271
      %v276 = vmul.f32 %v225, %v255
      %v277 = vmul.f32 %v226, %v265
      %v278 = vmul.f32 %v227, %v275
      %v280 = vperm.slane %v202, 0
      %v282 = vmul.f32 %v276, %v280
      %v283 = vmul.f32 %v277, %v280
      %v284 = vmul.f32 %v278, %v280
      %v286 = vperm.slane %v203, 0
      %v288 = vadd.f32 %v282, %v286
      %v289 = vadd.f32 %v283, %v286
      %v290 = vadd.f32 %v284, %v286
      %v291 = vpack.c.bf16 %v289, %v288
      %v292 = vpack.c.bf16 %v290, %v290
      %v293 = vld [vmem:[%s3] sm:$0xf]
      %v294 = vld [vmem:[%s3 + $0x4] sm:$0xf]
      %v295 = vld [vmem:[%s3 + $0x8] sm:$0xf]
      %v296 = vld [vmem:[%s3 + $0xc] sm:$0xf]
      %v301 = vunpack.c.l.b16 %v293
      %v302 = vunpack.c.l.b16 %v294
      %v303 = vunpack.c.l.b16 %v295
      %v304 = vunpack.c.l.b16 %v296
      %v305 = vpack.c.b16 %v302, %v301
      %v306 = vpack.c.b16 %v304, %v303
      %v310 = vsel %vm204, %v291, 0
      %v313 = vsel %vm204, %v292, 0
      %315 = vmatpush.bf16.msra.mxu0 0
      %316 = vmatpush.bf16.msra.mxu0 0
      %317 = vmatpush.bf16.msra.mxu0 0
      %318 = vmatpush.bf16.msra.mxu0 0
      %319 = vmatpush.bf16.msra.mxu0 0
      %320 = vmatpush.bf16.msra.mxu0 0
      %321 = vmatpush.bf16.msra.mxu0 %v306
      %322 = vmatpush.bf16.msra.mxu0 %v305
      %323 = vmatmul.bf16.gmra.mxu0 %v310
      %v324 = vpop.f32.mrf.mxu0
      %v325 = vadd.f32 0.0, %v324
      %v326 = vpop.f32.mrf.mxu0
      %v327 = vadd.f32 0.0, %v326
      %328 = vmatmul.bf16.gmra.mxu0 %v313
      %v329 = vpop.f32.mrf.mxu0
      %v330 = vadd.f32 0.0, %v329
      %v331 = vpop.f32.mrf.mxu0
      %332 = vdwg.mxu0
      %vm333 = vcmask 130048
      %334 = vst.msk [vmem:[%s197] sm:$0xff] %vm333, %v325
      %335 = vst.msk [vmem:[%s197 + $0x8] sm:$0xff] %vm333, %v327
      %vm336 = vcmask 122880
      %337 = vst.msk [vmem:[%s197 + $0x10] sm:$0x1] %vm336, %v330
      %p338 = scmp.lt.s32.totalorder %s15, 1
      %s339 = scalar_select %p338, %s15, 1
      %s340 = smul.addr %s339, 3
      %s341 = smul.addr %s340, 8
      %s342 = scalar_lea.vmem %s4, %s341
      // Predicated region
      $region37: #{vit_forward.20} parent=35 // pred_check
        %p343 = pneg %p122
      $region38: #{vit_forward.20} parent=35 // pred_check_branch
        %345 = sbr.rel (%p343) target = $region40
      $region39: #{vit_forward.20} parent=35 // pred_region
        _
      $region40: #{vit_forward.20} parent=35 // pred_fallthru
        _
    $region36: #{vit_forward.20} parent=5 // pred_fallthru
      _
    %p346 = scmp.le.s32.totalorder 2, %s10
    // Predicated region
    $region41: #{vit_forward.20} parent=5 // pred_check
      %p347 = pneg %p346
    $region42: #{vit_forward.20} parent=5 // pred_check_branch
      %349 = sbr.rel (%p347) target = $region44
    $region43: #{vit_forward.20} parent=5 // pred_region
      %s350 = ssub.s32 %s10, 2
      // Predicated region
      $region45: #{vit_forward.20} parent=43 // pred_check
        %p351 = pneg %p128
      $region46: #{vit_forward.20} parent=43 // pred_check_branch
        %353 = sbr.rel (%p351) target = $region48
      $region47: #{vit_forward.20} parent=43 // pred_region
        %p354 = scmp.lt.s32.totalorder %s16, 1
        %s355 = scalar_select %p354, %s16, 1
        %s356 = smul.addr %s355, 3
        %s357 = smul.addr %s356, 8
        %s358 = scalar_lea.vmem %s4, %s357
      $region48: #{vit_forward.20} parent=43 // pred_fallthru
        _
    $region44: #{vit_forward.20} parent=5 // pred_fallthru
      _
  $region6: #{vit_forward.20} parent=0 // loop_footer
    %s14 = sadd.s32 1, %s10
  $region7: #{vit_forward.20} parent=0 // loop_footer_branch
    %9 = sbr.rel target = $region3
  $region8: #{vit_forward.20} parent=0 // loop_exit
    _

// kernel: vit_forward.15
$region0: #{vit_forward.15}
  #allocation0 [shape = 'u32[]', space=smem, size = 0x4, offset = 0x4, fixed_abs, tag = 'smem constant byte address 0x4 - core index']
  #allocation1 [shape = 'u32[72,128]{1,0:T(1,128)}', space=vmem, size = 0x9000, scoped, tag = 'internal scratch']
  %s0 = inlined_call_operand.vmem [shape: f32[2,17,32], index: 0, kind: input, shape index: {}]
  %s1 = inlined_call_operand.vmem [shape: bf16[2,17,32], index: 1, kind: input, shape index: {}]
  %s2 = inlined_call_operand.vmem [shape: bf16[32,32], index: 2, kind: input, shape index: {}]
  %s3 = inlined_call_operand.vmem [shape: f32[1,32], index: 3, kind: input, shape index: {}]
  %s4 = inlined_call_operand.vmem [shape: f32[1,32], index: 4, kind: input, shape index: {}]
  %s5 = inlined_call_operand.vmem [shape: f32[1,32], index: 5, kind: input, shape index: {}]
  %s6 = inlined_call_operand.vmem [shape: bf16[32,128], index: 6, kind: input, shape index: {}]
  %s7 = inlined_call_operand.vmem [shape: f32[1,128], index: 7, kind: input, shape index: {}]
  %s8 = inlined_call_operand.vmem [shape: bf16[128,32], index: 8, kind: input, shape index: {}]
  %s9 = inlined_call_operand.vmem [shape: f32[1,32], index: 9, kind: input, shape index: {}]
  %s10 = inlined_call_operand.vmem [shape: f32[2,17,32], index: 10, kind: output, shape index: {}]
  %s11 = sld [smem:[#allocation0]]
  $region73: #{vit_forward.15} parent=0
    _
  %s13 = ssub.s32 1, %s11
  %s14 = scalar_select 0, %s13, %s11
  loop: start=0, step=1, limit=4
  $region2: #{vit_forward.15} parent=0 // loop_pre_header
    _
  $region3: #{vit_forward.15} parent=0 // loop_header
    %s16 = sphi 0, %s20
    %p17 = scmp.ge.s32.totalorder %s16, 4
    %s26 = sphi 0, %s28
    %s29 = sphi 0, %s26
    %s30 = sphi 0, %s29
    %s46 = sphi 0, %s30
    %s52 = sphi 0, %s54
    %s55 = sphi 0, %s52
    %s56 = sphi 0, %s55
    %s72 = sphi 0, %s56
    %s76 = sphi 0, %s76
    %s78 = sphi 0, %s76
    %s79 = sphi 0, %s78
    %s93 = sphi 0, %s79
    %s97 = sphi 0, %s97
    %s99 = sphi 0, %s97
    %s100 = sphi 0, %s99
    %s114 = sphi 0, %s100
    %s118 = sphi 0, %s118
    %s120 = sphi 0, %s118
    %s121 = sphi 0, %s120
    %s135 = sphi 0, %s121
    %s139 = sphi 0, %s139
    %s141 = sphi 0, %s139
    %s142 = sphi 0, %s141
    %s156 = sphi 0, %s142
    %s160 = sphi 0, %s160
    %s162 = sphi 0, %s160
    %s163 = sphi 0, %s162
    %s177 = sphi 0, %s163
    %s181 = sphi 0, %s181
    %s183 = sphi 0, %s181
    %s184 = sphi 0, %s183
    %s198 = sphi 0, %s184
    %s202 = sphi 0, %s202
    %s204 = sphi 0, %s202
    %s205 = sphi 0, %s204
    %s219 = sphi 0, %s205
    %s223 = sphi 0, %s223
    %s225 = sphi 0, %s223
    %s226 = sphi 0, %s225
    %s240 = sphi 0, %s226
    %s246 = sphi 0, %s248
    %s249 = sphi 0, %s246
    %s250 = sphi 0, %s249
    %s266 = sphi 0, %s250
  $region4: #{vit_forward.15} parent=0 // loop_header_branch
    %19 = sbr.rel (%p17) target = $region8
  $region5: #{vit_forward.15} parent=0 // loop_body
    %s21 = ssub.s32 %s16, 1
    %s22 = ssub.s32 %s16, 2
    %s23 = sadd.s32 %s16, 1
    %s24 = ssub.s32 %s16, %s23
    %p25 = scmp.eq.s32.totalorder %s24, 0
    %s27 = sadd.s32 %s26, 1
    %s28 = scalar_select %p25, %s26, %s27
    %p31 = pneg %p25
    %p32 = scmp.eq.s32.totalorder %s16, 1
    %p33 = por %p31, %p32
    %p34 = scmp.ne.s32.totalorder %s26, %s29
    %p35 = scmp.eq.s32.totalorder %s16, 0
    %p36 = por %p34, %p35
    %p37 = scmp.ne.s32.totalorder %s26, %s29
    %p38 = scmp.eq.s32.totalorder %s21, 1
    %p39 = por %p37, %p38
    %p40 = scmp.ne.s32.totalorder %s29, %s30
    %p41 = scmp.eq.s32.totalorder %s21, 0
    %p42 = por %p40, %p41
    %p43 = scmp.ne.s32.totalorder %s29, %s30
    %p44 = scmp.eq.s32.totalorder %s22, 1
    %p45 = por %p43, %p44
    %p47 = scmp.ne.s32.totalorder %s30, %s46
    %p48 = scmp.eq.s32.totalorder %s22, 0
    %p49 = por %p47, %p48
    %s50 = ssub.s32 %s16, %s23
    %p51 = scmp.eq.s32.totalorder %s50, 0
    %s53 = sadd.s32 %s52, 1
    %s54 = scalar_select %p51, %s52, %s53
    %p57 = pneg %p51
    %p58 = scmp.eq.s32.totalorder %s16, 1
    %p59 = por %p57, %p58
    %p60 = scmp.ne.s32.totalorder %s52, %s55
    %p61 = scmp.eq.s32.totalorder %s16, 0
    %p62 = por %p60, %p61
    %p63 = scmp.ne.s32.totalorder %s52, %s55
    %p64 = scmp.eq.s32.totalorder %s21, 1
    %p65 = por %p63, %p64
    %p66 = scmp.ne.s32.totalorder %s55, %s56
    %p67 = scmp.eq.s32.totalorder %s21, 0
    %p68 = por %p66, %p67
    %p69 = scmp.ne.s32.totalorder %s55, %s56
    %p70 = scmp.eq.s32.totalorder %s22, 1
    %p71 = por %p69, %p70
    %p73 = scmp.ne.s32.totalorder %s56, %s72
    %p74 = scmp.eq.s32.totalorder %s22, 0
    %p75 = por %p73, %p74
    %s77 = sadd.s32 %s76, 1
    %p80 = scmp.eq.s32.totalorder %s16, 1
    %p81 = scmp.ne.s32.totalorder %s76, %s78
    %p82 = scmp.eq.s32.totalorder %s16, 0
    %p83 = por %p81, %p82
    %p84 = scmp.ne.s32.totalorder %s76, %s78
    %p85 = scmp.eq.s32.totalorder %s21, 1
    %p86 = por %p84, %p85
    %p87 = scmp.ne.s32.totalorder %s78, %s79
    %p88 = scmp.eq.s32.totalorder %s21, 0
    %p89 = por %p87, %p88
    %p90 = scmp.ne.s32.totalorder %s78, %s79
    %p91 = scmp.eq.s32.totalorder %s22, 1
    %p92 = por %p90, %p91
    %p94 = scmp.ne.s32.totalorder %s79, %s93
    %p95 = scmp.eq.s32.totalorder %s22, 0
    %p96 = por %p94, %p95
    %s98 = sadd.s32 %s97, 1
    %p101 = scmp.eq.s32.totalorder %s16, 1
    %p102 = scmp.ne.s32.totalorder %s97, %s99
    %p103 = scmp.eq.s32.totalorder %s16, 0
    %p104 = por %p102, %p103
    %p105 = scmp.ne.s32.totalorder %s97, %s99
    %p106 = scmp.eq.s32.totalorder %s21, 1
    %p107 = por %p105, %p106
    %p108 = scmp.ne.s32.totalorder %s99, %s100
    %p109 = scmp.eq.s32.totalorder %s21, 0
    %p110 = por %p108, %p109
    %p111 = scmp.ne.s32.totalorder %s99, %s100
    %p112 = scmp.eq.s32.totalorder %s22, 1
    %p113 = por %p111, %p112
    %p115 = scmp.ne.s32.totalorder %s100, %s114
    %p116 = scmp.eq.s32.totalorder %s22, 0
    %p117 = por %p115, %p116
    %s119 = sadd.s32 %s118, 1
    %p122 = scmp.eq.s32.totalorder %s16, 1
    %p123 = scmp.ne.s32.totalorder %s118, %s120
    %p124 = scmp.eq.s32.totalorder %s16, 0
    %p125 = por %p123, %p124
    %p126 = scmp.ne.s32.totalorder %s118, %s120
    %p127 = scmp.eq.s32.totalorder %s21, 1
    %p128 = por %p126, %p127
    %p129 = scmp.ne.s32.totalorder %s120, %s121
    %p130 = scmp.eq.s32.totalorder %s21, 0
    %p131 = por %p129, %p130
    %p132 = scmp.ne.s32.totalorder %s120, %s121
    %p133 = scmp.eq.s32.totalorder %s22, 1
    %p134 = por %p132, %p133
    %p136 = scmp.ne.s32.totalorder %s121, %s135
    %p137 = scmp.eq.s32.totalorder %s22, 0
    %p138 = por %p136, %p137
    %s140 = sadd.s32 %s139, 1
    %p143 = scmp.eq.s32.totalorder %s16, 1
    %p144 = scmp.ne.s32.totalorder %s139, %s141
    %p145 = scmp.eq.s32.totalorder %s16, 0
    %p146 = por %p144, %p145
    %p147 = scmp.ne.s32.totalorder %s139, %s141
    %p148 = scmp.eq.s32.totalorder %s21, 1
    %p149 = por %p147, %p148
    %p150 = scmp.ne.s32.totalorder %s141, %s142
    %p151 = scmp.eq.s32.totalorder %s21, 0
    %p152 = por %p150, %p151
    %p153 = scmp.ne.s32.totalorder %s141, %s142
    %p154 = scmp.eq.s32.totalorder %s22, 1
    %p155 = por %p153, %p154
    %p157 = scmp.ne.s32.totalorder %s142, %s156
    %p158 = scmp.eq.s32.totalorder %s22, 0
    %p159 = por %p157, %p158
    %s161 = sadd.s32 %s160, 1
    %p164 = scmp.eq.s32.totalorder %s16, 1
    %p165 = scmp.ne.s32.totalorder %s160, %s162
    %p166 = scmp.eq.s32.totalorder %s16, 0
    %p167 = por %p165, %p166
    %p168 = scmp.ne.s32.totalorder %s160, %s162
    %p169 = scmp.eq.s32.totalorder %s21, 1
    %p170 = por %p168, %p169
    %p171 = scmp.ne.s32.totalorder %s162, %s163
    %p172 = scmp.eq.s32.totalorder %s21, 0
    %p173 = por %p171, %p172
    %p174 = scmp.ne.s32.totalorder %s162, %s163
    %p175 = scmp.eq.s32.totalorder %s22, 1
    %p176 = por %p174, %p175
    %p178 = scmp.ne.s32.totalorder %s163, %s177
    %p179 = scmp.eq.s32.totalorder %s22, 0
    %p180 = por %p178, %p179
    %s182 = sadd.s32 %s181, 1
    %p185 = scmp.eq.s32.totalorder %s16, 1
    %p186 = scmp.ne.s32.totalorder %s181, %s183
    %p187 = scmp.eq.s32.totalorder %s16, 0
    %p188 = por %p186, %p187
    %p189 = scmp.ne.s32.totalorder %s181, %s183
    %p190 = scmp.eq.s32.totalorder %s21, 1
    %p191 = por %p189, %p190
    %p192 = scmp.ne.s32.totalorder %s183, %s184
    %p193 = scmp.eq.s32.totalorder %s21, 0
    %p194 = por %p192, %p193
    %p195 = scmp.ne.s32.totalorder %s183, %s184
    %p196 = scmp.eq.s32.totalorder %s22, 1
    %p197 = por %p195, %p196
    %p199 = scmp.ne.s32.totalorder %s184, %s198
    %p200 = scmp.eq.s32.totalorder %s22, 0
    %p201 = por %p199, %p200
    %s203 = sadd.s32 %s202, 1
    %p206 = scmp.eq.s32.totalorder %s16, 1
    %p207 = scmp.ne.s32.totalorder %s202, %s204
    %p208 = scmp.eq.s32.totalorder %s16, 0
    %p209 = por %p207, %p208
    %p210 = scmp.ne.s32.totalorder %s202, %s204
    %p211 = scmp.eq.s32.totalorder %s21, 1
    %p212 = por %p210, %p211
    %p213 = scmp.ne.s32.totalorder %s204, %s205
    %p214 = scmp.eq.s32.totalorder %s21, 0
    %p215 = por %p213, %p214
    %p216 = scmp.ne.s32.totalorder %s204, %s205
    %p217 = scmp.eq.s32.totalorder %s22, 1
    %p218 = por %p216, %p217
    %p220 = scmp.ne.s32.totalorder %s205, %s219
    %p221 = scmp.eq.s32.totalorder %s22, 0
    %p222 = por %p220, %p221
    %s224 = sadd.s32 %s223, 1
    %p227 = scmp.eq.s32.totalorder %s16, 1
    %p228 = scmp.ne.s32.totalorder %s223, %s225
    %p229 = scmp.eq.s32.totalorder %s16, 0
    %p230 = por %p228, %p229
    %p231 = scmp.ne.s32.totalorder %s223, %s225
    %p232 = scmp.eq.s32.totalorder %s21, 1
    %p233 = por %p231, %p232
    %p234 = scmp.ne.s32.totalorder %s225, %s226
    %p235 = scmp.eq.s32.totalorder %s21, 0
    %p236 = por %p234, %p235
    %p237 = scmp.ne.s32.totalorder %s225, %s226
    %p238 = scmp.eq.s32.totalorder %s22, 1
    %p239 = por %p237, %p238
    %p241 = scmp.ne.s32.totalorder %s226, %s240
    %p242 = scmp.eq.s32.totalorder %s22, 0
    %p243 = por %p241, %p242
    %s244 = ssub.s32 %s16, %s23
    %p245 = scmp.eq.s32.totalorder %s244, 0
    %s247 = sadd.s32 %s246, 1
    %s248 = scalar_select %p245, %s246, %s247
    %p251 = pneg %p245
    %p252 = scmp.eq.s32.totalorder %s16, 1
    %p253 = por %p251, %p252
    %p254 = scmp.ne.s32.totalorder %s246, %s249
    %p255 = scmp.eq.s32.totalorder %s16, 0
    %p256 = por %p254, %p255
    %p257 = scmp.ne.s32.totalorder %s246, %s249
    %p258 = scmp.eq.s32.totalorder %s21, 1
    %p259 = por %p257, %p258
    %p260 = scmp.ne.s32.totalorder %s249, %s250
    %p261 = scmp.eq.s32.totalorder %s21, 0
    %p262 = por %p260, %p261
    %p263 = scmp.ne.s32.totalorder %s249, %s250
    %p264 = scmp.eq.s32.totalorder %s22, 1
    %p265 = por %p263, %p264
    %p267 = scmp.ne.s32.totalorder %s250, %s266
    %p268 = scmp.eq.s32.totalorder %s22, 0
    %p269 = por %p267, %p268
    %p270 = scmp.le.s32.totalorder 1, %s16
    %p271 = scmp.lt.s32.totalorder %s16, 3
    %p272 = pnand %p270, %p271
    %p273 = pneg %p272
    // Predicated region
    $region9: #{vit_forward.15} parent=5 // pred_check
      _
    $region10: #{vit_forward.15} parent=5 // pred_check_branch
      %275 = sbr.rel (%p272) target = $region12
    $region11: #{vit_forward.15} parent=5 // pred_region
      %s276 = ssub.s32 %s16, 1
      // Predicated region
      $region13: #{vit_forward.15} parent=11 // pred_check
        %p277 = pneg %p89
      $region14: #{vit_forward.15} parent=11 // pred_check_branch
        %279 = sbr.rel (%p277) target = $region16
      $region15: #{vit_forward.15} parent=11 // pred_region
        _
      $region16: #{vit_forward.15} parent=11 // pred_fallthru
        _
      // Predicated region
      $region17: #{vit_forward.15} parent=11 // pred_check
        %p280 = pneg %p110
      $region18: #{vit_forward.15} parent=11 // pred_check_branch
        %282 = sbr.rel (%p280) target = $region20
      $region19: #{vit_forward.15} parent=11 // pred_region
        _
      $region20: #{vit_forward.15} parent=11 // pred_fallthru
        _
      // Predicated region
      $region21: #{vit_forward.15} parent=11 // pred_check
        %p283 = pneg %p131
      $region22: #{vit_forward.15} parent=11 // pred_check_branch
        %285 = sbr.rel (%p283) target = $region24
      $region23: #{vit_forward.15} parent=11 // pred_region
        _
      $region24: #{vit_forward.15} parent=11 // pred_fallthru
        _
      // Predicated region
      $region25: #{vit_forward.15} parent=11 // pred_check
        %p286 = pneg %p152
      $region26: #{vit_forward.15} parent=11 // pred_check_branch
        %288 = sbr.rel (%p286) target = $region28
      $region27: #{vit_forward.15} parent=11 // pred_region
        _
      $region28: #{vit_forward.15} parent=11 // pred_fallthru
        _
      // Predicated region
      $region29: #{vit_forward.15} parent=11 // pred_check
        %p289 = pneg %p173
      $region30: #{vit_forward.15} parent=11 // pred_check_branch
        %291 = sbr.rel (%p289) target = $region32
      $region31: #{vit_forward.15} parent=11 // pred_region
        _
      $region32: #{vit_forward.15} parent=11 // pred_fallthru
        _
      // Predicated region
      $region33: #{vit_forward.15} parent=11 // pred_check
        %p292 = pneg %p194
      $region34: #{vit_forward.15} parent=11 // pred_check_branch
        %294 = sbr.rel (%p292) target = $region36
      $region35: #{vit_forward.15} parent=11 // pred_region
        _
      $region36: #{vit_forward.15} parent=11 // pred_fallthru
        _
      // Predicated region
      $region37: #{vit_forward.15} parent=11 // pred_check
        %p295 = pneg %p215
      $region38: #{vit_forward.15} parent=11 // pred_check_branch
        %297 = sbr.rel (%p295) target = $region40
      $region39: #{vit_forward.15} parent=11 // pred_region
        _
      $region40: #{vit_forward.15} parent=11 // pred_fallthru
        _
      // Predicated region
      $region41: #{vit_forward.15} parent=11 // pred_check
        %p298 = pneg %p236
      $region42: #{vit_forward.15} parent=11 // pred_check_branch
        %300 = sbr.rel (%p298) target = $region44
      $region43: #{vit_forward.15} parent=11 // pred_region
        _
      $region44: #{vit_forward.15} parent=11 // pred_fallthru
        _
    $region12: #{vit_forward.15} parent=5 // pred_fallthru
      _
    %p301 = scmp.lt.s32.totalorder %s16, 2
    // Predicated region
    $region45: #{vit_forward.15} parent=5 // pred_check
      %p302 = pneg %p301
    $region46: #{vit_forward.15} parent=5 // pred_check_branch
      %304 = sbr.rel (%p302) target = $region48
    $region47: #{vit_forward.15} parent=5 // pred_region
      // Predicated region
      $region49: #{vit_forward.15} parent=47 // pred_check
        %p305 = pneg %p36
      $region50: #{vit_forward.15} parent=47 // pred_check_branch
        %307 = sbr.rel (%p305) target = $region52
      $region51: #{vit_forward.15} parent=47 // pred_region
        %p308 = scmp.lt.s32.totalorder %s16, 1
        %s309 = scalar_select %p308, %s16, 1
        %s310 = smul.addr %s309, 3
        %s311 = smul.addr %s310, 8
        %s312 = scalar_lea.vmem %s0, %s311
      $region52: #{vit_forward.15} parent=47 // pred_fallthru
        _
      // Predicated region
      $region53: #{vit_forward.15} parent=47 // pred_check
        %p313 = pneg %p62
      $region54: #{vit_forward.15} parent=47 // pred_check_branch
        %315 = sbr.rel (%p313) target = $region56
      $region55: #{vit_forward.15} parent=47 // pred_region
        %p316 = scmp.lt.s32.totalorder %s16, 1
        %s317 = scalar_select %p316, %s16, 1
        %s318 = smul.addr %s317, 3
        %s319 = smul.addr %s318, 4
        %s320 = scalar_lea.vmem %s1, %s319
      $region56: #{vit_forward.15} parent=47 // pred_fallthru
        _
    $region48: #{vit_forward.15} parent=5 // pred_fallthru
      _
    %p321 = scmp.le.s32.totalorder 1, %s16
    %p322 = scmp.lt.s32.totalorder %s16, 3
    %p323 = pnand %p321, %p322
    %p324 = pneg %p323
    // Predicated region
    $region57: #{vit_forward.15} parent=5 // pred_check
      _
    $region58: #{vit_forward.15} parent=5 // pred_check_branch
      %326 = sbr.rel (%p323) target = $region60
    $region59: #{vit_forward.15} parent=5 // pred_region
      %s327 = ssub.s32 %s16, 1
      %p328 = scmp.lt.s32.totalorder %s21, 1
      %s329 = scalar_select %p328, %s21, 1
      %s330 = smul.addr %s329, 3
      %s331 = smul.addr %s330, 8
      %s332 = scalar_lea.vmem %s0, %s331
      %p333 = pneg %p42
      %p334 = pneg %p39
      %p335 = scmp.lt.s32.totalorder %s21, 1
      %s336 = scalar_select %p335, %s21, 1
      %s337 = smul.addr %s336, 3
      %s338 = smul.addr %s337, 4
      %s339 = scalar_lea.vmem %s1, %s338
      %p340 = pneg %p68
      %p341 = pneg %p65
      %p342 = pneg %p89
      %p343 = pneg %p86
      %p344 = pneg %p110
      %p345 = pneg %p107
      %p346 = pneg %p131
      %p347 = pneg %p128
      %p348 = pneg %p152
      %p349 = pneg %p149
      %p350 = pneg %p173
      %p351 = pneg %p170
      %p352 = pneg %p194
      %p353 = pneg %p191
      %p354 = pneg %p215
      %p355 = pneg %p212
      %p356 = pneg %p236
      %p357 = pneg %p233
      %p358 = pneg %p262
      %p359 = pneg %p259
      %p360 = scmp.lt.s32.totalorder %s21, 1
      %s361 = scalar_select %p360, %s21, 1
      %s362 = smul.addr %s361, 3
      %s363 = smul.addr %s362, 8
      %s364 = scalar_lea.vmem %s10, %s363
      %p365 = scmp.lt.s32.totalorder %s21, 1
      %s366 = scalar_select %p365, %s21, 1
      %s367 = smul.addr %s366, 3
      %s368 = smul.addr %s367, 8
      %s369 = scalar_lea.vmem %s0, %s368
      %p370 = scmp.lt.s32.totalorder %s21, 1
      %s371 = scalar_select %p370, %s21, 1
      %s372 = smul.addr %s371, 3
      %s373 = smul.addr %s372, 4
      %s374 = scalar_lea.vmem %s1, %s373
      %p375 = scmp.lt.s32.totalorder %s21, 1
      %s376 = scalar_select %p375, %s21, 1
      %s377 = smul.addr %s376, 3
      %s378 = smul.addr %s377, 8
      %s379 = scalar_lea.vmem %s10, %s378
      %v381 = vld [vmem:[%s369] sm:$0xff]
      %v382 = vld [vmem:[%s369 + $0x8] sm:$0xff]
      %v383 = vld [vmem:[%s369 + $0x10] sm:$0x1]
      %v384 = vld [vmem:[%s374] sm:$0xf]
      %v385 = vld [vmem:[%s374 + $0x4] sm:$0xf]
      %v386 = vld [vmem:[%s374 + $0x8] sm:$0x1]
      %v387 = vld [vmem:[%s2] sm:$0xf]
      %v388 = vld [vmem:[%s2 + $0x4] sm:$0xf]
      %v389 = vld [vmem:[%s2 + $0x8] sm:$0xf]
      %v390 = vld [vmem:[%s2 + $0xc] sm:$0xf]
      %v391 = vld [vmem:[%s3] sm:$0x1]
      %v393 = vperm.slane %v391, 0
      %v398 = vunpack.c.l.b16 %v384
      %v399 = vunpack.c.l.b16 %v385
      %v400 = vunpack.c.l.b16 %v386
      %v401 = vpack.c.b16 %v399, %v398
      %v402 = vpack.c.b16 %v400, %v400
      %v407 = vunpack.c.l.b16 %v387
      %v408 = vunpack.c.l.b16 %v388
      %v409 = vunpack.c.l.b16 %v389
      %v410 = vunpack.c.l.b16 %v390
      %v411 = vpack.c.b16 %v408, %v407
      %v412 = vpack.c.b16 %v410, %v409
      %vm415 = vcmask 261120
      %v417 = vsel %vm415, %v401, 0
      %v420 = vsel %vm415, %v402, 0
      %422 = vmatpush.bf16.msra.mxu0 0
      %423 = vmatpush.bf16.msra.mxu0 0
      %424 = vmatpush.bf16.msra.mxu0 0
      %425 = vmatpush.bf16.msra.mxu0 0
      %426 = vmatpush.bf16.msra.mxu0 0
      %427 = vmatpush.bf16.msra.mxu0 0
      %428 = vmatpush.bf16.msra.mxu0 %v412
      %429 = vmatpush.bf16.msra.mxu0 %v411
      %430 = vmatmul.bf16.gmra.mxu0 %v417
      %v431 = vpop.f32.mrf.mxu0
      %v432 = vadd.f32 %v393, %v431
      %v433 = vpop.f32.mrf.mxu0
      %v434 = vadd.f32 %v393, %v433
      %435 = vmatmul.bf16.gmra.mxu0 %v420
      %v436 = vpop.f32.mrf.mxu0
      %v437 = vadd.f32 %v393, %v436
      %v438 = vpop.f32.mrf.mxu0
      %439 = vdwg.mxu0
      %v440 = vadd.f32 %v381, %v432
      %v441 = vadd.f32 %v382, %v434
      %v442 = vadd.f32 %v383, %v437
      %v443 = vld [vmem:[%s4] sm:$0x1]
      %v444 = vld [vmem:[%s5] sm:$0x1]
      %v445 = vsel %vm415, %v440, 0.0
      %446 = vadd.xlane.f32.xlu0 %v445
      %v447 = vpop.xlane.xlu0 %446
      %v448 = vsel %vm415, %v441, 0.0
      %449 = vadd.xlane.f32.xlu0 %v448
      %v450 = vpop.xlane.xlu0 %449
      %vm451 = vcmask 253952
      %v452 = vsel %vm451, %v442, 0.0
      %453 = vadd.xlane.f32.xlu0 %v452
      %v454 = vpop.xlane.xlu0 %453
      %v455 = vrcp.pop 32.0
      %v456 = vmul.f32 32.0, %v455
      %v457 = vsub.f32 1.0, %v456
      %v458 = vmul.f32 %v455, %v457
      %v459 = vadd.f32 %v455, %v458
      %vm460 = vweird.f32 %v455
      %v461 = vsel %vm460, %v455, %v459
      %v462 = vmul.f32 %v447, %v461
      %v463 = vmul.f32 %v450, %v461
      %v464 = vmul.f32 %v454, %v461
      %v465 = vsub.f32 %v440, %v462
      %v466 = vsub.f32 %v441, %v463
      %v467 = vsub.f32 %v442, %v464
      %v468 = vmul.f32 %v465, %v465
      %v469 = vmul.f32 %v466, %v466
      %v470 = vmul.f32 %v467, %v467
      %v471 = vsel %vm415, %v468, 0.0
      %472 = vadd.xlane.f32.xlu0 %v471
      %v473 = vpop.xlane.xlu0 %472
      %v474 = vsel %vm415, %v469, 0.0
      %475 = vadd.xlane.f32.xlu0 %v474
      %v476 = vpop.xlane.xlu0 %475
      %v477 = vsel %vm451, %v470, 0.0
      %478 = vadd.xlane.f32.xlu0 %v477
      %v479 = vpop.xlane.xlu0 %478
      %v480 = vmul.f32 %v473, %v461
      %v481 = vmul.f32 %v476, %v461
      %v482 = vmul.f32 %v479, %v461
      %v483 = vadd.f32 %v480, 1e-05
      %v484 = vadd.f32 %v481, 1e-05
      %v485 = vadd.f32 %v482, 1e-05
      %v486 = vrsqrt.pop %v483
      %v487 = vmul.f32 %v486, %v483
      %v488 = vmul.f32 %v487, %v486
      %v489 = vmul.f32 0.5, %v488
      %v490 = vsub.f32 1.5, %v489
      %v491 = vmul.f32 %v486, %v490
      %vm492 = vweird.f32 %v483
      %vm493 = vweird.f32 %v486
      %vm494 = vmor %vm492, %vm493
      %v495 = vsel %vm494, %v486, %v491
      %v496 = vrsqrt.pop %v484
      %v497 = vmul.f32 %v496, %v484
      %v498 = vmul.f32 %v497, %v496
      %v499 = vmul.f32 0.5, %v498
      %v500 = vsub.f32 1.5, %v499
      %v501 = vmul.f32 %v496, %v500
      %vm502 = vweird.f32 %v484
      %vm503 = vweird.f32 %v496
      %vm504 = vmor %vm502, %vm503
      %v505 = vsel %vm504, %v496, %v501
      %v506 = vrsqrt.pop %v485
      %v507 = vmul.f32 %v506, %v485
      %v508 = vmul.f32 %v507, %v506
      %v509 = vmul.f32 0.5, %v508
      %v510 = vsub.f32 1.5, %v509
      %v511 = vmul.f32 %v506, %v510
      %vm512 = vweird.f32 %v485
      %vm513 = vweird.f32 %v506
      %vm514 = vmor %vm512, %vm513
      %v515 = vsel %vm514, %v506, %v511
      %v516 = vmul.f32 %v465, %v495
      %v517 = vmul.f32 %v466, %v505
      %v518 = vmul.f32 %v467, %v515
      %v520 = vperm.slane %v443, 0
      %v522 = vmul.f32 %v516, %v520
      %v523 = vmul.f32 %v517, %v520
      %v524 = vmul.f32 %v518, %v520
      %v526 = vperm.slane %v444, 0
      %v528 = vadd.f32 %v522, %v526
      %v529 = vadd.f32 %v523, %v526
      %v530 = vadd.f32 %v524, %v526
      %v531 = vpack.c.bf16 %v529, %v528
      %v532 = vpack.c.bf16 %v530, %v530
      %v533 = vld [vmem:[%s6] sm:$0xf]
      %v534 = vld [vmem:[%s6 + $0x4] sm:$0xf]
      %v535 = vld [vmem:[%s6 + $0x8] sm:$0xf]
      %v536 = vld [vmem:[%s6 + $0xc] sm:$0xf]
      %v537 = vld [vmem:[%s7] sm:$0x1]
      %v539 = vperm.slane %v537, 0
      %v545 = vunpack.c.l.b16 %v533
      %v546 = vunpack.c.l.b16 %v534
      %v547 = vunpack.c.l.b16 %v535
      %v548 = vunpack.c.l.b16 %v536
      %v549 = vpack.c.b16 %v546, %v545
      %v550 = vpack.c.b16 %v548, %v547
      %v554 = vsel %vm415, %v531, 0
      %v557 = vsel %vm415, %v532, 0
      %559 = vmatpush.bf16.msra.mxu0 0
      %560 = vmatpush.bf16.msra.mxu0 0
      %561 = vmatpush.bf16.msra.mxu0 0
      %562 = vmatpush.bf16.msra.mxu0 0
      %563 = vmatpush.bf16.msra.mxu0 0
      %564 = vmatpush.bf16.msra.mxu0 0
      %565 = vmatpush.bf16.msra.mxu0 %v550
      %566 = vmatpush.bf16.msra.mxu0 %v549
      %567 = vmatmul.bf16.gmra.mxu0 %v554
      %v568 = vpop.f32.mrf.mxu0
      %v569 = vadd.f32 %v539, %v568
      %v570 = vpop.f32.mrf.mxu0
      %v571 = vadd.f32 %v539, %v570
      %572 = vmatmul.bf16.gmra.mxu0 %v557
      %v573 = vpop.f32.mrf.mxu0
      %v574 = vadd.f32 %v539, %v573
      %v575 = vpop.f32.mrf.mxu0
      %576 = vdwg.mxu0
      %v577 = vmul.f32 %v569, -1.702
      %v578 = vmul.f32 %v571, -1.702
      %v579 = vmul.f32 %v574, -1.702
      %v580 = vmul.f32 %v577, 1.442695
      %v581 = vpow.pop %v580
      %v582 = vmul.f32 %v578, 1.442695
      %v583 = vpow.pop %v582
      %v584 = vmul.f32 %v579, 1.442695
      %v585 = vpow.pop %v584
      %v586 = vadd.f32 %v581, 1.0
      %v587 = vadd.f32 %v583, 1.0
      %v588 = vadd.f32 %v585, 1.0
      %v589 = vrcp.pop %v586
      %v590 = vrcp.pop %v587
      %v591 = vrcp.pop %v588
      %v592 = vmul.f32 %v569, %v589
      %v593 = vmul.f32 %v571, %v590
      %v594 = vmul.f32 %v574, %v591
      %v595 = vpack.c.bf16 %v593, %v592
      %v596 = vpack.c.bf16 %v594, %v594
      %v597 = vld [vmem:[%s8] sm:$0xf]
      %v598 = vld [vmem:[%s8 + $0x4] sm:$0xf]
      %v599 = vld [vmem:[%s8 + $0x8] sm:$0xf]
      %v600 = vld [vmem:[%s8 + $0xc] sm:$0xf]
      %v601 = vld [vmem:[%s8 + $0x10] sm:$0xf]
      %v602 = vld [vmem:[%s8 + $0x14] sm:$0xf]
      %v603 = vld [vmem:[%s8 + $0x18] sm:$0xf]
      %v604 = vld [vmem:[%s8 + $0x1c] sm:$0xf]
      %v605 = vld [vmem:[%s8 + $0x20] sm:$0xf]
      %v606 = vld [vmem:[%s8 + $0x24] sm:$0xf]
      %v607 = vld [vmem:[%s8 + $0x28] sm:$0xf]
      %v608 = vld [vmem:[%s8 + $0x2c] sm:$0xf]
      %v609 = vld [vmem:[%s8 + $0x30] sm:$0xf]
      %v610 = vld [vmem:[%s8 + $0x34] sm:$0xf]
      %v611 = vld [vmem:[%s8 + $0x38] sm:$0xf]
      %v612 = vld [vmem:[%s8 + $0x3c] sm:$0xf]
      %v613 = vld [vmem:[%s9] sm:$0x1]
      %v615 = vperm.slane %v613, 0
      %v633 = vunpack.c.l.b16 %v597
      %v634 = vunpack.c.l.b16 %v598
      %v635 = vunpack.c.l.b16 %v599
      %v636 = vunpack.c.l.b16 %v600
      %v637 = vunpack.c.l.b16 %v601
      %v638 = vunpack.c.l.b16 %v602
      %v639 = vunpack.c.l.b16 %v603
      %v640 = vunpack.c.l.b16 %v604
      %v641 = vunpack.c.l.b16 %v605
      %v642 = vunpack.c.l.b16 %v606
      %v643 = vunpack.c.l.b16 %v607
      %v644 = vunpack.c.l.b16 %v608
      %v645 = vunpack.c.l.b16 %v609
      %v646 = vunpack.c.l.b16 %v610
      %v647 = vunpack.c.l.b16 %v611
      %v648 = vunpack.c.l.b16 %v612
      %v649 = vpack.c.b16 %v634, %v633
      %v650 = vpack.c.b16 %v636, %v635
      %v651 = vpack.c.b16 %v638, %v637
      %v652 = vpack.c.b16 %v640, %v639
      %v653 = vpack.c.b16 %v642, %v641
      %v654 = vpack.c.b16 %v644, %v643
      %v655 = vpack.c.b16 %v646, %v645
      %v656 = vpack.c.b16 %v648, %v647
      %665 = vmatpush.bf16.msra.mxu0 %v656
      %666 = vmatpush.bf16.msra.mxu0 %v655
      %667 = vmatpush.bf16.msra.mxu0 %v654
      %668 = vmatpush.bf16.msra.mxu0 %v653
      %669 = vmatpush.bf16.msra.mxu0 %v652
      %670 = vmatpush.bf16.msra.mxu0 %v651
      %671 = vmatpush.bf16.msra.mxu0 %v650
      %672 = vmatpush.bf16.msra.mxu0 %v649
      %673 = vmatmul.bf16.gmra.mxu0 %v595
      %v674 = vpop.f32.mrf.mxu0
      %v675 = vadd.f32 %v615, %v674
      %v676 = vpop.f32.mrf.mxu0
      %v677 = vadd.f32 %v615, %v676
      %678 = vmatmul.bf16.gmra.mxu0 %v596
      %v679 = vpop.f32.mrf.mxu0
      %v680 = vadd.f32 %v615, %v679
      %v681 = vpop.f32.mrf.mxu0
      %682 = vdwg.mxu0
      %v683 = vadd.f32 %v440, %v675
      %v684 = vadd.f32 %v441, %v677
      %v685 = vadd.f32 %v442, %v680
      %686 = vst.msk [vmem:[%s379] sm:$0xff] %vm415, %v683
      %687 = vst.msk [vmem:[%s379 + $0x8] sm:$0xff] %vm415, %v684
      %688 = vst.msk [vmem:[%s379 + $0x10] sm:$0x1] %vm451, %v685
      %p689 = scmp.lt.s32.totalorder %s21, 1
      %s690 = scalar_select %p689, %s21, 1
      %s691 = smul.addr %s690, 3
      %s692 = smul.addr %s691, 8
      %s693 = scalar_lea.vmem %s10, %s692
      // Predicated region
      $region61: #{vit_forward.15} parent=59 // pred_check
        %p694 = pneg %p259
      $region62: #{vit_forward.15} parent=59 // pred_check_branch
        %696 = sbr.rel (%p694) target = $region64
      $region63: #{vit_forward.15} parent=59 // pred_region
        _
      $region64: #{vit_forward.15} parent=59 // pred_fallthru
        _
    $region60: #{vit_forward.15} parent=5 // pred_fallthru
      _
    %p697 = scmp.le.s32.totalorder 2, %s16
    // Predicated region
    $region65: #{vit_forward.15} parent=5 // pred_check
      %p698 = pneg %p697
    $region66: #{vit_forward.15} parent=5 // pred_check_branch
      %700 = sbr.rel (%p698) target = $region68
    $region67: #{vit_forward.15} parent=5 // pred_region
      %s701 = ssub.s32 %s16, 2
      // Predicated region
      $region69: #{vit_forward.15} parent=67 // pred_check
        %p702 = pneg %p265
      $region70: #{vit_forward.15} parent=67 // pred_check_branch
        %704 = sbr.rel (%p702) target = $region72
      $region71: #{vit_forward.15} parent=67 // pred_region
        %p705 = scmp.lt.s32.totalorder %s22, 1
        %s706 = scalar_select %p705, %s22, 1
        %s707 = smul.addr %s706, 3
        %s708 = smul.addr %s707, 8
        %s709 = scalar_lea.vmem %s10, %s708
      $region72: #{vit_forward.15} parent=67 // pred_fallthru
        _
    $region68: #{vit_forward.15} parent=5 // pred_fallthru
      _
  $region6: #{vit_forward.15} parent=0 // loop_footer
    %s20 = sadd.s32 1, %s16
  $region7: #{vit_forward.15} parent=0 // loop_footer_branch
    %15 = sbr.rel target = $region3
  $region8: #{vit_forward.15} parent=0 // loop_exit
    _

// kernel: vit_forward.21
$region0: #{vit_forward.21}
  #allocation0 [shape = 'u32[]', space=smem, size = 0x4, offset = 0x4, fixed_abs, tag = 'smem constant byte address 0x4 - core index']
  #allocation1 [shape = 'u32[72,128]{1,0:T(1,128)}', space=vmem, size = 0x9000, scoped, tag = 'internal scratch']
  #allocation2 [shape = 'f32[2,16]{1,0:T(2,128)}', space=vmem, size = 0x400, scoped, tag = 'scratch operand']
  %s0 = inlined_call_operand.vmem [shape: bf16[2,32], index: 0, kind: input, shape index: {}]
  %s1 = inlined_call_operand.vmem [shape: bf16[32,16], index: 1, kind: input, shape index: {}]
  %s2 = inlined_call_operand.hbm [shape: f32[2,16], index: 2, kind: output, shape index: {}]
  %s3 = sld [smem:[#allocation0]]
  $region26: #{vit_forward.21} parent=0
    _
  %s5 = ssub.s32 1, %s3
  %s6 = scalar_select 0, %s5, %s3
  $region1: #{vit_forward.21} parent=0
    #allocation3 [shape = 'u8[1024]{0}', space=vmem, size = 0x400, scoped, tag = 'output window, operand 0, single buffered']
    #allocation4 [shape = 's32[1]{0}', space=sflag, size = 0x4, scoped, tag = 'scoped memory for vit_forward.21']
    %7 = vsyncpa [#allocation4], 0
    // Predicated region
    $region2: #{vit_forward.21} parent=1 // pred_check
      _
    $region3: #{vit_forward.21} parent=1 // pred_check_branch
      %9 = sbr.rel (0) target = $region5
    $region4: #{vit_forward.21} parent=1 // pred_region
      _
    $region5: #{vit_forward.21} parent=1 // pred_fallthru
      _
    // Predicated region
    $region6: #{vit_forward.21} parent=1 // pred_check
      _
    $region7: #{vit_forward.21} parent=1 // pred_check_branch
      %11 = sbr.rel (0) target = $region9
    $region8: #{vit_forward.21} parent=1 // pred_region
      _
    $region9: #{vit_forward.21} parent=1 // pred_fallthru
      _
    %p13 = scmp.eq.s32.totalorder 0, 0
    // Predicated region
    $region10: #{vit_forward.21} parent=1 // pred_check
      %p14 = pneg %p13
    $region11: #{vit_forward.21} parent=1 // pred_check_branch
      %16 = sbr.rel (%p14) target = $region13
    $region12: #{vit_forward.21} parent=1 // pred_region
      %vm17 = vcmask 123904
      %18 = vst.msk [vmem:[#allocation2] sm:$0x3] %vm17, 0.0
    $region13: #{vit_forward.21} parent=1 // pred_fallthru
      _
    %v19 = vld [vmem:[#allocation2] sm:$0x3]
    %v20 = vld [vmem:[%s0] sm:$0x1]
    %v21 = vld [vmem:[%s1] sm:$0xf]
    %v22 = vld [vmem:[%s1 + $0x4] sm:$0xf]
    %v23 = vld [vmem:[%s1 + $0x8] sm:$0xf]
    %v24 = vld [vmem:[%s1 + $0xc] sm:$0xf]
    %v29 = vunpack.c.l.b16 %v21
    %v30 = vunpack.c.l.b16 %v22
    %v31 = vunpack.c.l.b16 %v23
    %v32 = vunpack.c.l.b16 %v24
    %v33 = vpack.c.b16 %v30, %v29
    %v34 = vpack.c.b16 %v32, %v31
    %vm37 = vcmask 261120
    %v39 = vsel %vm37, %v20, 0
    %41 = vmatpush.bf16.msra.mxu0 0
    %42 = vmatpush.bf16.msra.mxu0 0
    %43 = vmatpush.bf16.msra.mxu0 0
    %44 = vmatpush.bf16.msra.mxu0 0
    %45 = vmatpush.bf16.msra.mxu0 0
    %46 = vmatpush.bf16.msra.mxu0 0
    %47 = vmatpush.bf16.msra.mxu0 %v34
    %48 = vmatpush.bf16.msra.mxu0 %v33
    %49 = vmatmul.bf16.gmra.mxu0 %v39
    %v50 = vpop.f32.mrf.mxu0
    %v51 = vadd.f32 0.0, %v50
    %v52 = vpop.f32.mrf.mxu0
    %53 = vdwg.mxu0
    %v54 = vadd.f32 %v19, %v51
    %vm55 = vcmask 123904
    %56 = vst.msk [vmem:[#allocation2] sm:$0x3] %vm55, %v54
    // Predicated region
    $region14: #{vit_forward.21} parent=1 // pred_check
      %p57 = pneg %p13
    $region15: #{vit_forward.21} parent=1 // pred_check_branch
      %59 = sbr.rel (%p57) target = $region17
    $region16: #{vit_forward.21} parent=1 // pred_region
      %v60 = vld [vmem:[#allocation2] sm:$0x3]
      %61 = vst.msk [vmem:[#allocation3] sm:$0x3] %vm55, %v60
    $region17: #{vit_forward.21} parent=1 // pred_fallthru
      _
    // Predicated region
    $region18: #{vit_forward.21} parent=1 // pred_check
      _
    $region19: #{vit_forward.21} parent=1 // pred_check_branch
      %63 = sbr.rel (0) target = $region21
    $region20: #{vit_forward.21} parent=1 // pred_region
      %65 = vsyncadd [#allocation4], 0
      %s67 = sshll.u32 [#allocation3], 4
      %s68 = int_to_ptr.vmem [resolvable:$true] %s67
      %s69 = sshll.u32 %s2, 4
      %s70 = int_to_ptr.hbm [resolvable:$true] %s69
      %72 = dma.vmem_to_hbm [thread:$0]  %s68, 32, %s70, [#allocation4]
    $region21: #{vit_forward.21} parent=1 // pred_fallthru
      _
    // Predicated region
    $region22: #{vit_forward.21} parent=1 // pred_check
      _
    $region23: #{vit_forward.21} parent=1 // pred_check_branch
      %74 = sbr.rel (0) target = $region25
    $region24: #{vit_forward.21} parent=1 // pred_region
      %76 = dma.done [#allocation4], 32
    $region25: #{vit_forward.21} parent=1 // pred_fallthru
      _
    %77 = vsyncpa [#allocation4], 1

</llo_original>
